<compile_context>
chip_gen: v5e
topology: v5e:2x2
jax: 0.10.0
libtpu: 0.0.40
codegen_flags: <defaults>
</compile_context>

<pallas_src>
import functools

import jax
import jax.numpy as jnp
import numpy as np
from jax.experimental import pallas as pl
from jax.experimental.pallas import tpu as pltpu


# --------------------------------------------------------------------------- #
# One-time host-side weight packing (run eagerly, outside jit).
# --------------------------------------------------------------------------- #
def _pack_conv1(w1, b1):
    """Repack Conv1d(1->4, k=5, pad=2) into a (16, 12) block-matmul weight.

    Row layout (so that pool1 == max(Y[0:8], Y[8:16])):
        rows  0: 4 -> output phase m=0 (index 4u+0), channels 0..3
        rows  4: 8 -> phase m=2,   rows 8:12 -> phase m=1,  rows 12:16 -> phase m=3
    Column layout: col = blk*4 + r, blk in {0,1,2} <-> input shift q = blk-1,
    r = input polyphase row; the kernel-side source is xpad[:, blk:blk+Lq] with
    xpad[r, 1+u] = x[4u + r] and single zero-halo columns on each side.
    """
    c1, _, K = w1.shape
    P, half = 4, (K - 1) // 2
    rows, cols = P * c1, 3 * P
    c_idx = np.zeros((rows, cols), np.int32)
    k_idx = np.zeros((rows, cols), np.int32)
    msk = np.zeros((rows, cols), np.float32)
    for m in range(P):
        for c in range(c1):
            row = (m % 2) * (2 * c1) + (m // 2) * c1 + c
            for blk in range(3):
                for r in range(P):
                    s = 4 * (blk - 1) + r          # source sample x[4u + s]
                    k = s - m + half               # conv1 tap index
                    if 0 <= k < K:
                        c_idx[row, blk * P + r] = c
                        k_idx[row, blk * P + r] = k
                        msk[row, blk * P + r] = 1.0
    w1cat = w1.reshape(c1, K)[c_idx, k_idx] * msk
    b1cat = jnp.tile(b1, P).reshape(rows, 1)       # row % 4 == channel
    return w1cat.astype(jnp.float32), b1cat.astype(jnp.float32)


def _pack_conv2(w2, b2):
    """Repack Conv1d(4->8, k=5, pad=2) into a (16, 24) block-matmul weight.

    Rows: pi*8 + o  (pi = output phase of the length-512 signal; pool2 is then
    max(Z[0:8], Z[8:16])).  Columns: col = blk*8 + parity*4 + ci, blk in {0,1,2}
    <-> pooled-signal shift v = blk-1; the kernel-side source is
    pp[:, blk:blk+Lq] where pp rows 0:4 are pooled even indices, 4:8 odd.
    """
    c2, c1, K = w2.shape
    half = (K - 1) // 2
    rows, cols = 2 * c2, 3 * 2 * c1
    o_idx = np.zeros((rows, cols), np.int32)
    c_idx = np.zeros((rows, cols), np.int32)
    k_idx = np.zeros((rows, cols), np.int32)
    msk = np.zeros((rows, cols), np.float32)
    for pi in range(2):
        for o in range(c2):
            row = pi * c2 + o
            for blk in range(3):
                for par in range(2):
                    for ci in range(c1):
                        col = blk * (2 * c1) + par * c1 + ci
                        k = 2 * (blk - 1) + par - pi + half
                        if 0 <= k < K:
                            o_idx[row, col] = o
                            c_idx[row, col] = ci
                            k_idx[row, col] = k
                            msk[row, col] = 1.0
    w2cat = w2[o_idx, c_idx, k_idx] * msk
    b2cat = jnp.tile(b2, 2).reshape(rows, 1)
    return w2cat.astype(jnp.float32), b2cat.astype(jnp.float32)


def pack_params(params):
    """One-time repack (outside jit): conv weights -> block-matmul form,
    fc1 weight -> bf16 (halves the dominant HBM stream; f32 accumulation)."""
    w1, b1, w2, b2, wf1, bf1, wf2, bf2 = params
    w1cat, b1cat = _pack_conv1(w1, b1)
    w2cat, b2cat = _pack_conv2(w2, b2)
    return (w1cat, b1cat, w2cat, b2cat,
            wf1.astype(jnp.bfloat16), bf1.reshape(1, -1), wf2, bf2)


# --------------------- fused conv1/pool/conv2/pool kernel ------------------- #
def _conv_pool_kernel(x_ref, w1_ref, b1_ref, w2_ref, b2_ref, o_ref,
                      xpad_ref, pp_ref, *, Lq):
    # x_ref : (1, 4, Lq)   polyphase input, x_ref[0, r, u] = x[4u + r]
    # w1_ref: (16, 12)     packed conv1 weight (see _pack_conv1)
    # b1_ref: (16, 1)
    # w2_ref: (16, 24)     packed conv2 weight (see _pack_conv2)
    # b2_ref: (16, 1)
    # o_ref : (1, 8, Lq)   output after conv2 + relu + pool2 (channel-major)
    # xpad/pp scratch: zero-haloed rows (width Lq+2) for the +-1 shift blocks.
    f32 = jnp.float32
    P = 4

    # Zero-haloed polyphase input: xpad[r, 1+u] = x[4u + r].
    xpad_ref[:, 0:1] = jnp.zeros((P, 1), f32)
    xpad_ref[:, Lq + 1:Lq + 2] = jnp.zeros((P, 1), f32)
    xpad_ref[:, 1:Lq + 1] = x_ref[0]

    # conv1 (+bias, relu) for all 4 output phases at once: one MXU contraction
    # per input-shift block q in {-1, 0, +1}.
    y = (jnp.dot(w1_ref[:, 0:P], xpad_ref[:, 0:Lq], preferred_element_type=f32)
         + jnp.dot(w1_ref[:, P:2 * P], xpad_ref[:, 1:Lq + 1],
                   preferred_element_type=f32)
         + jnp.dot(w1_ref[:, 2 * P:3 * P], xpad_ref[:, 2:Lq + 2],
                   preferred_element_type=f32))
    y = jnp.maximum(y + b1_ref[...], 0.0)                    # (16, Lq)

    # pool1: rows ordered (m0, m2 | m1, m3) so a single blocked max yields the
    # pooled signal with rows (even pooled index x 4ch | odd pooled index x 4ch).
    pp_ref[:, 0:1] = jnp.zeros((2 * P, 1), f32)
    pp_ref[:, Lq + 1:Lq + 2] = jnp.zeros((2 * P, 1), f32)
    pp_ref[:, 1:Lq + 1] = jnp.maximum(y[0:8], y[8:16])       # (8, Lq)

    # conv2 (+bias, relu): again one MXU contraction per pooled shift block.
    z = (jnp.dot(w2_ref[:, 0:8], pp_ref[:, 0:Lq], preferred_element_type=f32)
         + jnp.dot(w2_ref[:, 8:16], pp_ref[:, 1:Lq + 1],
                   preferred_element_type=f32)
         + jnp.dot(w2_ref[:, 16:24], pp_ref[:, 2:Lq + 2],
                   preferred_element_type=f32))
    z = jnp.maximum(z + b2_ref[...], 0.0)                    # (16, Lq)

    # pool2: rows ordered (phase 0 | phase 1) -> blocked max is the final output.
    o_ref[0] = jnp.maximum(z[0:8], z[8:16])                  # (8, Lq)


def conv_pool_block(x, w1cat, b1cat, w2cat, b2cat):
    # x: (B, 1, L) -> (B, 8, L//4) == pool(relu(conv2(pool(relu(conv1(x)))))).
    B, c_in, L = x.shape
    assert c_in == 1 and L % 4 == 0
    Lq = L // 4
    c2 = w2cat.shape[0] // 2
    # Host-side polyphase split (tiny, KB-sized gather); makes both in-kernel
    # pools strided-slice free and fills the sublane dimension of the conv tiles.
    xph = jnp.transpose(x.reshape(B, Lq, 4), (0, 2, 1))      # (B, 4, Lq)
    kernel = functools.partial(_conv_pool_kernel, Lq=Lq)
    return pl.pallas_call(
        kernel,
        out_shape=jax.ShapeDtypeStruct((B, c2, Lq), jnp.float32),
        grid=(B,),
        in_specs=[
            pl.BlockSpec((1, 4, Lq), lambda b: (b, 0, 0)),
            pl.BlockSpec(w1cat.shape, lambda b: (0, 0)),
            pl.BlockSpec(b1cat.shape, lambda b: (0, 0)),
            pl.BlockSpec(w2cat.shape, lambda b: (0, 0)),
            pl.BlockSpec(b2cat.shape, lambda b: (0, 0)),
        ],
        out_specs=pl.BlockSpec((1, c2, Lq), lambda b: (b, 0, 0)),
        scratch_shapes=[
            pltpu.VMEM((4, Lq + 2), jnp.float32),
            pltpu.VMEM((8, Lq + 2), jnp.float32),
        ],
        compiler_params=pltpu.CompilerParams(dimension_semantics=("parallel",)),
    )(xph, w1cat, b1cat, w2cat, b2cat)


# ------------------------------ fused fc1 + fc2 ----------------------------- #
def _fc_fused_kernel(x_ref, w1_ref, b1_ref, w2_ref, o_ref, *, tn, nt_in):
    # x_ref : (B, Kin) f32   flattened activations (constant block, loaded once)
    # w1_ref: (Kin, tn) bf16 fc1 weight tile for grid step (i, j)
    # b1_ref: (1, tn)  f32
    # w2_ref: (N1, 10) f32   full fc2 weight, resident (constant block index)
    # o_ref : (1, B, 10) f32 partial logits for outer step i (resident across j)
    j = pl.program_id(1)

    # fc1 tile: bf16 MXU matmul with f32 accumulation, bias + relu in f32.
    h = jnp.dot(x_ref[...].astype(jnp.bfloat16), w1_ref[...],
                preferred_element_type=jnp.float32)
    h = jnp.maximum(h + b1_ref[...], 0.0)                    # (B, tn)

    # Contract immediately with the matching rows of the resident fc2 weight;
    # h never leaves VMEM/vregs.
    tile = pl.program_id(0) * nt_in + j
    start = pl.multiple_of(tile * tn, tn)
    part = jnp.dot(h, w2_ref[pl.ds(start, tn), :],
                   preferred_element_type=jnp.float32)       # (B, 10)

    # Accumulate into this outer step's output block across the inner axis.
    @pl.when(j == 0)
    def _():
        o_ref[0] = part

    @pl.when(j > 0)
    def _():
        o_ref[0] = o_ref[0] + part


def fc_fused(x, wf1_bf16, bf1_row, wf2, bf2, *, tn=512, n_par=2):
    # out = relu(x @ wf1 + bf1) @ wf2 + bf2.
    # Grid (n_par, nt_in): outer "parallel" axis of extent 2 shards the bf16 fc1
    # weight stream across both TensorCores on v7x; inner "arbitrary" axis
    # accumulates partial logits in VMEM.  Host adds the 2 partials + bf2.
    B, Kin = x.shape
    N1 = wf1_bf16.shape[1]
    N2 = wf2.shape[1]
    assert N1 % (n_par * tn) == 0
    nt_in = N1 // (n_par * tn)
    kernel = functools.partial(_fc_fused_kernel, tn=tn, nt_in=nt_in)
    partials = pl.pallas_call(
        kernel,
        out_shape=jax.ShapeDtypeStruct((n_par, B, N2), jnp.float32),
        grid=(n_par, nt_in),
        in_specs=[
            pl.BlockSpec((B, Kin), lambda i, j: (0, 0)),
            pl.BlockSpec((Kin, tn), lambda i, j: (0, i * nt_in + j)),
            pl.BlockSpec((1, tn), lambda i, j: (0, i * nt_in + j)),
            pl.BlockSpec((N1, N2), lambda i, j: (0, 0)),
        ],
        out_specs=pl.BlockSpec((1, B, N2), lambda i, j: (i, 0, 0)),
        compiler_params=pltpu.CompilerParams(
            dimension_semantics=("parallel", "arbitrary"),
            vmem_limit_bytes=32 * 1024 * 1024),
    )(x, wf1_bf16, bf1_row, wf2)
    # Only n_par (=2) tiny partials left; finish on the host.
    return jnp.sum(partials, axis=0) + bf2[None, :]


# ------------------------------- full forward ------------------------------- #
def cnn_forward(x, packed):
    w1cat, b1cat, w2cat, b2cat, wf1_bf16, bf1_row, wf2, bf2 = packed
    B = x.shape[0]
    h = conv_pool_block(x, w1cat, b1cat, w2cat, b2cat)       # (B, 8, 256)
    h = h.reshape(B, -1)                                     # (B, 2048), == torch .view
    return fc_fused(h, wf1_bf16, bf1_row, wf2, bf2)          # (B, 10)


# ---------------------- deterministic parameter init ------------------------ #
def init_params(key):
    ks = jax.random.split(key, 8)

    def u(k, shape, fan_in):
        bound = 1.0 / jnp.sqrt(jnp.float32(fan_in))
        return jax.random.uniform(k, shape, jnp.float32, -bound, bound)

    w1 = u(ks[0], (4, 1, 5), 5)          # Conv1d(1 -> 4, k=5)
    b1 = u(ks[1], (4,), 5)
    w2 = u(ks[2], (8, 4, 5), 20)         # Conv1d(4 -> 8, k=5)
    b2 = u(ks[3], (8,), 20)
    wf1 = u(ks[4], (2048, 1024), 2048)   # Linear(2048 -> 1024), stored (in, out)
    bf1 = u(ks[5], (1024,), 2048)
    wf2 = u(ks[6], (1024, 10), 1024)     # Linear(1024 -> 10)
    bf2 = u(ks[7], (10,), 1024)
    return (w1, b1, w2, b2, wf1, bf1, wf2, bf2)


# ----------------------------- pure-JAX reference --------------------------- #
def ref_forward(x, params):
    w1, b1, w2, b2, wf1, bf1, wf2, bf2 = params
    dn = ("NCH", "OIH", "NCH")

    def conv(h, w, b):
        y = jax.lax.conv_general_dilated(h, w, window_strides=(1,),
                                         padding=[(2, 2)], dimension_numbers=dn)
        return jax.nn.relu(y + b[None, :, None])

    def pool(y):
        B, C, L = y.shape
        return jnp.max(y.reshape(B, C, L // 2, 2), axis=-1)

    h = pool(conv(x, w1, b1))
    h = pool(conv(h, w2, b2))
    h = h.reshape(x.shape[0], -1)
    h = jax.nn.relu(jnp.dot(h, wf1, precision=jax.lax.Precision.HIGHEST) + bf1)
    return jnp.dot(h, wf2, precision=jax.lax.Precision.HIGHEST) + bf2


if __name__ == "__main__":
    key = jax.random.PRNGKey(0)
    kx, kp = jax.random.split(key)
    params = init_params(kp)
    packed = pack_params(params)     # one-time repack + fc1 bf16 cast, outside jit

    # Input length implied by the module: fc1 expects 8 * (L / 4) = 2048 => L = 1024.
    B = 2
    x = jax.random.normal(kx, (B, 1, 1024), jnp.float32)

    out = jax.block_until_ready(jax.jit(cnn_forward)(x, packed))
    ref = ref_forward(x, params)

    assert out.shape == (B, 10) and out.dtype == jnp.float32
    err = float(jnp.max(jnp.abs(out - ref)))
    assert jnp.allclose(out, ref, rtol=1e-2, atol=1e-2), err
    print("KERNEL_OK")
</pallas_src>

<mosaic_0001>
module attributes {stable_mosaic.version = 11 : i64} {
  func.func @_conv_pool_kernel(%arg0: i32, %arg1: memref<1x4x256xf32, #tpu.memory_space<vmem>>, %arg2: memref<16x12xf32, #tpu.memory_space<vmem>>, %arg3: memref<16x1xf32, #tpu.memory_space<vmem>>, %arg4: memref<16x24xf32, #tpu.memory_space<vmem>>, %arg5: memref<16x1xf32, #tpu.memory_space<vmem>>, %arg6: memref<1x8x256xf32, #tpu.memory_space<vmem>>, %arg7: memref<4x258xf32, #tpu.memory_space<vmem>>, %arg8: memref<8x258xf32, #tpu.memory_space<vmem>>) attributes {dimension_semantics = [#tpu.dimension_semantics<parallel>], iteration_bounds = array<i64: 2>, scalar_prefetch = 0 : i64, scratch_operands = 2 : i64, tpu.core_type = #tpu.core_type<tc>, window_params = [{transform_indices = @transform_0, window_bounds = array<i64: 1, 4, 256>}, {pipeline_mode = #tpu.pipeline_mode<synchronous>, transform_indices = @transform_1, window_bounds = array<i64: 16, 12>}, {pipeline_mode = #tpu.pipeline_mode<synchronous>, transform_indices = @transform_2, window_bounds = array<i64: 16, 1>}, {pipeline_mode = #tpu.pipeline_mode<synchronous>, transform_indices = @transform_3, window_bounds = array<i64: 16, 24>}, {pipeline_mode = #tpu.pipeline_mode<synchronous>, transform_indices = @transform_4, window_bounds = array<i64: 16, 1>}, {transform_indices = @transform_5, window_bounds = array<i64: 1, 8, 256>}]} {
    %cst = arith.constant 0.000000e+00 : f32
    %0 = vector.broadcast %cst : f32 to vector<4x1xf32>
    %c0 = arith.constant 0 : index
    %c0_0 = arith.constant 0 : index
    %1 = vector.load %arg7[%c0, %c0_0] : memref<4x258xf32, #tpu.memory_space<vmem>>, vector<4x1xf32>
    tpu.vector_store %arg7[%c0, %c0_0], %0 {strides = array<i32>} : memref<4x258xf32, #tpu.memory_space<vmem>>, vector<4x1xf32>,
    %cst_1 = arith.constant 0.000000e+00 : f32
    %2 = vector.broadcast %cst_1 : f32 to vector<4x1xf32>
    %c0_2 = arith.constant 0 : index
    %c257 = arith.constant 257 : index
    %3 = vector.load %arg7[%c0_2, %c257] : memref<4x258xf32, #tpu.memory_space<vmem>>, vector<4x1xf32>
    tpu.vector_store %arg7[%c0_2, %c257], %2 {strides = array<i32>} : memref<4x258xf32, #tpu.memory_space<vmem>>, vector<4x1xf32>,
    %c0_3 = arith.constant 0 : index
    %c0_4 = arith.constant 0 : index
    %c0_5 = arith.constant 0 : index
    %4 = vector.load %arg1[%c0_3, %c0_4, %c0_5] : memref<1x4x256xf32, #tpu.memory_space<vmem>>, vector<1x4x256xf32>
    %5 = vector.shape_cast %4 : vector<1x4x256xf32> to vector<4x256xf32>
    %c0_6 = arith.constant 0 : index
    %c1 = arith.constant 1 : index
    %6 = vector.load %arg7[%c0_6, %c1] : memref<4x258xf32, #tpu.memory_space<vmem>>, vector<4x256xf32>
    tpu.vector_store %arg7[%c0_6, %c1], %5 {strides = array<i32>} : memref<4x258xf32, #tpu.memory_space<vmem>>, vector<4x256xf32>,
    %c0_7 = arith.constant 0 : index
    %c0_8 = arith.constant 0 : index
    %7 = vector.load %arg2[%c0_7, %c0_8] : memref<16x12xf32, #tpu.memory_space<vmem>>, vector<16x4xf32>
    %c0_9 = arith.constant 0 : index
    %c0_10 = arith.constant 0 : index
    %8 = vector.load %arg7[%c0_9, %c0_10] : memref<4x258xf32, #tpu.memory_space<vmem>>, vector<4x256xf32>
    %cst_11 = arith.constant dense<0.000000e+00> : vector<16x256xf32>
    %9 = tpu.matmul %7, %8, %cst_11 {dimension_numbers = #tpu.dot_dimension_numbers<[1], [0], [0], [1], [0, 0, 1, 1], [], []>} : vector<16x4xf32>, vector<4x256xf32>, vector<16x256xf32> -> vector<16x256xf32>
    %c0_12 = arith.constant 0 : index
    %c4 = arith.constant 4 : index
    %10 = vector.load %arg2[%c0_12, %c4] : memref<16x12xf32, #tpu.memory_space<vmem>>, vector<16x4xf32>
    %c0_13 = arith.constant 0 : index
    %c1_14 = arith.constant 1 : index
    %11 = vector.load %arg7[%c0_13, %c1_14] : memref<4x258xf32, #tpu.memory_space<vmem>>, vector<4x256xf32>
    %cst_15 = arith.constant dense<0.000000e+00> : vector<16x256xf32>
    %12 = tpu.matmul %10, %11, %cst_15 {dimension_numbers = #tpu.dot_dimension_numbers<[1], [0], [0], [1], [0, 0, 1, 1], [], []>} : vector<16x4xf32>, vector<4x256xf32>, vector<16x256xf32> -> vector<16x256xf32>
    %13 = arith.addf %9, %12 : vector<16x256xf32>
    %c0_16 = arith.constant 0 : index
    %c8 = arith.constant 8 : index
    %14 = vector.load %arg2[%c0_16, %c8] : memref<16x12xf32, #tpu.memory_space<vmem>>, vector<16x4xf32>
    %c0_17 = arith.constant 0 : index
    %c2 = arith.constant 2 : index
    %15 = vector.load %arg7[%c0_17, %c2] : memref<4x258xf32, #tpu.memory_space<vmem>>, vector<4x256xf32>
    %cst_18 = arith.constant dense<0.000000e+00> : vector<16x256xf32>
    %16 = tpu.matmul %14, %15, %cst_18 {dimension_numbers = #tpu.dot_dimension_numbers<[1], [0], [0], [1], [0, 0, 1, 1], [], []>} : vector<16x4xf32>, vector<4x256xf32>, vector<16x256xf32> -> vector<16x256xf32>
    %17 = arith.addf %13, %16 : vector<16x256xf32>
    %c0_19 = arith.constant 0 : index
    %c0_20 = arith.constant 0 : index
    %18 = vector.load %arg3[%c0_19, %c0_20] : memref<16x1xf32, #tpu.memory_space<vmem>>, vector<16x1xf32>
    %19 = vector.broadcast %18 : vector<16x1xf32> to vector<16x256xf32>
    %20 = arith.addf %17, %19 : vector<16x256xf32>
    %cst_21 = arith.constant 0.000000e+00 : f32
    %21 = vector.broadcast %cst_21 : f32 to vector<16x256xf32>
    %22 = arith.maximumf %20, %21 : vector<16x256xf32>
    %cst_22 = arith.constant 0.000000e+00 : f32
    %23 = vector.broadcast %cst_22 : f32 to vector<8x1xf32>
    %c0_23 = arith.constant 0 : index
    %c0_24 = arith.constant 0 : index
    %24 = vector.load %arg8[%c0_23, %c0_24] : memref<8x258xf32, #tpu.memory_space<vmem>>, vector<8x1xf32>
    tpu.vector_store %arg8[%c0_23, %c0_24], %23 {strides = array<i32>} : memref<8x258xf32, #tpu.memory_space<vmem>>, vector<8x1xf32>,
    %cst_25 = arith.constant 0.000000e+00 : f32
    %25 = vector.broadcast %cst_25 : f32 to vector<8x1xf32>
    %c0_26 = arith.constant 0 : index
    %c257_27 = arith.constant 257 : index
    %26 = vector.load %arg8[%c0_26, %c257_27] : memref<8x258xf32, #tpu.memory_space<vmem>>, vector<8x1xf32>
    tpu.vector_store %arg8[%c0_26, %c257_27], %25 {strides = array<i32>} : memref<8x258xf32, #tpu.memory_space<vmem>>, vector<8x1xf32>,
    %27 = vector.extract_strided_slice %22 {offsets = [0, 0], sizes = [8, 256], strides = [1, 1]} : vector<16x256xf32> to vector<8x256xf32>
    %28 = vector.extract_strided_slice %22 {offsets = [8, 0], sizes = [8, 256], strides = [1, 1]} : vector<16x256xf32> to vector<8x256xf32>
    %29 = arith.maximumf %27, %28 : vector<8x256xf32>
    %c0_28 = arith.constant 0 : index
    %c1_29 = arith.constant 1 : index
    %30 = vector.load %arg8[%c0_28, %c1_29] : memref<8x258xf32, #tpu.memory_space<vmem>>, vector<8x256xf32>
    tpu.vector_store %arg8[%c0_28, %c1_29], %29 {strides = array<i32>} : memref<8x258xf32, #tpu.memory_space<vmem>>, vector<8x256xf32>,
    %c0_30 = arith.constant 0 : index
    %c0_31 = arith.constant 0 : index
    %31 = vector.load %arg4[%c0_30, %c0_31] : memref<16x24xf32, #tpu.memory_space<vmem>>, vector<16x8xf32>
    %c0_32 = arith.constant 0 : index
    %c0_33 = arith.constant 0 : index
    %32 = vector.load %arg8[%c0_32, %c0_33] : memref<8x258xf32, #tpu.memory_space<vmem>>, vector<8x256xf32>
    %cst_34 = arith.constant dense<0.000000e+00> : vector<16x256xf32>
    %33 = tpu.matmul %31, %32, %cst_34 {dimension_numbers = #tpu.dot_dimension_numbers<[1], [0], [0], [1], [0, 0, 1, 1], [], []>} : vector<16x8xf32>, vector<8x256xf32>, vector<16x256xf32> -> vector<16x256xf32>
    %c0_35 = arith.constant 0 : index
    %c8_36 = arith.constant 8 : index
    %34 = vector.load %arg4[%c0_35, %c8_36] : memref<16x24xf32, #tpu.memory_space<vmem>>, vector<16x8xf32>
    %c0_37 = arith.constant 0 : index
    %c1_38 = arith.constant 1 : index
    %35 = vector.load %arg8[%c0_37, %c1_38] : memref<8x258xf32, #tpu.memory_space<vmem>>, vector<8x256xf32>
    %cst_39 = arith.constant dense<0.000000e+00> : vector<16x256xf32>
    %36 = tpu.matmul %34, %35, %cst_39 {dimension_numbers = #tpu.dot_dimension_numbers<[1], [0], [0], [1], [0, 0, 1, 1], [], []>} : vector<16x8xf32>, vector<8x256xf32>, vector<16x256xf32> -> vector<16x256xf32>
    %37 = arith.addf %33, %36 : vector<16x256xf32>
    %c0_40 = arith.constant 0 : index
    %c16 = arith.constant 16 : index
    %38 = vector.load %arg4[%c0_40, %c16] : memref<16x24xf32, #tpu.memory_space<vmem>>, vector<16x8xf32>
    %c0_41 = arith.constant 0 : index
    %c2_42 = arith.constant 2 : index
    %39 = vector.load %arg8[%c0_41, %c2_42] : memref<8x258xf32, #tpu.memory_space<vmem>>, vector<8x256xf32>
    %cst_43 = arith.constant dense<0.000000e+00> : vector<16x256xf32>
    %40 = tpu.matmul %38, %39, %cst_43 {dimension_numbers = #tpu.dot_dimension_numbers<[1], [0], [0], [1], [0, 0, 1, 1], [], []>} : vector<16x8xf32>, vector<8x256xf32>, vector<16x256xf32> -> vector<16x256xf32>
    %41 = arith.addf %37, %40 : vector<16x256xf32>
    %c0_44 = arith.constant 0 : index
    %c0_45 = arith.constant 0 : index
    %42 = vector.load %arg5[%c0_44, %c0_45] : memref<16x1xf32, #tpu.memory_space<vmem>>, vector<16x1xf32>
    %43 = vector.broadcast %42 : vector<16x1xf32> to vector<16x256xf32>
    %44 = arith.addf %41, %43 : vector<16x256xf32>
    %cst_46 = arith.constant 0.000000e+00 : f32
    %45 = vector.broadcast %cst_46 : f32 to vector<16x256xf32>
    %46 = arith.maximumf %44, %45 : vector<16x256xf32>
    %47 = vector.extract_strided_slice %46 {offsets = [0, 0], sizes = [8, 256], strides = [1, 1]} : vector<16x256xf32> to vector<8x256xf32>
    %48 = vector.extract_strided_slice %46 {offsets = [8, 0], sizes = [8, 256], strides = [1, 1]} : vector<16x256xf32> to vector<8x256xf32>
    %49 = arith.maximumf %47, %48 : vector<8x256xf32>
    %c0_47 = arith.constant 0 : index
    %c0_48 = arith.constant 0 : index
    %c0_49 = arith.constant 0 : index
    %50 = vector.load %arg6[%c0_47, %c0_48, %c0_49] : memref<1x8x256xf32, #tpu.memory_space<vmem>>, vector<1x8x256xf32>
    %51 = vector.shape_cast %50 : vector<1x8x256xf32> to vector<8x256xf32>
    %52 = vector.shape_cast %49 : vector<8x256xf32> to vector<1x8x256xf32>
    tpu.vector_store %arg6[%c0_47, %c0_48, %c0_49], %52 {strides = array<i32>} : memref<1x8x256xf32, #tpu.memory_space<vmem>>, vector<1x8x256xf32>,
    return
  }
  func.func @transform_0(%arg0: i32) -> (i32, i32, i32) {
    %c0_i32 = arith.constant 0 : i32
    %c0_i32_0 = arith.constant 0 : i32
    %c0_i32_1 = arith.constant 0 : i32
    return %arg0, %c0_i32, %c0_i32_0 : i32, i32, i32
  }
  func.func @transform_1(%arg0: i32) -> (i32, i32) {
    %c0_i32 = arith.constant 0 : i32
    %c0_i32_0 = arith.constant 0 : i32
    %c0_i32_1 = arith.constant 0 : i32
    return %c0_i32, %c0_i32_0 : i32, i32
  }
  func.func @transform_2(%arg0: i32) -> (i32, i32) {
    %c0_i32 = arith.constant 0 : i32
    %c0_i32_0 = arith.constant 0 : i32
    %c0_i32_1 = arith.constant 0 : i32
    return %c0_i32, %c0_i32_0 : i32, i32
  }
  func.func @transform_3(%arg0: i32) -> (i32, i32) {
    %c0_i32 = arith.constant 0 : i32
    %c0_i32_0 = arith.constant 0 : i32
    %c0_i32_1 = arith.constant 0 : i32
    return %c0_i32, %c0_i32_0 : i32, i32
  }
  func.func @transform_4(%arg0: i32) -> (i32, i32) {
    %c0_i32 = arith.constant 0 : i32
    %c0_i32_0 = arith.constant 0 : i32
    %c0_i32_1 = arith.constant 0 : i32
    return %c0_i32, %c0_i32_0 : i32, i32
  }
  func.func @transform_5(%arg0: i32) -> (i32, i32, i32) {
    %c0_i32 = arith.constant 0 : i32
    %c0_i32_0 = arith.constant 0 : i32
    %c0_i32_1 = arith.constant 0 : i32
    return %arg0, %c0_i32, %c0_i32_0 : i32, i32, i32
  }
}

module attributes {stable_mosaic.version = 11 : i64} {
  func.func @_fc_fused_kernel(%arg0: i32, %arg1: i32, %arg2: memref<2x2048xf32, #tpu.memory_space<vmem>>, %arg3: memref<2048x512xbf16, #tpu.memory_space<vmem>>, %arg4: memref<1x512xf32, #tpu.memory_space<vmem>>, %arg5: memref<1024x10xf32, #tpu.memory_space<vmem>>, %arg6: memref<1x2x10xf32, #tpu.memory_space<vmem>>) attributes {dimension_semantics = [#tpu.dimension_semantics<parallel>, #tpu.dimension_semantics<arbitrary>], iteration_bounds = array<i64: 2, 1>, scalar_prefetch = 0 : i64, scratch_operands = 0 : i64, tpu.core_type = #tpu.core_type<tc>, window_params = [{pipeline_mode = #tpu.pipeline_mode<synchronous>, transform_indices = @transform_0, window_bounds = array<i64: 2, 2048>}, {transform_indices = @transform_1, window_bounds = array<i64: 2048, 512>}, {transform_indices = @transform_2, window_bounds = array<i64: 1, 512>}, {pipeline_mode = #tpu.pipeline_mode<synchronous>, transform_indices = @transform_3, window_bounds = array<i64: 1024, 10>}, {transform_indices = @transform_4, window_bounds = array<i64: 1, 2, 10>}]} {
    %c0 = arith.constant 0 : index
    %c0_0 = arith.constant 0 : index
    %0 = vector.load %arg2[%c0, %c0_0] : memref<2x2048xf32, #tpu.memory_space<vmem>>, vector<2x2048xf32>
    %1 = arith.truncf %0 : vector<2x2048xf32> to vector<2x2048xbf16>
    %c0_1 = arith.constant 0 : index
    %c0_2 = arith.constant 0 : index
    %2 = vector.load %arg3[%c0_1, %c0_2] : memref<2048x512xbf16, #tpu.memory_space<vmem>>, vector<2048x512xbf16>
    %cst = arith.constant dense<0.000000e+00> : vector<2x512xf32>
    %3 = tpu.matmul %1, %2, %cst {dimension_numbers = #tpu.dot_dimension_numbers<[1], [0], [0], [1], [0, 0, 1, 1], [], []>} : vector<2x2048xbf16>, vector<2048x512xbf16>, vector<2x512xf32> -> vector<2x512xf32>
    %c0_3 = arith.constant 0 : index
    %c0_4 = arith.constant 0 : index
    %4 = vector.load %arg4[%c0_3, %c0_4] : memref<1x512xf32, #tpu.memory_space<vmem>>, vector<1x512xf32>
    %5 = vector.broadcast %4 : vector<1x512xf32> to vector<2x512xf32>
    %6 = arith.addf %3, %5 : vector<2x512xf32>
    %cst_5 = arith.constant 0.000000e+00 : f32
    %7 = vector.broadcast %cst_5 : f32 to vector<2x512xf32>
    %8 = arith.maximumf %6, %7 : vector<2x512xf32>
    %c1_i32 = arith.constant 1 : i32
    %9 = arith.muli %arg0, %c1_i32 : i32
    %10 = arith.addi %9, %arg1 : i32
    %c512_i32 = arith.constant 512 : i32
    %11 = arith.muli %10, %c512_i32 : i32
    %12 = tpu.assume_multiple %11, 512 : i32
    %13 = arith.index_cast %12 : i32 to index
    %c0_6 = arith.constant 0 : index
    %14 = vector.load %arg5[%13, %c0_6] : memref<1024x10xf32, #tpu.memory_space<vmem>>, vector<512x10xf32>
    %cst_7 = arith.constant dense<0.000000e+00> : vector<2x10xf32>
    %15 = tpu.matmul %8, %14, %cst_7 {dimension_numbers = #tpu.dot_dimension_numbers<[1], [0], [0], [1], [0, 0, 1, 1], [], []>} : vector<2x512xf32>, vector<512x10xf32>, vector<2x10xf32> -> vector<2x10xf32>
    %c0_i32 = arith.constant 0 : i32
    %16 = arith.cmpi eq, %arg1, %c0_i32 : i32
    %17 = arith.extui %16 : i1 to i32
    %c0_i32_8 = arith.constant 0 : i32
    %18 = arith.cmpi ne, %17, %c0_i32_8 : i32
    scf.if %18 {
      %c0_11 = arith.constant 0 : index
      %c0_12 = arith.constant 0 : index
      %c0_13 = arith.constant 0 : index
      %22 = vector.load %arg6[%c0_11, %c0_12, %c0_13] : memref<1x2x10xf32, #tpu.memory_space<vmem>>, vector<1x2x10xf32>
      %23 = vector.shape_cast %22 : vector<1x2x10xf32> to vector<2x10xf32>
      %24 = vector.shape_cast %15 : vector<2x10xf32> to vector<1x2x10xf32>
      tpu.vector_store %arg6[%c0_11, %c0_12, %c0_13], %24 {strides = array<i32>} : memref<1x2x10xf32, #tpu.memory_space<vmem>>, vector<1x2x10xf32>,
    } else {
    }
    %c0_i32_9 = arith.constant 0 : i32
    %19 = arith.cmpi sgt, %arg1, %c0_i32_9 : i32
    %20 = arith.extui %19 : i1 to i32
    %c0_i32_10 = arith.constant 0 : i32
    %21 = arith.cmpi ne, %20, %c0_i32_10 : i32
    scf.if %21 {
      %c0_11 = arith.constant 0 : index
      %c0_12 = arith.constant 0 : index
      %c0_13 = arith.constant 0 : index
      %22 = vector.load %arg6[%c0_11, %c0_12, %c0_13] : memref<1x2x10xf32, #tpu.memory_space<vmem>>, vector<1x2x10xf32>
      %23 = vector.shape_cast %22 : vector<1x2x10xf32> to vector<2x10xf32>
      %24 = arith.addf %23, %15 : vector<2x10xf32>
      %c0_14 = arith.constant 0 : index
      %c0_15 = arith.constant 0 : index
      %c0_16 = arith.constant 0 : index
      %25 = vector.load %arg6[%c0_14, %c0_15, %c0_16] : memref<1x2x10xf32, #tpu.memory_space<vmem>>, vector<1x2x10xf32>
      %26 = vector.shape_cast %25 : vector<1x2x10xf32> to vector<2x10xf32>
      %27 = vector.shape_cast %24 : vector<2x10xf32> to vector<1x2x10xf32>
      tpu.vector_store %arg6[%c0_14, %c0_15, %c0_16], %27 {strides = array<i32>} : memref<1x2x10xf32, #tpu.memory_space<vmem>>, vector<1x2x10xf32>,
    } else {
    }
    return
  }
  func.func @transform_0(%arg0: i32, %arg1: i32) -> (i32, i32) {
    %c0_i32 = arith.constant 0 : i32
    %c0_i32_0 = arith.constant 0 : i32
    %c0_i32_1 = arith.constant 0 : i32
    return %c0_i32, %c0_i32_0 : i32, i32
  }
  func.func @transform_1(%arg0: i32, %arg1: i32) -> (i32, i32) {
    %c1_i32 = arith.constant 1 : i32
    %0 = arith.muli %arg0, %c1_i32 : i32
    %1 = arith.addi %0, %arg1 : i32
    %c0_i32 = arith.constant 0 : i32
    %c0_i32_0 = arith.constant 0 : i32
    return %c0_i32, %1 : i32, i32
  }
  func.func @transform_2(%arg0: i32, %arg1: i32) -> (i32, i32) {
    %c1_i32 = arith.constant 1 : i32
    %0 = arith.muli %arg0, %c1_i32 : i32
    %1 = arith.addi %0, %arg1 : i32
    %c0_i32 = arith.constant 0 : i32
    %c0_i32_0 = arith.constant 0 : i32
    return %c0_i32, %1 : i32, i32
  }
  func.func @transform_3(%arg0: i32, %arg1: i32) -> (i32, i32) {
    %c0_i32 = arith.constant 0 : i32
    %c0_i32_0 = arith.constant 0 : i32
    %c0_i32_1 = arith.constant 0 : i32
    return %c0_i32, %c0_i32_0 : i32, i32
  }
  func.func @transform_4(%arg0: i32, %arg1: i32) -> (i32, i32, i32) {
    %c0_i32 = arith.constant 0 : i32
    %c0_i32_0 = arith.constant 0 : i32
    %c0_i32_1 = arith.constant 0 : i32
    return %arg0, %c0_i32, %c0_i32_0 : i32, i32, i32
  }
}

</mosaic_0001>

<llo_original>
// kernel: cnn_forward.2
$region0: #{cnn_forward.2}
  #allocation0 [shape = 'u32[]', space=smem, size = 0x4, offset = 0x4, fixed_abs, tag = 'smem constant byte address 0x4 - core index']
  #allocation1 [shape = 'u32[72,128]{1,0:T(1,128)}', space=vmem, size = 0x9000, scoped, tag = 'internal scratch']
  #allocation2 [shape = 'f32[4,258]{1,0:T(4,128)}', space=vmem, size = 0x1800, scoped, tag = 'scratch operand']
  #allocation3 [shape = 'f32[8,258]{1,0:T(8,128)}', space=vmem, size = 0x3000, scoped, tag = 'scratch operand']
  %s0 = inlined_call_operand.vmem [shape: f32[2,4,256], index: 0, kind: input, shape index: {}]
  %s1 = inlined_call_operand.hbm [shape: f32[16,12], index: 1, kind: input, shape index: {}]
  %s2 = inlined_call_operand.vmem [shape: f32[16,1], index: 2, kind: input, shape index: {}]
  %s3 = inlined_call_operand.hbm [shape: f32[16,24], index: 3, kind: input, shape index: {}]
  %s4 = inlined_call_operand.vmem [shape: f32[16,1], index: 4, kind: input, shape index: {}]
  %s5 = inlined_call_operand.vmem [shape: f32[2,8,256], index: 5, kind: output, shape index: {}]
  %s6 = sld [smem:[#allocation0]]
  $region61: #{cnn_forward.2} parent=0
    _
  %s8 = ssub.s32 1, %s6
  %s9 = scalar_select 0, %s8, %s6
  $region1: #{cnn_forward.2} parent=0
    #allocation4 [shape = 'u8[8192]{0}', space=vmem, size = 0x2000, scoped, tag = 'input window, operand 1, single buffered']
    #allocation5 [shape = 's32[2]{0}', space=sflag, size = 0x8, scoped, tag = 'scoped memory for cnn_forward.2']
    #allocation6 [shape = 'u8[8192]{0}', space=vmem, size = 0x2000, scoped, tag = 'input window, operand 3, single buffered']
    #allocation7 [shape = 's32[1]{0}', space=sflag, size = 0x4, scoped, tag = 'scoped memory for cnn_forward.2']
    %10 = vsyncpa [#allocation5], 0
    %11 = vsyncpa [#allocation7], 0
    loop: start=0, step=1, limit=4
    $region2: #{cnn_forward.2} parent=1 // loop_pre_header
      _
    $region3: #{cnn_forward.2} parent=1 // loop_header
      %s13 = sphi 0, %s17
      %p14 = scmp.ge.s32.totalorder %s13, 4
      %s23 = sphi 0, %s25
      %s26 = sphi 0, %s23
      %s27 = sphi 0, %s26
      %s43 = sphi 0, %s27
      %s47 = sphi 0, %s47
      %s49 = sphi 0, %s47
      %s50 = sphi 0, %s49
      %s64 = sphi 0, %s50
      %s68 = sphi 0, %s68
      %s70 = sphi 0, %s68
      %s71 = sphi 0, %s70
      %s85 = sphi 0, %s71
      %s89 = sphi 0, %s89
      %s91 = sphi 0, %s89
      %s92 = sphi 0, %s91
      %s106 = sphi 0, %s92
      %s110 = sphi 0, %s110
      %s112 = sphi 0, %s110
      %s113 = sphi 0, %s112
      %s127 = sphi 0, %s113
      %s133 = sphi 0, %s135
      %s136 = sphi 0, %s133
      %s137 = sphi 0, %s136
      %s153 = sphi 0, %s137
    $region4: #{cnn_forward.2} parent=1 // loop_header_branch
      %16 = sbr.rel (%p14) target = $region8
    $region5: #{cnn_forward.2} parent=1 // loop_body
      %s18 = ssub.s32 %s13, 1
      %s19 = ssub.s32 %s13, 2
      %s20 = sadd.s32 %s13, 1
      %s21 = ssub.s32 %s13, %s20
      %p22 = scmp.eq.s32.totalorder %s21, 0
      %s24 = sadd.s32 %s23, 1
      %s25 = scalar_select %p22, %s23, %s24
      %p28 = pneg %p22
      %p29 = scmp.eq.s32.totalorder %s13, 1
      %p30 = por %p28, %p29
      %p31 = scmp.ne.s32.totalorder %s23, %s26
      %p32 = scmp.eq.s32.totalorder %s13, 0
      %p33 = por %p31, %p32
      %p34 = scmp.ne.s32.totalorder %s23, %s26
      %p35 = scmp.eq.s32.totalorder %s18, 1
      %p36 = por %p34, %p35
      %p37 = scmp.ne.s32.totalorder %s26, %s27
      %p38 = scmp.eq.s32.totalorder %s18, 0
      %p39 = por %p37, %p38
      %p40 = scmp.ne.s32.totalorder %s26, %s27
      %p41 = scmp.eq.s32.totalorder %s19, 1
      %p42 = por %p40, %p41
      %p44 = scmp.ne.s32.totalorder %s27, %s43
      %p45 = scmp.eq.s32.totalorder %s19, 0
      %p46 = por %p44, %p45
      %s48 = sadd.s32 %s47, 1
      %p51 = scmp.eq.s32.totalorder %s13, 1
      %p52 = scmp.ne.s32.totalorder %s47, %s49
      %p53 = scmp.eq.s32.totalorder %s13, 0
      %p54 = por %p52, %p53
      %p55 = scmp.ne.s32.totalorder %s47, %s49
      %p56 = scmp.eq.s32.totalorder %s18, 1
      %p57 = por %p55, %p56
      %p58 = scmp.ne.s32.totalorder %s49, %s50
      %p59 = scmp.eq.s32.totalorder %s18, 0
      %p60 = por %p58, %p59
      %p61 = scmp.ne.s32.totalorder %s49, %s50
      %p62 = scmp.eq.s32.totalorder %s19, 1
      %p63 = por %p61, %p62
      %p65 = scmp.ne.s32.totalorder %s50, %s64
      %p66 = scmp.eq.s32.totalorder %s19, 0
      %p67 = por %p65, %p66
      %s69 = sadd.s32 %s68, 1
      %p72 = scmp.eq.s32.totalorder %s13, 1
      %p73 = scmp.ne.s32.totalorder %s68, %s70
      %p74 = scmp.eq.s32.totalorder %s13, 0
      %p75 = por %p73, %p74
      %p76 = scmp.ne.s32.totalorder %s68, %s70
      %p77 = scmp.eq.s32.totalorder %s18, 1
      %p78 = por %p76, %p77
      %p79 = scmp.ne.s32.totalorder %s70, %s71
      %p80 = scmp.eq.s32.totalorder %s18, 0
      %p81 = por %p79, %p80
      %p82 = scmp.ne.s32.totalorder %s70, %s71
      %p83 = scmp.eq.s32.totalorder %s19, 1
      %p84 = por %p82, %p83
      %p86 = scmp.ne.s32.totalorder %s71, %s85
      %p87 = scmp.eq.s32.totalorder %s19, 0
      %p88 = por %p86, %p87
      %s90 = sadd.s32 %s89, 1
      %p93 = scmp.eq.s32.totalorder %s13, 1
      %p94 = scmp.ne.s32.totalorder %s89, %s91
      %p95 = scmp.eq.s32.totalorder %s13, 0
      %p96 = por %p94, %p95
      %p97 = scmp.ne.s32.totalorder %s89, %s91
      %p98 = scmp.eq.s32.totalorder %s18, 1
      %p99 = por %p97, %p98
      %p100 = scmp.ne.s32.totalorder %s91, %s92
      %p101 = scmp.eq.s32.totalorder %s18, 0
      %p102 = por %p100, %p101
      %p103 = scmp.ne.s32.totalorder %s91, %s92
      %p104 = scmp.eq.s32.totalorder %s19, 1
      %p105 = por %p103, %p104
      %p107 = scmp.ne.s32.totalorder %s92, %s106
      %p108 = scmp.eq.s32.totalorder %s19, 0
      %p109 = por %p107, %p108
      %s111 = sadd.s32 %s110, 1
      %p114 = scmp.eq.s32.totalorder %s13, 1
      %p115 = scmp.ne.s32.totalorder %s110, %s112
      %p116 = scmp.eq.s32.totalorder %s13, 0
      %p117 = por %p115, %p116
      %p118 = scmp.ne.s32.totalorder %s110, %s112
      %p119 = scmp.eq.s32.totalorder %s18, 1
      %p120 = por %p118, %p119
      %p121 = scmp.ne.s32.totalorder %s112, %s113
      %p122 = scmp.eq.s32.totalorder %s18, 0
      %p123 = por %p121, %p122
      %p124 = scmp.ne.s32.totalorder %s112, %s113
      %p125 = scmp.eq.s32.totalorder %s19, 1
      %p126 = por %p124, %p125
      %p128 = scmp.ne.s32.totalorder %s113, %s127
      %p129 = scmp.eq.s32.totalorder %s19, 0
      %p130 = por %p128, %p129
      %s131 = ssub.s32 %s13, %s20
      %p132 = scmp.eq.s32.totalorder %s131, 0
      %s134 = sadd.s32 %s133, 1
      %s135 = scalar_select %p132, %s133, %s134
      %p138 = pneg %p132
      %p139 = scmp.eq.s32.totalorder %s13, 1
      %p140 = por %p138, %p139
      %p141 = scmp.ne.s32.totalorder %s133, %s136
      %p142 = scmp.eq.s32.totalorder %s13, 0
      %p143 = por %p141, %p142
      %p144 = scmp.ne.s32.totalorder %s133, %s136
      %p145 = scmp.eq.s32.totalorder %s18, 1
      %p146 = por %p144, %p145
      %p147 = scmp.ne.s32.totalorder %s136, %s137
      %p148 = scmp.eq.s32.totalorder %s18, 0
      %p149 = por %p147, %p148
      %p150 = scmp.ne.s32.totalorder %s136, %s137
      %p151 = scmp.eq.s32.totalorder %s19, 1
      %p152 = por %p150, %p151
      %p154 = scmp.ne.s32.totalorder %s137, %s153
      %p155 = scmp.eq.s32.totalorder %s19, 0
      %p156 = por %p154, %p155
      %p157 = scmp.le.s32.totalorder 1, %s13
      %p158 = scmp.lt.s32.totalorder %s13, 3
      %p159 = pnand %p157, %p158
      %p160 = pneg %p159
      // Predicated region
      $region9: #{cnn_forward.2} parent=5 // pred_check
        _
      $region10: #{cnn_forward.2} parent=5 // pred_check_branch
        %162 = sbr.rel (%p159) target = $region12
      $region11: #{cnn_forward.2} parent=5 // pred_region
        %s163 = ssub.s32 %s13, 1
        // Predicated region
        $region13: #{cnn_forward.2} parent=11 // pred_check
          %p164 = pneg %p60
        $region14: #{cnn_forward.2} parent=11 // pred_check_branch
          %166 = sbr.rel (%p164) target = $region16
        $region15: #{cnn_forward.2} parent=11 // pred_region
          %168 = vsyncadd [#allocation5], 0
          %s169 = sshll.u32 %s1, 4
          %s170 = int_to_ptr.hbm [resolvable:$true] %s169
          %s171 = sshll.u32 [#allocation4], 4
          %s172 = int_to_ptr.vmem [resolvable:$true] %s171
          %177 = dma.hbm_to_vmem [thread:$0]  %s170, 256, %s172, [#allocation5], 128, 128, 8
        $region16: #{cnn_forward.2} parent=11 // pred_fallthru
          _
        // Predicated region
        $region17: #{cnn_forward.2} parent=11 // pred_check
          %p178 = pneg %p81
        $region18: #{cnn_forward.2} parent=11 // pred_check_branch
          %180 = sbr.rel (%p178) target = $region20
        $region19: #{cnn_forward.2} parent=11 // pred_region
          _
        $region20: #{cnn_forward.2} parent=11 // pred_fallthru
          _
        // Predicated region
        $region21: #{cnn_forward.2} parent=11 // pred_check
          %p181 = pneg %p102
        $region22: #{cnn_forward.2} parent=11 // pred_check_branch
          %183 = sbr.rel (%p181) target = $region24
        $region23: #{cnn_forward.2} parent=11 // pred_region
          %185 = vsyncadd [#allocation7], 0
          %s186 = sshll.u32 %s3, 4
          %s187 = int_to_ptr.hbm [resolvable:$true] %s186
          %s188 = sshll.u32 [#allocation6], 4
          %s189 = int_to_ptr.vmem [resolvable:$true] %s188
          %194 = dma.hbm_to_vmem [thread:$0]  %s187, 256, %s189, [#allocation7], 128, 128, 8
        $region24: #{cnn_forward.2} parent=11 // pred_fallthru
          _
        // Predicated region
        $region25: #{cnn_forward.2} parent=11 // pred_check
          %p195 = pneg %p123
        $region26: #{cnn_forward.2} parent=11 // pred_check_branch
          %197 = sbr.rel (%p195) target = $region28
        $region27: #{cnn_forward.2} parent=11 // pred_region
          _
        $region28: #{cnn_forward.2} parent=11 // pred_fallthru
          _
      $region12: #{cnn_forward.2} parent=5 // pred_fallthru
        _
      %p198 = scmp.lt.s32.totalorder %s13, 2
      // Predicated region
      $region29: #{cnn_forward.2} parent=5 // pred_check
        %p199 = pneg %p198
      $region30: #{cnn_forward.2} parent=5 // pred_check_branch
        %201 = sbr.rel (%p199) target = $region32
      $region31: #{cnn_forward.2} parent=5 // pred_region
        // Predicated region
        $region33: #{cnn_forward.2} parent=31 // pred_check
          %p202 = pneg %p33
        $region34: #{cnn_forward.2} parent=31 // pred_check_branch
          %204 = sbr.rel (%p202) target = $region36
        $region35: #{cnn_forward.2} parent=31 // pred_region
          %p205 = scmp.lt.s32.totalorder %s13, 1
          %s206 = scalar_select %p205, %s13, 1
          %s207 = smul.addr %s206, 2
          %s208 = smul.addr %s207, 4
          %s209 = scalar_lea.vmem %s0, %s208
        $region36: #{cnn_forward.2} parent=31 // pred_fallthru
          _
      $region32: #{cnn_forward.2} parent=5 // pred_fallthru
        _
      %p210 = scmp.le.s32.totalorder 1, %s13
      %p211 = scmp.lt.s32.totalorder %s13, 3
      %p212 = pnand %p210, %p211
      %p213 = pneg %p212
      // Predicated region
      $region37: #{cnn_forward.2} parent=5 // pred_check
        _
      $region38: #{cnn_forward.2} parent=5 // pred_check_branch
        %215 = sbr.rel (%p212) target = $region40
      $region39: #{cnn_forward.2} parent=5 // pred_region
        %s216 = ssub.s32 %s13, 1
        // Predicated region
        $region41: #{cnn_forward.2} parent=39 // pred_check
          %p217 = pneg %p60
        $region42: #{cnn_forward.2} parent=39 // pred_check_branch
          %219 = sbr.rel (%p217) target = $region44
        $region43: #{cnn_forward.2} parent=39 // pred_region
          %221 = dma.done [#allocation5], 256
        $region44: #{cnn_forward.2} parent=39 // pred_fallthru
          _
        // Predicated region
        $region45: #{cnn_forward.2} parent=39 // pred_check
          %p222 = pneg %p102
        $region46: #{cnn_forward.2} parent=39 // pred_check_branch
          %224 = sbr.rel (%p222) target = $region48
        $region47: #{cnn_forward.2} parent=39 // pred_region
          %226 = dma.done [#allocation7], 256
        $region48: #{cnn_forward.2} parent=39 // pred_fallthru
          _
        %p227 = scmp.lt.s32.totalorder %s18, 1
        %s228 = scalar_select %p227, %s18, 1
        %s229 = smul.addr %s228, 2
        %s230 = smul.addr %s229, 4
        %s231 = scalar_lea.vmem %s0, %s230
        %p232 = pneg %p39
        %p233 = pneg %p36
        %p234 = pneg %p60
        %p235 = pneg %p57
        %p236 = pneg %p81
        %p237 = pneg %p78
        %p238 = pneg %p102
        %p239 = pneg %p99
        %p240 = pneg %p123
        %p241 = pneg %p120
        %p242 = pneg %p149
        %p243 = pneg %p146
        %p244 = scmp.lt.s32.totalorder %s18, 1
        %s245 = scalar_select %p244, %s18, 1
        %s246 = smul.addr %s245, 2
        %s247 = smul.addr %s246, 8
        %s248 = scalar_lea.vmem %s5, %s247
        %p249 = scmp.lt.s32.totalorder %s18, 1
        %s250 = scalar_select %p249, %s18, 1
        %s251 = smul.addr %s250, 2
        %s252 = smul.addr %s251, 4
        %s253 = scalar_lea.vmem %s0, %s252
        %p254 = scmp.lt.s32.totalorder %s18, 1
        %s255 = scalar_select %p254, %s18, 1
        %s256 = smul.addr %s255, 2
        %s257 = smul.addr %s256, 8
        %s258 = scalar_lea.vmem %s5, %s257
        %vm259 = vcmask 3072
        %260 = vst.msk [vmem:[#allocation2] sm:$0xf] %vm259, 0.0
        %vm261 = vcmask 11272
        %262 = vst.msk [vmem:[#allocation2 + $0x8] sm:$0xf] %vm261, 0.0
        %v263 = vld [vmem:[%s253] sm:$0xff]
        %265 = vrot.lane.b32.xlu0 %v263, 1
        %v266 = vpop.permute.xlu0 %265
        %v267 = vrot.slane %v266, 4
        %vm268 = vcmask 7168
        %v269 = vsel %vm268, %v267, %v266
        %vm272 = vcmask 1043464
        %vm273 = vcmask 1047556
        %vm274 = vmor %vm273, %vm272
        %275 = vst.msk [vmem:[#allocation2] sm:$0xff] %vm274, %v269
        %276 = vst.msk [vmem:[#allocation2 + $0x8] sm:$0xf] %vm259, %v267
        %v277 = vld [vmem:[#allocation4] sm:$0xff]
        %v278 = vld [vmem:[#allocation4 + $0x8] sm:$0xff]
        %v279 = vld [vmem:[#allocation2] sm:$0xff]
        %v280 = vld [vmem:[#allocation2 + $0x8] sm:$0xf]
        %283 = vrot.lane.b32.xlu0 %v277, 124
        %v284 = vpop.permute.xlu0 %283
        %285 = vrot.lane.b32.xlu0 %v278, 124
        %v286 = vpop.permute.xlu0 %285
        %289 = vst [vmem:[#allocation1] ss:$2 sm:$0xff] %v279
        %s290 = scalar_lea.vmem [#allocation1], 16
        %291 = vst [vmem:[%s290] ss:$2 sm:$0xff] %v280
        %v292 = vld.sshfl [vmem:[#allocation1] sm:$0xff pattern:$0x75316420]
        %v293 = vld.sshfl [vmem:[#allocation1 + $0x8] sm:$0xff pattern:$0x75316420]
        %v294 = vld.sshfl [vmem:[#allocation1 + $0x10] sm:$0xff pattern:$0x75316420]
        %295 = vrot.lane.b32.xlu0 %v292, 127
        %v296 = vpop.permute.xlu0 %295
        %297 = vrot.lane.b32.xlu0 %v293, 127
        %v298 = vpop.permute.xlu0 %297
        %299 = vrot.lane.b32.xlu0 %v294, 127
        %v300 = vpop.permute.xlu0 %299
        %vm301 = vcmask 1039360
        %v302 = vsel %vm301, %v296, %v298
        %v303 = vsel %vm301, %v298, %v300
        %vm304 = vcmask 31744
        %v305 = vsel %vm304, %v284, 0
        %v307 = vsel %vm304, %v286, 0
        %vm309 = vcmask 1043456
        %v310 = vsel %vm309, %v302, 0
        %v312 = vsel %vm309, %v303, 0
        %314 = vmatpush.msra.mxu0 0.0
        %315 = vmatpush.msra.mxu0 0.0
        %316 = vmatpush.msra.mxu0 0.0
        %317 = vmatpush.msra.mxu0 0.0
        %318 = vmatpush.msra.mxu0 0.0
        %319 = vmatpush.msra.mxu0 0.0
        %320 = vmatpush.msra.mxu0 0.0
        %321 = vmatpush.msra.mxu0 0.0
        %322 = vmatpush.msra.mxu0 0.0
        %323 = vmatpush.msra.mxu0 0.0
        %324 = vmatpush.msra.mxu0 0.0
        %325 = vmatpush.msra.mxu0 0.0
        %326 = vmatpush.msra.mxu0 0.0
        %327 = vmatpush.msra.mxu0 0.0
        %328 = vmatpush.msra.mxu0 0.0
        %329 = vmatpush.msra.mxu0 %v310
        %330 = vmatmul.f32.gmra.mxu0 %v305
        %v331 = vpop.f32.mrf.mxu0
        %v332 = vadd.f32 0.0, %v331
        %333 = vmatmul.f32.gmra.mxu0 %v307
        %v334 = vpop.f32.mrf.mxu0
        %v335 = vadd.f32 0.0, %v334
        %336 = vdwg.mxu0
        %337 = vmatpush.msra.mxu0 0.0
        %338 = vmatpush.msra.mxu0 0.0
        %339 = vmatpush.msra.mxu0 0.0
        %340 = vmatpush.msra.mxu0 0.0
        %341 = vmatpush.msra.mxu0 0.0
        %342 = vmatpush.msra.mxu0 0.0
        %343 = vmatpush.msra.mxu0 0.0
        %344 = vmatpush.msra.mxu0 0.0
        %345 = vmatpush.msra.mxu0 0.0
        %346 = vmatpush.msra.mxu0 0.0
        %347 = vmatpush.msra.mxu0 0.0
        %348 = vmatpush.msra.mxu0 0.0
        %349 = vmatpush.msra.mxu0 0.0
        %350 = vmatpush.msra.mxu0 0.0
        %351 = vmatpush.msra.mxu0 0.0
        %352 = vmatpush.msra.mxu0 %v312
        %353 = vmatmul.f32.gmra.mxu0 %v305
        %v354 = vpop.f32.mrf.mxu0
        %v355 = vadd.f32 0.0, %v354
        %356 = vmatmul.f32.gmra.mxu0 %v307
        %v357 = vpop.f32.mrf.mxu0
        %v358 = vadd.f32 0.0, %v357
        %359 = vdwg.mxu0
        %360 = vst [vmem:[#allocation1] ss:$2 sm:$0xff] %v279
        %v361 = vld.sshfl [vmem:[#allocation1] sm:$0xff pattern:$0x75316420]
        %v362 = vld.sshfl [vmem:[#allocation1 + $0x8] sm:$0xff pattern:$0x75316420]
        %v363 = vsel %vm304, %v277, 0
        %v365 = vsel %vm304, %v278, 0
        %v367 = vsel %vm309, %v361, 0
        %v369 = vsel %vm309, %v362, 0
        %371 = vmatpush.msra.mxu0 0.0
        %372 = vmatpush.msra.mxu0 0.0
        %373 = vmatpush.msra.mxu0 0.0
        %374 = vmatpush.msra.mxu0 0.0
        %375 = vmatpush.msra.mxu0 0.0
        %376 = vmatpush.msra.mxu0 0.0
        %377 = vmatpush.msra.mxu0 0.0
        %378 = vmatpush.msra.mxu0 0.0
        %379 = vmatpush.msra.mxu0 0.0
        %380 = vmatpush.msra.mxu0 0.0
        %381 = vmatpush.msra.mxu0 0.0
        %382 = vmatpush.msra.mxu0 0.0
        %383 = vmatpush.msra.mxu0 0.0
        %384 = vmatpush.msra.mxu0 0.0
        %385 = vmatpush.msra.mxu0 0.0
        %386 = vmatpush.msra.mxu0 %v367
        %387 = vmatmul.f32.gmra.mxu0 %v363
        %v388 = vpop.f32.mrf.mxu0
        %v389 = vadd.f32 %v332, %v388
        %390 = vmatmul.f32.gmra.mxu0 %v365
        %v391 = vpop.f32.mrf.mxu0
        %v392 = vadd.f32 %v335, %v391
        %393 = vdwg.mxu0
        %394 = vmatpush.msra.mxu0 0.0
        %395 = vmatpush.msra.mxu0 0.0
        %396 = vmatpush.msra.mxu0 0.0
        %397 = vmatpush.msra.mxu0 0.0
        %398 = vmatpush.msra.mxu0 0.0
        %399 = vmatpush.msra.mxu0 0.0
        %400 = vmatpush.msra.mxu0 0.0
        %401 = vmatpush.msra.mxu0 0.0
        %402 = vmatpush.msra.mxu0 0.0
        %403 = vmatpush.msra.mxu0 0.0
        %404 = vmatpush.msra.mxu0 0.0
        %405 = vmatpush.msra.mxu0 0.0
        %406 = vmatpush.msra.mxu0 0.0
        %407 = vmatpush.msra.mxu0 0.0
        %408 = vmatpush.msra.mxu0 0.0
        %409 = vmatpush.msra.mxu0 %v369
        %410 = vmatmul.f32.gmra.mxu0 %v363
        %v411 = vpop.f32.mrf.mxu0
        %v412 = vadd.f32 %v355, %v411
        %413 = vmatmul.f32.gmra.mxu0 %v365
        %v414 = vpop.f32.mrf.mxu0
        %v415 = vadd.f32 %v358, %v414
        %416 = vdwg.mxu0
        %v417 = vld [vmem:[#allocation4] sm:$0xff]
        %v418 = vld [vmem:[#allocation4 + $0x8] sm:$0xff]
        %v419 = vld [vmem:[#allocation2] sm:$0xff]
        %v420 = vld [vmem:[#allocation2 + $0x8] sm:$0xf]
        %423 = vrot.lane.b32.xlu0 %v417, 120
        %v424 = vpop.permute.xlu0 %423
        %425 = vrot.lane.b32.xlu0 %v418, 120
        %v426 = vpop.permute.xlu0 %425
        %429 = vst [vmem:[#allocation1] ss:$2 sm:$0xff] %v419
        %s430 = scalar_lea.vmem [#allocation1], 16
        %431 = vst [vmem:[%s430] ss:$2 sm:$0xff] %v420
        %v432 = vld.sshfl [vmem:[#allocation1] sm:$0xff pattern:$0x75316420]
        %v433 = vld.sshfl [vmem:[#allocation1 + $0x8] sm:$0xff pattern:$0x75316420]
        %v434 = vld.sshfl [vmem:[#allocation1 + $0x10] sm:$0xff pattern:$0x75316420]
        %435 = vrot.lane.b32.xlu0 %v432, 126
        %v436 = vpop.permute.xlu0 %435
        %437 = vrot.lane.b32.xlu0 %v433, 126
        %v438 = vpop.permute.xlu0 %437
        %439 = vrot.lane.b32.xlu0 %v434, 126
        %v440 = vpop.permute.xlu0 %439
        %vm441 = vcmask 1031168
        %v442 = vsel %vm441, %v436, %v438
        %v443 = vsel %vm441, %v438, %v440
        %v444 = vsel %vm304, %v424, 0
        %v446 = vsel %vm304, %v426, 0
        %v448 = vsel %vm309, %v442, 0
        %v450 = vsel %vm309, %v443, 0
        %452 = vmatpush.msra.mxu0 0.0
        %453 = vmatpush.msra.mxu0 0.0
        %454 = vmatpush.msra.mxu0 0.0
        %455 = vmatpush.msra.mxu0 0.0
        %456 = vmatpush.msra.mxu0 0.0
        %457 = vmatpush.msra.mxu0 0.0
        %458 = vmatpush.msra.mxu0 0.0
        %459 = vmatpush.msra.mxu0 0.0
        %460 = vmatpush.msra.mxu0 0.0
        %461 = vmatpush.msra.mxu0 0.0
        %462 = vmatpush.msra.mxu0 0.0
        %463 = vmatpush.msra.mxu0 0.0
        %464 = vmatpush.msra.mxu0 0.0
        %465 = vmatpush.msra.mxu0 0.0
        %466 = vmatpush.msra.mxu0 0.0
        %467 = vmatpush.msra.mxu0 %v448
        %468 = vmatmul.f32.gmra.mxu0 %v444
        %v469 = vpop.f32.mrf.mxu0
        %v470 = vadd.f32 0.0, %v469
        %471 = vmatmul.f32.gmra.mxu0 %v446
        %v472 = vpop.f32.mrf.mxu0
        %v473 = vadd.f32 0.0, %v472
        %474 = vdwg.mxu0
        %475 = vmatpush.msra.mxu0 0.0
        %476 = vmatpush.msra.mxu0 0.0
        %477 = vmatpush.msra.mxu0 0.0
        %478 = vmatpush.msra.mxu0 0.0
        %479 = vmatpush.msra.mxu0 0.0
        %480 = vmatpush.msra.mxu0 0.0
        %481 = vmatpush.msra.mxu0 0.0
        %482 = vmatpush.msra.mxu0 0.0
        %483 = vmatpush.msra.mxu0 0.0
        %484 = vmatpush.msra.mxu0 0.0
        %485 = vmatpush.msra.mxu0 0.0
        %486 = vmatpush.msra.mxu0 0.0
        %487 = vmatpush.msra.mxu0 0.0
        %488 = vmatpush.msra.mxu0 0.0
        %489 = vmatpush.msra.mxu0 0.0
        %490 = vmatpush.msra.mxu0 %v450
        %491 = vmatmul.f32.gmra.mxu0 %v444
        %v492 = vpop.f32.mrf.mxu0
        %v493 = vadd.f32 0.0, %v492
        %494 = vmatmul.f32.gmra.mxu0 %v446
        %v495 = vpop.f32.mrf.mxu0
        %v496 = vadd.f32 0.0, %v495
        %497 = vdwg.mxu0
        %v498 = vadd.f32 %v389, %v470
        %v499 = vadd.f32 %v412, %v493
        %v500 = vadd.f32 %v392, %v473
        %v501 = vadd.f32 %v415, %v496
        %v502 = vld [vmem:[%s2] sm:$0xff]
        %v503 = vld [vmem:[%s2 + $0x8] sm:$0xff]
        %505 = vset.pattern.permute.xlu0 0
        %506 = vperm.xlu0 %505, %v502
        %v507 = vpop.permute.xlu0 %506
        %510 = vset.pattern.permute.xlu0 0
        %511 = vperm.xlu0 %510, %v503
        %v512 = vpop.permute.xlu0 %511
        %v514 = vadd.f32 %v498, %v507
        %v515 = vadd.f32 %v499, %v507
        %v516 = vadd.f32 %v500, %v512
        %v517 = vadd.f32 %v501, %v512
        %v518 = vmax.f32 %v514, 0.0
        %v519 = vmax.f32 %v515, 0.0
        %v520 = vmax.f32 %v516, 0.0
        %v521 = vmax.f32 %v517, 0.0
        %522 = vst.msk [vmem:[#allocation3] sm:$0xff] %vm268, 0.0
        %vm523 = vcmask 15368
        %524 = vst.msk [vmem:[#allocation3 + $0x10] sm:$0xff] %vm523, 0.0
        %v525 = vmax.f32 %v518, %v520
        %v526 = vmax.f32 %v519, %v521
        %529 = vrot.lane.b32.xlu0 %v525, 1
        %v530 = vpop.permute.xlu0 %529
        %531 = vrot.lane.b32.xlu0 %v526, 1
        %v532 = vpop.permute.xlu0 %531
        %v533 = vsel %vm268, %v530, %v532
        %vm537 = vcmask 1047560
        %538 = vst.msk [vmem:[#allocation3] sm:$0xff] %vm537, %v530
        %539 = vst [vmem:[#allocation3 + $0x8] sm:$0xff] %v533
        %540 = vst.msk [vmem:[#allocation3 + $0x10] sm:$0xff] %vm268, %v532
        %v541 = vld [vmem:[#allocation6] sm:$0xff]
        %v542 = vld [vmem:[#allocation6 + $0x8] sm:$0xff]
        %v543 = vld [vmem:[#allocation3] sm:$0xff]
        %v544 = vld [vmem:[#allocation3 + $0x8] sm:$0xff]
        %v545 = vld [vmem:[#allocation3 + $0x10] sm:$0xff]
        %548 = vrot.lane.b32.xlu0 %v541, 120
        %v549 = vpop.permute.xlu0 %548
        %550 = vrot.lane.b32.xlu0 %v542, 120
        %v551 = vpop.permute.xlu0 %550
        %555 = vrot.lane.b32.xlu0 %v543, 127
        %v556 = vpop.permute.xlu0 %555
        %557 = vrot.lane.b32.xlu0 %v544, 127
        %v558 = vpop.permute.xlu0 %557
        %559 = vrot.lane.b32.xlu0 %v545, 127
        %v560 = vpop.permute.xlu0 %559
        %v561 = vsel %vm301, %v556, %v558
        %v562 = vsel %vm301, %v558, %v560
        %vm565 = vcmask 64512
        %v566 = vsel %vm565, %v549, 0
        %v568 = vsel %vm565, %v551, 0
        %570 = vmatpush.msra.mxu0 0.0
        %571 = vmatpush.msra.mxu0 0.0
        %572 = vmatpush.msra.mxu0 0.0
        %573 = vmatpush.msra.mxu0 0.0
        %574 = vmatpush.msra.mxu0 0.0
        %575 = vmatpush.msra.mxu0 0.0
        %576 = vmatpush.msra.mxu0 0.0
        %577 = vmatpush.msra.mxu0 0.0
        %578 = vmatpush.msra.mxu0 0.0
        %579 = vmatpush.msra.mxu0 0.0
        %580 = vmatpush.msra.mxu0 0.0
        %581 = vmatpush.msra.mxu0 0.0
        %582 = vmatpush.msra.mxu0 0.0
        %583 = vmatpush.msra.mxu0 0.0
        %584 = vmatpush.msra.mxu0 0.0
        %585 = vmatpush.msra.mxu0 %v561
        %586 = vmatmul.f32.gmra.mxu0 %v566
        %v587 = vpop.f32.mrf.mxu0
        %v588 = vadd.f32 0.0, %v587
        %589 = vmatmul.f32.gmra.mxu0 %v568
        %v590 = vpop.f32.mrf.mxu0
        %v591 = vadd.f32 0.0, %v590
        %592 = vdwg.mxu0
        %593 = vmatpush.msra.mxu0 0.0
        %594 = vmatpush.msra.mxu0 0.0
        %595 = vmatpush.msra.mxu0 0.0
        %596 = vmatpush.msra.mxu0 0.0
        %597 = vmatpush.msra.mxu0 0.0
        %598 = vmatpush.msra.mxu0 0.0
        %599 = vmatpush.msra.mxu0 0.0
        %600 = vmatpush.msra.mxu0 0.0
        %601 = vmatpush.msra.mxu0 0.0
        %602 = vmatpush.msra.mxu0 0.0
        %603 = vmatpush.msra.mxu0 0.0
        %604 = vmatpush.msra.mxu0 0.0
        %605 = vmatpush.msra.mxu0 0.0
        %606 = vmatpush.msra.mxu0 0.0
        %607 = vmatpush.msra.mxu0 0.0
        %608 = vmatpush.msra.mxu0 %v562
        %609 = vmatmul.f32.gmra.mxu0 %v566
        %v610 = vpop.f32.mrf.mxu0
        %v611 = vadd.f32 0.0, %v610
        %612 = vmatmul.f32.gmra.mxu0 %v568
        %v613 = vpop.f32.mrf.mxu0
        %v614 = vadd.f32 0.0, %v613
        %615 = vdwg.mxu0
        %v616 = vsel %vm565, %v541, 0
        %v618 = vsel %vm565, %v542, 0
        %620 = vmatpush.msra.mxu0 0.0
        %621 = vmatpush.msra.mxu0 0.0
        %622 = vmatpush.msra.mxu0 0.0
        %623 = vmatpush.msra.mxu0 0.0
        %624 = vmatpush.msra.mxu0 0.0
        %625 = vmatpush.msra.mxu0 0.0
        %626 = vmatpush.msra.mxu0 0.0
        %627 = vmatpush.msra.mxu0 0.0
        %628 = vmatpush.msra.mxu0 0.0
        %629 = vmatpush.msra.mxu0 0.0
        %630 = vmatpush.msra.mxu0 0.0
        %631 = vmatpush.msra.mxu0 0.0
        %632 = vmatpush.msra.mxu0 0.0
        %633 = vmatpush.msra.mxu0 0.0
        %634 = vmatpush.msra.mxu0 0.0
        %635 = vmatpush.msra.mxu0 %v543
        %636 = vmatmul.f32.gmra.mxu0 %v616
        %v637 = vpop.f32.mrf.mxu0
        %v638 = vadd.f32 %v588, %v637
        %639 = vmatmul.f32.gmra.mxu0 %v618
        %v640 = vpop.f32.mrf.mxu0
        %v641 = vadd.f32 %v591, %v640
        %642 = vdwg.mxu0
        %643 = vmatpush.msra.mxu0 0.0
        %644 = vmatpush.msra.mxu0 0.0
        %645 = vmatpush.msra.mxu0 0.0
        %646 = vmatpush.msra.mxu0 0.0
        %647 = vmatpush.msra.mxu0 0.0
        %648 = vmatpush.msra.mxu0 0.0
        %649 = vmatpush.msra.mxu0 0.0
        %650 = vmatpush.msra.mxu0 0.0
        %651 = vmatpush.msra.mxu0 0.0
        %652 = vmatpush.msra.mxu0 0.0
        %653 = vmatpush.msra.mxu0 0.0
        %654 = vmatpush.msra.mxu0 0.0
        %655 = vmatpush.msra.mxu0 0.0
        %656 = vmatpush.msra.mxu0 0.0
        %657 = vmatpush.msra.mxu0 0.0
        %658 = vmatpush.msra.mxu0 %v544
        %659 = vmatmul.f32.gmra.mxu0 %v616
        %v660 = vpop.f32.mrf.mxu0
        %v661 = vadd.f32 %v611, %v660
        %662 = vmatmul.f32.gmra.mxu0 %v618
        %v663 = vpop.f32.mrf.mxu0
        %v664 = vadd.f32 %v614, %v663
        %665 = vdwg.mxu0
        %666 = vrot.lane.b32.xlu0 %v541, 112
        %v667 = vpop.permute.xlu0 %666
        %668 = vrot.lane.b32.xlu0 %v542, 112
        %v669 = vpop.permute.xlu0 %668
        %670 = vrot.lane.b32.xlu0 %v543, 126
        %v671 = vpop.permute.xlu0 %670
        %672 = vrot.lane.b32.xlu0 %v544, 126
        %v673 = vpop.permute.xlu0 %672
        %674 = vrot.lane.b32.xlu0 %v545, 126
        %v675 = vpop.permute.xlu0 %674
        %v676 = vsel %vm441, %v671, %v673
        %v677 = vsel %vm441, %v673, %v675
        %v680 = vsel %vm565, %v667, 0
        %v682 = vsel %vm565, %v669, 0
        %684 = vmatpush.msra.mxu0 0.0
        %685 = vmatpush.msra.mxu0 0.0
        %686 = vmatpush.msra.mxu0 0.0
        %687 = vmatpush.msra.mxu0 0.0
        %688 = vmatpush.msra.mxu0 0.0
        %689 = vmatpush.msra.mxu0 0.0
        %690 = vmatpush.msra.mxu0 0.0
        %691 = vmatpush.msra.mxu0 0.0
        %692 = vmatpush.msra.mxu0 0.0
        %693 = vmatpush.msra.mxu0 0.0
        %694 = vmatpush.msra.mxu0 0.0
        %695 = vmatpush.msra.mxu0 0.0
        %696 = vmatpush.msra.mxu0 0.0
        %697 = vmatpush.msra.mxu0 0.0
        %698 = vmatpush.msra.mxu0 0.0
        %699 = vmatpush.msra.mxu0 %v676
        %700 = vmatmul.f32.gmra.mxu0 %v680
        %v701 = vpop.f32.mrf.mxu0
        %v702 = vadd.f32 0.0, %v701
        %703 = vmatmul.f32.gmra.mxu0 %v682
        %v704 = vpop.f32.mrf.mxu0
        %v705 = vadd.f32 0.0, %v704
        %706 = vdwg.mxu0
        %707 = vmatpush.msra.mxu0 0.0
        %708 = vmatpush.msra.mxu0 0.0
        %709 = vmatpush.msra.mxu0 0.0
        %710 = vmatpush.msra.mxu0 0.0
        %711 = vmatpush.msra.mxu0 0.0
        %712 = vmatpush.msra.mxu0 0.0
        %713 = vmatpush.msra.mxu0 0.0
        %714 = vmatpush.msra.mxu0 0.0
        %715 = vmatpush.msra.mxu0 0.0
        %716 = vmatpush.msra.mxu0 0.0
        %717 = vmatpush.msra.mxu0 0.0
        %718 = vmatpush.msra.mxu0 0.0
        %719 = vmatpush.msra.mxu0 0.0
        %720 = vmatpush.msra.mxu0 0.0
        %721 = vmatpush.msra.mxu0 0.0
        %722 = vmatpush.msra.mxu0 %v677
        %723 = vmatmul.f32.gmra.mxu0 %v680
        %v724 = vpop.f32.mrf.mxu0
        %v725 = vadd.f32 0.0, %v724
        %726 = vmatmul.f32.gmra.mxu0 %v682
        %v727 = vpop.f32.mrf.mxu0
        %v728 = vadd.f32 0.0, %v727
        %729 = vdwg.mxu0
        %v730 = vadd.f32 %v638, %v702
        %v731 = vadd.f32 %v661, %v725
        %v732 = vadd.f32 %v641, %v705
        %v733 = vadd.f32 %v664, %v728
        %v734 = vld [vmem:[%s4] sm:$0xff]
        %v735 = vld [vmem:[%s4 + $0x8] sm:$0xff]
        %737 = vset.pattern.permute.xlu0 0
        %738 = vperm.xlu0 %737, %v734
        %v739 = vpop.permute.xlu0 %738
        %742 = vset.pattern.permute.xlu0 0
        %743 = vperm.xlu0 %742, %v735
        %v744 = vpop.permute.xlu0 %743
        %v746 = vadd.f32 %v730, %v739
        %v747 = vadd.f32 %v731, %v739
        %v748 = vadd.f32 %v732, %v744
        %v749 = vadd.f32 %v733, %v744
        %v750 = vmax.f32 %v746, 0.0
        %v751 = vmax.f32 %v747, 0.0
        %v752 = vmax.f32 %v748, 0.0
        %v753 = vmax.f32 %v749, 0.0
        %v754 = vmax.f32 %v750, %v752
        %v755 = vmax.f32 %v751, %v753
        %756 = vst [vmem:[%s258] sm:$0xff] %v754
        %757 = vst [vmem:[%s258 + $0x8] sm:$0xff] %v755
        %p758 = scmp.lt.s32.totalorder %s18, 1
        %s759 = scalar_select %p758, %s18, 1
        %s760 = smul.addr %s759, 2
        %s761 = smul.addr %s760, 8
        %s762 = scalar_lea.vmem %s5, %s761
        // Predicated region
        $region49: #{cnn_forward.2} parent=39 // pred_check
          %p763 = pneg %p146
        $region50: #{cnn_forward.2} parent=39 // pred_check_branch
          %765 = sbr.rel (%p763) target = $region52
        $region51: #{cnn_forward.2} parent=39 // pred_region
          _
        $region52: #{cnn_forward.2} parent=39 // pred_fallthru
          _
      $region40: #{cnn_forward.2} parent=5 // pred_fallthru
        _
      %p766 = scmp.le.s32.totalorder 2, %s13
      // Predicated region
      $region53: #{cnn_forward.2} parent=5 // pred_check
        %p767 = pneg %p766
      $region54: #{cnn_forward.2} parent=5 // pred_check_branch
        %769 = sbr.rel (%p767) target = $region56
      $region55: #{cnn_forward.2} parent=5 // pred_region
        %s770 = ssub.s32 %s13, 2
        // Predicated region
        $region57: #{cnn_forward.2} parent=55 // pred_check
          %p771 = pneg %p152
        $region58: #{cnn_forward.2} parent=55 // pred_check_branch
          %773 = sbr.rel (%p771) target = $region60
        $region59: #{cnn_forward.2} parent=55 // pred_region
          %p774 = scmp.lt.s32.totalorder %s19, 1
          %s775 = scalar_select %p774, %s19, 1
          %s776 = smul.addr %s775, 2
          %s777 = smul.addr %s776, 8
          %s778 = scalar_lea.vmem %s5, %s777
        $region60: #{cnn_forward.2} parent=55 // pred_fallthru
          _
      $region56: #{cnn_forward.2} parent=5 // pred_fallthru
        _
    $region6: #{cnn_forward.2} parent=1 // loop_footer
      %s17 = sadd.s32 1, %s13
    $region7: #{cnn_forward.2} parent=1 // loop_footer_branch
      %12 = sbr.rel target = $region3
    $region8: #{cnn_forward.2} parent=1 // loop_exit
      _
    %779 = vsyncpa [#allocation5], 1
    %s780 = scalar_lea.sflag [#allocation5], 1
    %781 = vsyncpa %s780, 1
    %782 = vsyncpa [#allocation7], 1

// kernel: cnn_forward.3
$region0: #{cnn_forward.3}
  #allocation0 [shape = 'u32[]', space=smem, size = 0x4, offset = 0x4, fixed_abs, tag = 'smem constant byte address 0x4 - core index']
  #allocation1 [shape = 'u32[72,128]{1,0:T(1,128)}', space=vmem, size = 0x9000, scoped, tag = 'internal scratch']
  %s0 = inlined_call_operand.vmem [shape: f32[2,2048], index: 0, kind: input, shape index: {}]
  %s1 = inlined_call_operand.hbm [shape: bf16[2048,1024], index: 1, kind: input, shape index: {}]
  %s2 = inlined_call_operand.hbm [shape: f32[1,1024], index: 2, kind: input, shape index: {}]
  %s3 = inlined_call_operand.vmem [shape: f32[1024,10], index: 3, kind: input, shape index: {}]
  %s4 = inlined_call_operand.vmem [shape: f32[2,2,10], index: 4, kind: output, shape index: {}]
  %s5 = sld [smem:[#allocation0]]
  $region65: #{cnn_forward.3} parent=0
    _
  %s7 = ssub.s32 1, %s5
  %s8 = scalar_select 0, %s7, %s5
  $region1: #{cnn_forward.3} parent=0
    #allocation2 [shape = 'u8[4194304]{0}', space=vmem, size = 0x400000, scoped, tag = 'input window, operand 1']
    #allocation3 [shape = 's32[2]{0}', space=sflag, size = 0x8, scoped, tag = 'scoped memory for cnn_forward.3']
    #allocation4 [shape = 'u8[4096]{0}', space=vmem, size = 0x1000, scoped, tag = 'input window, operand 2']
    #allocation5 [shape = 's32[2]{0}', space=sflag, size = 0x8, scoped, tag = 'scoped memory for cnn_forward.3']
    %9 = vsyncpa [#allocation3], 0
    %s10 = scalar_lea.sflag [#allocation3], 1
    %11 = vsyncpa %s10, 0
    %12 = vsyncpa [#allocation5], 0
    %s13 = scalar_lea.sflag [#allocation5], 1
    %14 = vsyncpa %s13, 0
    loop: start=0, step=1, limit=4
    $region2: #{cnn_forward.3} parent=1 // loop_pre_header
      _
    $region3: #{cnn_forward.3} parent=1 // loop_header
      %s16 = sphi 0, %s20
      %p17 = scmp.ge.s32.totalorder %s16, 4
      %s23 = sphi 0, %s35
      %s24 = sphi 0, %s31
      %s25 = sphi 0, %s23
      %s26 = sphi 0, %s24
      %s27 = sphi 0, %s25
      %s28 = sphi 0, %s26
      %s36 = sphi 0, %s36
      %s38 = sphi 0, %s36
      %s39 = sphi 0, %s38
      %s53 = sphi 0, %s39
      %s61 = sphi 0, %s63
      %s64 = sphi 0, %s61
      %s65 = sphi 0, %s64
      %s81 = sphi 0, %s65
      %s89 = sphi 0, %s91
      %s92 = sphi 0, %s89
      %s93 = sphi 0, %s92
      %s109 = sphi 0, %s93
      %s113 = sphi 0, %s113
      %s115 = sphi 0, %s113
      %s116 = sphi 0, %s115
      %s130 = sphi 0, %s116
      %s136 = sphi 0, %s138
      %s139 = sphi 0, %s136
      %s140 = sphi 0, %s139
      %s156 = sphi 0, %s140
    $region4: #{cnn_forward.3} parent=1 // loop_header_branch
      %19 = sbr.rel (%p17) target = $region8
    $region5: #{cnn_forward.3} parent=1 // loop_body
      %s21 = ssub.s32 %s16, 1
      %s22 = ssub.s32 %s16, 2
      %s29 = sadd.s32 1, %s24
      %p30 = scmp.ge.s32.totalorder %s29, 1
      %s31 = scalar_select %p30, 0, %s29
      %s32 = sadd.s32 1, %s23
      %s33 = scalar_select %p30, %s32, %s23
      %p34 = scmp.ge.s32.totalorder %s33, 2
      %s35 = scalar_select %p34, 0, %s33
      %s37 = sadd.s32 %s36, 1
      %p40 = scmp.eq.s32.totalorder %s16, 1
      %p41 = scmp.ne.s32.totalorder %s36, %s38
      %p42 = scmp.eq.s32.totalorder %s16, 0
      %p43 = por %p41, %p42
      %p44 = scmp.ne.s32.totalorder %s36, %s38
      %p45 = scmp.eq.s32.totalorder %s21, 1
      %p46 = por %p44, %p45
      %p47 = scmp.ne.s32.totalorder %s38, %s39
      %p48 = scmp.eq.s32.totalorder %s21, 0
      %p49 = por %p47, %p48
      %p50 = scmp.ne.s32.totalorder %s38, %s39
      %p51 = scmp.eq.s32.totalorder %s22, 1
      %p52 = por %p50, %p51
      %p54 = scmp.ne.s32.totalorder %s39, %s53
      %p55 = scmp.eq.s32.totalorder %s22, 0
      %p56 = por %p54, %p55
      %s57 = sadd.s32 %s23, %s24
      %s58 = sadd.s32 %s35, %s31
      %s59 = ssub.s32 %s57, %s58
      %p60 = scmp.eq.s32.totalorder %s59, 0
      %s62 = sadd.s32 %s61, 1
      %s63 = scalar_select %p60, %s61, %s62
      %p66 = pneg %p60
      %p67 = scmp.eq.s32.totalorder %s16, 1
      %p68 = por %p66, %p67
      %p69 = scmp.ne.s32.totalorder %s61, %s64
      %p70 = scmp.eq.s32.totalorder %s16, 0
      %p71 = por %p69, %p70
      %p72 = scmp.ne.s32.totalorder %s61, %s64
      %p73 = scmp.eq.s32.totalorder %s21, 1
      %p74 = por %p72, %p73
      %p75 = scmp.ne.s32.totalorder %s64, %s65
      %p76 = scmp.eq.s32.totalorder %s21, 0
      %p77 = por %p75, %p76
      %p78 = scmp.ne.s32.totalorder %s64, %s65
      %p79 = scmp.eq.s32.totalorder %s22, 1
      %p80 = por %p78, %p79
      %p82 = scmp.ne.s32.totalorder %s65, %s81
      %p83 = scmp.eq.s32.totalorder %s22, 0
      %p84 = por %p82, %p83
      %s85 = sadd.s32 %s23, %s24
      %s86 = sadd.s32 %s35, %s31
      %s87 = ssub.s32 %s85, %s86
      %p88 = scmp.eq.s32.totalorder %s87, 0
      %s90 = sadd.s32 %s89, 1
      %s91 = scalar_select %p88, %s89, %s90
      %p94 = pneg %p88
      %p95 = scmp.eq.s32.totalorder %s16, 1
      %p96 = por %p94, %p95
      %p97 = scmp.ne.s32.totalorder %s89, %s92
      %p98 = scmp.eq.s32.totalorder %s16, 0
      %p99 = por %p97, %p98
      %p100 = scmp.ne.s32.totalorder %s89, %s92
      %p101 = scmp.eq.s32.totalorder %s21, 1
      %p102 = por %p100, %p101
      %p103 = scmp.ne.s32.totalorder %s92, %s93
      %p104 = scmp.eq.s32.totalorder %s21, 0
      %p105 = por %p103, %p104
      %p106 = scmp.ne.s32.totalorder %s92, %s93
      %p107 = scmp.eq.s32.totalorder %s22, 1
      %p108 = por %p106, %p107
      %p110 = scmp.ne.s32.totalorder %s93, %s109
      %p111 = scmp.eq.s32.totalorder %s22, 0
      %p112 = por %p110, %p111
      %s114 = sadd.s32 %s113, 1
      %p117 = scmp.eq.s32.totalorder %s16, 1
      %p118 = scmp.ne.s32.totalorder %s113, %s115
      %p119 = scmp.eq.s32.totalorder %s16, 0
      %p120 = por %p118, %p119
      %p121 = scmp.ne.s32.totalorder %s113, %s115
      %p122 = scmp.eq.s32.totalorder %s21, 1
      %p123 = por %p121, %p122
      %p124 = scmp.ne.s32.totalorder %s115, %s116
      %p125 = scmp.eq.s32.totalorder %s21, 0
      %p126 = por %p124, %p125
      %p127 = scmp.ne.s32.totalorder %s115, %s116
      %p128 = scmp.eq.s32.totalorder %s22, 1
      %p129 = por %p127, %p128
      %p131 = scmp.ne.s32.totalorder %s116, %s130
      %p132 = scmp.eq.s32.totalorder %s22, 0
      %p133 = por %p131, %p132
      %s134 = ssub.s32 %s23, %s35
      %p135 = scmp.eq.s32.totalorder %s134, 0
      %s137 = sadd.s32 %s136, 1
      %s138 = scalar_select %p135, %s136, %s137
      %p141 = pneg %p135
      %p142 = scmp.eq.s32.totalorder %s16, 1
      %p143 = por %p141, %p142
      %p144 = scmp.ne.s32.totalorder %s136, %s139
      %p145 = scmp.eq.s32.totalorder %s16, 0
      %p146 = por %p144, %p145
      %p147 = scmp.ne.s32.totalorder %s136, %s139
      %p148 = scmp.eq.s32.totalorder %s21, 1
      %p149 = por %p147, %p148
      %p150 = scmp.ne.s32.totalorder %s139, %s140
      %p151 = scmp.eq.s32.totalorder %s21, 0
      %p152 = por %p150, %p151
      %p153 = scmp.ne.s32.totalorder %s139, %s140
      %p154 = scmp.eq.s32.totalorder %s22, 1
      %p155 = por %p153, %p154
      %p157 = scmp.ne.s32.totalorder %s140, %s156
      %p158 = scmp.eq.s32.totalorder %s22, 0
      %p159 = por %p157, %p158
      %p160 = scmp.le.s32.totalorder 1, %s16
      %p161 = scmp.lt.s32.totalorder %s16, 3
      %p162 = pnand %p160, %p161
      %p163 = pneg %p162
      // Predicated region
      $region9: #{cnn_forward.3} parent=5 // pred_check
        _
      $region10: #{cnn_forward.3} parent=5 // pred_check_branch
        %165 = sbr.rel (%p162) target = $region12
      $region11: #{cnn_forward.3} parent=5 // pred_region
        %s166 = ssub.s32 %s16, 1
        // Predicated region
        $region13: #{cnn_forward.3} parent=11 // pred_check
          %p167 = pneg %p49
        $region14: #{cnn_forward.3} parent=11 // pred_check_branch
          %169 = sbr.rel (%p167) target = $region16
        $region15: #{cnn_forward.3} parent=11 // pred_region
          _
        $region16: #{cnn_forward.3} parent=11 // pred_fallthru
          _
        // Predicated region
        $region17: #{cnn_forward.3} parent=11 // pred_check
          %p170 = pneg %p126
        $region18: #{cnn_forward.3} parent=11 // pred_check_branch
          %172 = sbr.rel (%p170) target = $region20
        $region19: #{cnn_forward.3} parent=11 // pred_region
          _
        $region20: #{cnn_forward.3} parent=11 // pred_fallthru
          _
      $region12: #{cnn_forward.3} parent=5 // pred_fallthru
        _
      %p173 = scmp.lt.s32.totalorder %s16, 2
      // Predicated region
      $region21: #{cnn_forward.3} parent=5 // pred_check
        %p174 = pneg %p173
      $region22: #{cnn_forward.3} parent=5 // pred_check_branch
        %176 = sbr.rel (%p174) target = $region24
      $region23: #{cnn_forward.3} parent=5 // pred_region
        // Predicated region
        $region25: #{cnn_forward.3} parent=23 // pred_check
          %p177 = pneg %p71
        $region26: #{cnn_forward.3} parent=23 // pred_check_branch
          %179 = sbr.rel (%p177) target = $region28
        $region27: #{cnn_forward.3} parent=23 // pred_region
          %s180 = sand.u32 %s61, 1
          %s181 = scalar_lea.sflag [#allocation3], %s180
          %s182 = sand.u32 %s61, 1
          %s183 = smul.addr %s182, 4096
          %s184 = scalar_lea.vmem [#allocation2], %s183
          %s185 = sadd.s32 %s23, %s24
          %s186 = smul.u32 4, %s185
          %188 = vsyncadd %s181, 0
          %s189 = smul.addr %s186, 4
          %s190 = scalar_lea.hbm %s1, %s189
          %s191 = sshll.u32 %s190, 4
          %s192 = int_to_ptr.hbm [resolvable:$true] %s191
          %s193 = sshll.u32 %s184, 4
          %s194 = int_to_ptr.vmem [resolvable:$true] %s193
          %199 = dma.hbm_to_vmem [thread:$0]  %s192, 65536, %s194, %s181, 512, 256, 16
        $region28: #{cnn_forward.3} parent=23 // pred_fallthru
          _
        // Predicated region
        $region29: #{cnn_forward.3} parent=23 // pred_check
          %p200 = pneg %p99
        $region30: #{cnn_forward.3} parent=23 // pred_check_branch
          %202 = sbr.rel (%p200) target = $region32
        $region31: #{cnn_forward.3} parent=23 // pred_region
          %s203 = sand.u32 %s89, 1
          %s204 = scalar_lea.sflag [#allocation5], %s203
          %s205 = sand.u32 %s89, 1
          %s206 = smul.addr %s205, 4
          %s207 = scalar_lea.vmem [#allocation4], %s206
          %s208 = sadd.s32 %s23, %s24
          %s209 = smul.u32 4, %s208
          %211 = vsyncadd %s204, 0
          %s212 = scalar_lea.hbm %s2, %s209
          %s214 = sshll.u32 %s212, 4
          %s215 = int_to_ptr.hbm [resolvable:$true] %s214
          %s216 = sshll.u32 %s207, 4
          %s217 = int_to_ptr.vmem [resolvable:$true] %s216
          %219 = dma.hbm_to_vmem [thread:$0]  %s215, 64, %s217, %s204
        $region32: #{cnn_forward.3} parent=23 // pred_fallthru
          _
      $region24: #{cnn_forward.3} parent=5 // pred_fallthru
        _
      %p220 = scmp.le.s32.totalorder 1, %s16
      %p221 = scmp.lt.s32.totalorder %s16, 3
      %p222 = pnand %p220, %p221
      %p223 = pneg %p222
      // Predicated region
      $region33: #{cnn_forward.3} parent=5 // pred_check
        _
      $region34: #{cnn_forward.3} parent=5 // pred_check_branch
        %225 = sbr.rel (%p222) target = $region36
      $region35: #{cnn_forward.3} parent=5 // pred_region
        %s226 = ssub.s32 %s16, 1
        %s227 = sand.u32 %s64, 1
        %s228 = scalar_lea.sflag [#allocation3], %s227
        %s229 = sand.u32 %s64, 1
        %s230 = smul.addr %s229, 4096
        %s231 = scalar_lea.vmem [#allocation2], %s230
        // Predicated region
        $region37: #{cnn_forward.3} parent=35 // pred_check
          %p232 = pneg %p77
        $region38: #{cnn_forward.3} parent=35 // pred_check_branch
          %234 = sbr.rel (%p232) target = $region40
        $region39: #{cnn_forward.3} parent=35 // pred_region
          %236 = dma.done %s228, 65536
        $region40: #{cnn_forward.3} parent=35 // pred_fallthru
          _
        %s237 = sand.u32 %s92, 1
        %s238 = scalar_lea.sflag [#allocation5], %s237
        %s239 = sand.u32 %s92, 1
        %s240 = smul.addr %s239, 4
        %s241 = scalar_lea.vmem [#allocation4], %s240
        // Predicated region
        $region41: #{cnn_forward.3} parent=35 // pred_check
          %p242 = pneg %p105
        $region42: #{cnn_forward.3} parent=35 // pred_check_branch
          %244 = sbr.rel (%p242) target = $region44
        $region43: #{cnn_forward.3} parent=35 // pred_region
          %246 = dma.done %s238, 64
        $region44: #{cnn_forward.3} parent=35 // pred_fallthru
          _
        %p247 = pneg %p49
        %p248 = pneg %p46
        %s249 = sand.u32 %s64, 1
        %s250 = scalar_lea.sflag [#allocation3], %s249
        %s251 = sand.u32 %s64, 1
        %s252 = smul.addr %s251, 4096
        %s253 = scalar_lea.vmem [#allocation2], %s252
        %p254 = pneg %p77
        %p255 = pneg %p74
        %s256 = sand.u32 %s92, 1
        %s257 = scalar_lea.sflag [#allocation5], %s256
        %s258 = sand.u32 %s92, 1
        %s259 = smul.addr %s258, 4
        %s260 = scalar_lea.vmem [#allocation4], %s259
        %p261 = pneg %p105
        %p262 = pneg %p102
        %p263 = pneg %p126
        %p264 = pneg %p123
        %p265 = pneg %p152
        %p266 = pneg %p149
        %p267 = scmp.lt.s32.totalorder %s25, 1
        %s268 = scalar_select %p267, %s25, 1
        %s269 = smul.addr %s268, 2
        %s270 = scalar_lea.vmem %s4, %s269
        %s271 = sadd.s32 %s25, %s26
        %s272 = smul.u32 4, %s271
        %s273 = sadd.s32 %s25, %s26
        %s274 = smul.u32 4, %s273
        %p275 = scmp.lt.s32.totalorder %s25, 1
        %s276 = scalar_select %p275, %s25, 1
        %s277 = smul.addr %s276, 2
        %s278 = scalar_lea.vmem %s4, %s277
        %v279 = vld [vmem:[%s0] sm:$0xff]
        %v280 = vld [vmem:[%s0 + $0x8] sm:$0xff]
        %v281 = vld [vmem:[%s0 + $0x10] sm:$0xff]
        %v282 = vld [vmem:[%s0 + $0x18] sm:$0xff]
        %287 = vst [vmem:[#allocation1] ss:$4 sm:$0xff] %v279
        %s288 = scalar_lea.vmem [#allocation1], 32
        %289 = vst [vmem:[%s288] ss:$4 sm:$0xff] %v280
        %v290 = vld.sshfl [vmem:[#allocation1] sm:$0xff pattern:$0x73625140]
        %v291 = vld.sshfl [vmem:[#allocation1 + $0x8] sm:$0xff pattern:$0x73625140]
        %v292 = vld.sshfl [vmem:[#allocation1 + $0x10] sm:$0xff pattern:$0x73625140]
        %v293 = vld.sshfl [vmem:[#allocation1 + $0x18] sm:$0xff pattern:$0x73625140]
        %v294 = vld.sshfl [vmem:[#allocation1 + $0x20] sm:$0xff pattern:$0x73625140]
        %v295 = vld.sshfl [vmem:[#allocation1 + $0x28] sm:$0xff pattern:$0x73625140]
        %v296 = vld.sshfl [vmem:[#allocation1 + $0x30] sm:$0xff pattern:$0x73625140]
        %v297 = vld.sshfl [vmem:[#allocation1 + $0x38] sm:$0xff pattern:$0x73625140]
        %298 = vst [vmem:[#allocation1] ss:$4 sm:$0xff] %v281
        %299 = vst [vmem:[%s288] ss:$4 sm:$0xff] %v282
        %v300 = vld.sshfl [vmem:[#allocation1] sm:$0xff pattern:$0x73625140]
        %v301 = vld.sshfl [vmem:[#allocation1 + $0x8] sm:$0xff pattern:$0x73625140]
        %v302 = vld.sshfl [vmem:[#allocation1 + $0x10] sm:$0xff pattern:$0x73625140]
        %v303 = vld.sshfl [vmem:[#allocation1 + $0x18] sm:$0xff pattern:$0x73625140]
        %v304 = vld.sshfl [vmem:[#allocation1 + $0x20] sm:$0xff pattern:$0x73625140]
        %v305 = vld.sshfl [vmem:[#allocation1 + $0x28] sm:$0xff pattern:$0x73625140]
        %v306 = vld.sshfl [vmem:[#allocation1 + $0x30] sm:$0xff pattern:$0x73625140]
        %v307 = vld.sshfl [vmem:[#allocation1 + $0x38] sm:$0xff pattern:$0x73625140]
        %v324 = vpack.c.bf16 %v290, %v290
        %v325 = vpack.c.bf16 %v291, %v291
        %v326 = vpack.c.bf16 %v292, %v292
        %v327 = vpack.c.bf16 %v293, %v293
        %v328 = vpack.c.bf16 %v294, %v294
        %v329 = vpack.c.bf16 %v295, %v295
        %v330 = vpack.c.bf16 %v296, %v296
        %v331 = vpack.c.bf16 %v297, %v297
        %v332 = vpack.c.bf16 %v300, %v300
        %v333 = vpack.c.bf16 %v301, %v301
        %v334 = vpack.c.bf16 %v302, %v302
        %v335 = vpack.c.bf16 %v303, %v303
        %v336 = vpack.c.bf16 %v304, %v304
        %v337 = vpack.c.bf16 %v305, %v305
        %v338 = vpack.c.bf16 %v306, %v306
        %v339 = vpack.c.bf16 %v307, %v307
        %v340 = vld [vmem:[%s231] sm:$0xff]
        %v341 = vld [vmem:[%s231 + $0x8] sm:$0xff]
        %v342 = vld [vmem:[%s231 + $0x10] sm:$0xff]
        %v343 = vld [vmem:[%s231 + $0x18] sm:$0xff]
        %v344 = vld [vmem:[%s231 + $0x20] sm:$0xff]
        %v345 = vld [vmem:[%s231 + $0x28] sm:$0xff]
        %v346 = vld [vmem:[%s231 + $0x30] sm:$0xff]
        %v347 = vld [vmem:[%s231 + $0x38] sm:$0xff]
        %v348 = vld [vmem:[%s231 + $0x40] sm:$0xff]
        %v349 = vld [vmem:[%s231 + $0x48] sm:$0xff]
        %v350 = vld [vmem:[%s231 + $0x50] sm:$0xff]
        %v351 = vld [vmem:[%s231 + $0x58] sm:$0xff]
        %v352 = vld [vmem:[%s231 + $0x60] sm:$0xff]
        %v353 = vld [vmem:[%s231 + $0x68] sm:$0xff]
        %v354 = vld [vmem:[%s231 + $0x70] sm:$0xff]
        %v355 = vld [vmem:[%s231 + $0x78] sm:$0xff]
        %v356 = vld [vmem:[%s231 + $0x80] sm:$0xff]
        %v357 = vld [vmem:[%s231 + $0x88] sm:$0xff]
        %v358 = vld [vmem:[%s231 + $0x90] sm:$0xff]
        %v359 = vld [vmem:[%s231 + $0x98] sm:$0xff]
        %v360 = vld [vmem:[%s231 + $0xa0] sm:$0xff]
        %v361 = vld [vmem:[%s231 + $0xa8] sm:$0xff]
        %v362 = vld [vmem:[%s231 + $0xb0] sm:$0xff]
        %v363 = vld [vmem:[%s231 + $0xb8] sm:$0xff]
        %v364 = vld [vmem:[%s231 + $0xc0] sm:$0xff]
        %v365 = vld [vmem:[%s231 + $0xc8] sm:$0xff]
        %v366 = vld [vmem:[%s231 + $0xd0] sm:$0xff]
        %v367 = vld [vmem:[%s231 + $0xd8] sm:$0xff]
        %v368 = vld [vmem:[%s231 + $0xe0] sm:$0xff]
        %v369 = vld [vmem:[%s231 + $0xe8] sm:$0xff]
        %v370 = vld [vmem:[%s231 + $0xf0] sm:$0xff]
        %v371 = vld [vmem:[%s231 + $0xf8] sm:$0xff]
        %v372 = vld [vmem:[%s231 + $0x100] sm:$0xff]
        %v373 = vld [vmem:[%s231 + $0x108] sm:$0xff]
        %v374 = vld [vmem:[%s231 + $0x110] sm:$0xff]
        %v375 = vld [vmem:[%s231 + $0x118] sm:$0xff]
        %v376 = vld [vmem:[%s231 + $0x120] sm:$0xff]
        %v377 = vld [vmem:[%s231 + $0x128] sm:$0xff]
        %v378 = vld [vmem:[%s231 + $0x130] sm:$0xff]
        %v379 = vld [vmem:[%s231 + $0x138] sm:$0xff]
        %v380 = vld [vmem:[%s231 + $0x140] sm:$0xff]
        %v381 = vld [vmem:[%s231 + $0x148] sm:$0xff]
        %v382 = vld [vmem:[%s231 + $0x150] sm:$0xff]
        %v383 = vld [vmem:[%s231 + $0x158] sm:$0xff]
        %v384 = vld [vmem:[%s231 + $0x160] sm:$0xff]
        %v385 = vld [vmem:[%s231 + $0x168] sm:$0xff]
        %v386 = vld [vmem:[%s231 + $0x170] sm:$0xff]
        %v387 = vld [vmem:[%s231 + $0x178] sm:$0xff]
        %v388 = vld [vmem:[%s231 + $0x180] sm:$0xff]
        %v389 = vld [vmem:[%s231 + $0x188] sm:$0xff]
        %v390 = vld [vmem:[%s231 + $0x190] sm:$0xff]
        %v391 = vld [vmem:[%s231 + $0x198] sm:$0xff]
        %v392 = vld [vmem:[%s231 + $0x1a0] sm:$0xff]
        %v393 = vld [vmem:[%s231 + $0x1a8] sm:$0xff]
        %v394 = vld [vmem:[%s231 + $0x1b0] sm:$0xff]
        %v395 = vld [vmem:[%s231 + $0x1b8] sm:$0xff]
        %v396 = vld [vmem:[%s231 + $0x1c0] sm:$0xff]
        %v397 = vld [vmem:[%s231 + $0x1c8] sm:$0xff]
        %v398 = vld [vmem:[%s231 + $0x1d0] sm:$0xff]
        %v399 = vld [vmem:[%s231 + $0x1d8] sm:$0xff]
        %v400 = vld [vmem:[%s231 + $0x1e0] sm:$0xff]
        %v401 = vld [vmem:[%s231 + $0x1e8] sm:$0xff]
        %v402 = vld [vmem:[%s231 + $0x1f0] sm:$0xff]
        %v403 = vld [vmem:[%s231 + $0x1f8] sm:$0xff]
        %v404 = vld [vmem:[%s231 + $0x200] sm:$0xff]
        %v405 = vld [vmem:[%s231 + $0x208] sm:$0xff]
        %v406 = vld [vmem:[%s231 + $0x210] sm:$0xff]
        %v407 = vld [vmem:[%s231 + $0x218] sm:$0xff]
        %v408 = vld [vmem:[%s231 + $0x220] sm:$0xff]
        %v409 = vld [vmem:[%s231 + $0x228] sm:$0xff]
        %v410 = vld [vmem:[%s231 + $0x230] sm:$0xff]
        %v411 = vld [vmem:[%s231 + $0x238] sm:$0xff]
        %v412 = vld [vmem:[%s231 + $0x240] sm:$0xff]
        %v413 = vld [vmem:[%s231 + $0x248] sm:$0xff]
        %v414 = vld [vmem:[%s231 + $0x250] sm:$0xff]
        %v415 = vld [vmem:[%s231 + $0x258] sm:$0xff]
        %v416 = vld [vmem:[%s231 + $0x260] sm:$0xff]
        %v417 = vld [vmem:[%s231 + $0x268] sm:$0xff]
        %v418 = vld [vmem:[%s231 + $0x270] sm:$0xff]
        %v419 = vld [vmem:[%s231 + $0x278] sm:$0xff]
        %v420 = vld [vmem:[%s231 + $0x280] sm:$0xff]
        %v421 = vld [vmem:[%s231 + $0x288] sm:$0xff]
        %v422 = vld [vmem:[%s231 + $0x290] sm:$0xff]
        %v423 = vld [vmem:[%s231 + $0x298] sm:$0xff]
        %v424 = vld [vmem:[%s231 + $0x2a0] sm:$0xff]
        %v425 = vld [vmem:[%s231 + $0x2a8] sm:$0xff]
        %v426 = vld [vmem:[%s231 + $0x2b0] sm:$0xff]
        %v427 = vld [vmem:[%s231 + $0x2b8] sm:$0xff]
        %v428 = vld [vmem:[%s231 + $0x2c0] sm:$0xff]
        %v429 = vld [vmem:[%s231 + $0x2c8] sm:$0xff]
        %v430 = vld [vmem:[%s231 + $0x2d0] sm:$0xff]
        %v431 = vld [vmem:[%s231 + $0x2d8] sm:$0xff]
        %v432 = vld [vmem:[%s231 + $0x2e0] sm:$0xff]
        %v433 = vld [vmem:[%s231 + $0x2e8] sm:$0xff]
        %v434 = vld [vmem:[%s231 + $0x2f0] sm:$0xff]
        %v435 = vld [vmem:[%s231 + $0x2f8] sm:$0xff]
        %v436 = vld [vmem:[%s231 + $0x300] sm:$0xff]
        %v437 = vld [vmem:[%s231 + $0x308] sm:$0xff]
        %v438 = vld [vmem:[%s231 + $0x310] sm:$0xff]
        %v439 = vld [vmem:[%s231 + $0x318] sm:$0xff]
        %v440 = vld [vmem:[%s231 + $0x320] sm:$0xff]
        %v441 = vld [vmem:[%s231 + $0x328] sm:$0xff]
        %v442 = vld [vmem:[%s231 + $0x330] sm:$0xff]
        %v443 = vld [vmem:[%s231 + $0x338] sm:$0xff]
        %v444 = vld [vmem:[%s231 + $0x340] sm:$0xff]
        %v445 = vld [vmem:[%s231 + $0x348] sm:$0xff]
        %v446 = vld [vmem:[%s231 + $0x350] sm:$0xff]
        %v447 = vld [vmem:[%s231 + $0x358] sm:$0xff]
        %v448 = vld [vmem:[%s231 + $0x360] sm:$0xff]
        %v449 = vld [vmem:[%s231 + $0x368] sm:$0xff]
        %v450 = vld [vmem:[%s231 + $0x370] sm:$0xff]
        %v451 = vld [vmem:[%s231 + $0x378] sm:$0xff]
        %v452 = vld [vmem:[%s231 + $0x380] sm:$0xff]
        %v453 = vld [vmem:[%s231 + $0x388] sm:$0xff]
        %v454 = vld [vmem:[%s231 + $0x390] sm:$0xff]
        %v455 = vld [vmem:[%s231 + $0x398] sm:$0xff]
        %v456 = vld [vmem:[%s231 + $0x3a0] sm:$0xff]
        %v457 = vld [vmem:[%s231 + $0x3a8] sm:$0xff]
        %v458 = vld [vmem:[%s231 + $0x3b0] sm:$0xff]
        %v459 = vld [vmem:[%s231 + $0x3b8] sm:$0xff]
        %v460 = vld [vmem:[%s231 + $0x3c0] sm:$0xff]
        %v461 = vld [vmem:[%s231 + $0x3c8] sm:$0xff]
        %v462 = vld [vmem:[%s231 + $0x3d0] sm:$0xff]
        %v463 = vld [vmem:[%s231 + $0x3d8] sm:$0xff]
        %v464 = vld [vmem:[%s231 + $0x3e0] sm:$0xff]
        %v465 = vld [vmem:[%s231 + $0x3e8] sm:$0xff]
        %v466 = vld [vmem:[%s231 + $0x3f0] sm:$0xff]
        %v467 = vld [vmem:[%s231 + $0x3f8] sm:$0xff]
        %v468 = vld [vmem:[%s231 + $0x400] sm:$0xff]
        %v469 = vld [vmem:[%s231 + $0x408] sm:$0xff]
        %v470 = vld [vmem:[%s231 + $0x410] sm:$0xff]
        %v471 = vld [vmem:[%s231 + $0x418] sm:$0xff]
        %v472 = vld [vmem:[%s231 + $0x420] sm:$0xff]
        %v473 = vld [vmem:[%s231 + $0x428] sm:$0xff]
        %v474 = vld [vmem:[%s231 + $0x430] sm:$0xff]
        %v475 = vld [vmem:[%s231 + $0x438] sm:$0xff]
        %v476 = vld [vmem:[%s231 + $0x440] sm:$0xff]
        %v477 = vld [vmem:[%s231 + $0x448] sm:$0xff]
        %v478 = vld [vmem:[%s231 + $0x450] sm:$0xff]
        %v479 = vld [vmem:[%s231 + $0x458] sm:$0xff]
        %v480 = vld [vmem:[%s231 + $0x460] sm:$0xff]
        %v481 = vld [vmem:[%s231 + $0x468] sm:$0xff]
        %v482 = vld [vmem:[%s231 + $0x470] sm:$0xff]
        %v483 = vld [vmem:[%s231 + $0x478] sm:$0xff]
        %v484 = vld [vmem:[%s231 + $0x480] sm:$0xff]
        %v485 = vld [vmem:[%s231 + $0x488] sm:$0xff]
        %v486 = vld [vmem:[%s231 + $0x490] sm:$0xff]
        %v487 = vld [vmem:[%s231 + $0x498] sm:$0xff]
        %v488 = vld [vmem:[%s231 + $0x4a0] sm:$0xff]
        %v489 = vld [vmem:[%s231 + $0x4a8] sm:$0xff]
        %v490 = vld [vmem:[%s231 + $0x4b0] sm:$0xff]
        %v491 = vld [vmem:[%s231 + $0x4b8] sm:$0xff]
        %v492 = vld [vmem:[%s231 + $0x4c0] sm:$0xff]
        %v493 = vld [vmem:[%s231 + $0x4c8] sm:$0xff]
        %v494 = vld [vmem:[%s231 + $0x4d0] sm:$0xff]
        %v495 = vld [vmem:[%s231 + $0x4d8] sm:$0xff]
        %v496 = vld [vmem:[%s231 + $0x4e0] sm:$0xff]
        %v497 = vld [vmem:[%s231 + $0x4e8] sm:$0xff]
        %v498 = vld [vmem:[%s231 + $0x4f0] sm:$0xff]
        %v499 = vld [vmem:[%s231 + $0x4f8] sm:$0xff]
        %v500 = vld [vmem:[%s231 + $0x500] sm:$0xff]
        %v501 = vld [vmem:[%s231 + $0x508] sm:$0xff]
        %v502 = vld [vmem:[%s231 + $0x510] sm:$0xff]
        %v503 = vld [vmem:[%s231 + $0x518] sm:$0xff]
        %v504 = vld [vmem:[%s231 + $0x520] sm:$0xff]
        %v505 = vld [vmem:[%s231 + $0x528] sm:$0xff]
        %v506 = vld [vmem:[%s231 + $0x530] sm:$0xff]
        %v507 = vld [vmem:[%s231 + $0x538] sm:$0xff]
        %v508 = vld [vmem:[%s231 + $0x540] sm:$0xff]
        %v509 = vld [vmem:[%s231 + $0x548] sm:$0xff]
        %v510 = vld [vmem:[%s231 + $0x550] sm:$0xff]
        %v511 = vld [vmem:[%s231 + $0x558] sm:$0xff]
        %v512 = vld [vmem:[%s231 + $0x560] sm:$0xff]
        %v513 = vld [vmem:[%s231 + $0x568] sm:$0xff]
        %v514 = vld [vmem:[%s231 + $0x570] sm:$0xff]
        %v515 = vld [vmem:[%s231 + $0x578] sm:$0xff]
        %v516 = vld [vmem:[%s231 + $0x580] sm:$0xff]
        %v517 = vld [vmem:[%s231 + $0x588] sm:$0xff]
        %v518 = vld [vmem:[%s231 + $0x590] sm:$0xff]
        %v519 = vld [vmem:[%s231 + $0x598] sm:$0xff]
        %v520 = vld [vmem:[%s231 + $0x5a0] sm:$0xff]
        %v521 = vld [vmem:[%s231 + $0x5a8] sm:$0xff]
        %v522 = vld [vmem:[%s231 + $0x5b0] sm:$0xff]
        %v523 = vld [vmem:[%s231 + $0x5b8] sm:$0xff]
        %v524 = vld [vmem:[%s231 + $0x5c0] sm:$0xff]
        %v525 = vld [vmem:[%s231 + $0x5c8] sm:$0xff]
        %v526 = vld [vmem:[%s231 + $0x5d0] sm:$0xff]
        %v527 = vld [vmem:[%s231 + $0x5d8] sm:$0xff]
        %v528 = vld [vmem:[%s231 + $0x5e0] sm:$0xff]
        %v529 = vld [vmem:[%s231 + $0x5e8] sm:$0xff]
        %v530 = vld [vmem:[%s231 + $0x5f0] sm:$0xff]
        %v531 = vld [vmem:[%s231 + $0x5f8] sm:$0xff]
        %v532 = vld [vmem:[%s231 + $0x600] sm:$0xff]
        %v533 = vld [vmem:[%s231 + $0x608] sm:$0xff]
        %v534 = vld [vmem:[%s231 + $0x610] sm:$0xff]
        %v535 = vld [vmem:[%s231 + $0x618] sm:$0xff]
        %v536 = vld [vmem:[%s231 + $0x620] sm:$0xff]
        %v537 = vld [vmem:[%s231 + $0x628] sm:$0xff]
        %v538 = vld [vmem:[%s231 + $0x630] sm:$0xff]
        %v539 = vld [vmem:[%s231 + $0x638] sm:$0xff]
        %v540 = vld [vmem:[%s231 + $0x640] sm:$0xff]
        %v541 = vld [vmem:[%s231 + $0x648] sm:$0xff]
        %v542 = vld [vmem:[%s231 + $0x650] sm:$0xff]
        %v543 = vld [vmem:[%s231 + $0x658] sm:$0xff]
        %v544 = vld [vmem:[%s231 + $0x660] sm:$0xff]
        %v545 = vld [vmem:[%s231 + $0x668] sm:$0xff]
        %v546 = vld [vmem:[%s231 + $0x670] sm:$0xff]
        %v547 = vld [vmem:[%s231 + $0x678] sm:$0xff]
        %v548 = vld [vmem:[%s231 + $0x680] sm:$0xff]
        %v549 = vld [vmem:[%s231 + $0x688] sm:$0xff]
        %v550 = vld [vmem:[%s231 + $0x690] sm:$0xff]
        %v551 = vld [vmem:[%s231 + $0x698] sm:$0xff]
        %v552 = vld [vmem:[%s231 + $0x6a0] sm:$0xff]
        %v553 = vld [vmem:[%s231 + $0x6a8] sm:$0xff]
        %v554 = vld [vmem:[%s231 + $0x6b0] sm:$0xff]
        %v555 = vld [vmem:[%s231 + $0x6b8] sm:$0xff]
        %v556 = vld [vmem:[%s231 + $0x6c0] sm:$0xff]
        %v557 = vld [vmem:[%s231 + $0x6c8] sm:$0xff]
        %v558 = vld [vmem:[%s231 + $0x6d0] sm:$0xff]
        %v559 = vld [vmem:[%s231 + $0x6d8] sm:$0xff]
        %v560 = vld [vmem:[%s231 + $0x6e0] sm:$0xff]
        %v561 = vld [vmem:[%s231 + $0x6e8] sm:$0xff]
        %v562 = vld [vmem:[%s231 + $0x6f0] sm:$0xff]
        %v563 = vld [vmem:[%s231 + $0x6f8] sm:$0xff]
        %v564 = vld [vmem:[%s231 + $0x700] sm:$0xff]
        %v565 = vld [vmem:[%s231 + $0x708] sm:$0xff]
        %v566 = vld [vmem:[%s231 + $0x710] sm:$0xff]
        %v567 = vld [vmem:[%s231 + $0x718] sm:$0xff]
        %v568 = vld [vmem:[%s231 + $0x720] sm:$0xff]
        %v569 = vld [vmem:[%s231 + $0x728] sm:$0xff]
        %v570 = vld [vmem:[%s231 + $0x730] sm:$0xff]
        %v571 = vld [vmem:[%s231 + $0x738] sm:$0xff]
        %v572 = vld [vmem:[%s231 + $0x740] sm:$0xff]
        %v573 = vld [vmem:[%s231 + $0x748] sm:$0xff]
        %v574 = vld [vmem:[%s231 + $0x750] sm:$0xff]
        %v575 = vld [vmem:[%s231 + $0x758] sm:$0xff]
        %v576 = vld [vmem:[%s231 + $0x760] sm:$0xff]
        %v577 = vld [vmem:[%s231 + $0x768] sm:$0xff]
        %v578 = vld [vmem:[%s231 + $0x770] sm:$0xff]
        %v579 = vld [vmem:[%s231 + $0x778] sm:$0xff]
        %v580 = vld [vmem:[%s231 + $0x780] sm:$0xff]
        %v581 = vld [vmem:[%s231 + $0x788] sm:$0xff]
        %v582 = vld [vmem:[%s231 + $0x790] sm:$0xff]
        %v583 = vld [vmem:[%s231 + $0x798] sm:$0xff]
        %v584 = vld [vmem:[%s231 + $0x7a0] sm:$0xff]
        %v585 = vld [vmem:[%s231 + $0x7a8] sm:$0xff]
        %v586 = vld [vmem:[%s231 + $0x7b0] sm:$0xff]
        %v587 = vld [vmem:[%s231 + $0x7b8] sm:$0xff]
        %v588 = vld [vmem:[%s231 + $0x7c0] sm:$0xff]
        %v589 = vld [vmem:[%s231 + $0x7c8] sm:$0xff]
        %v590 = vld [vmem:[%s231 + $0x7d0] sm:$0xff]
        %v591 = vld [vmem:[%s231 + $0x7d8] sm:$0xff]
        %v592 = vld [vmem:[%s231 + $0x7e0] sm:$0xff]
        %v593 = vld [vmem:[%s231 + $0x7e8] sm:$0xff]
        %v594 = vld [vmem:[%s231 + $0x7f0] sm:$0xff]
        %v595 = vld [vmem:[%s231 + $0x7f8] sm:$0xff]
        %v596 = vld [vmem:[%s231 + $0x800] sm:$0xff]
        %v597 = vld [vmem:[%s231 + $0x808] sm:$0xff]
        %v598 = vld [vmem:[%s231 + $0x810] sm:$0xff]
        %v599 = vld [vmem:[%s231 + $0x818] sm:$0xff]
        %v600 = vld [vmem:[%s231 + $0x820] sm:$0xff]
        %v601 = vld [vmem:[%s231 + $0x828] sm:$0xff]
        %v602 = vld [vmem:[%s231 + $0x830] sm:$0xff]
        %v603 = vld [vmem:[%s231 + $0x838] sm:$0xff]
        %v604 = vld [vmem:[%s231 + $0x840] sm:$0xff]
        %v605 = vld [vmem:[%s231 + $0x848] sm:$0xff]
        %v606 = vld [vmem:[%s231 + $0x850] sm:$0xff]
        %v607 = vld [vmem:[%s231 + $0x858] sm:$0xff]
        %v608 = vld [vmem:[%s231 + $0x860] sm:$0xff]
        %v609 = vld [vmem:[%s231 + $0x868] sm:$0xff]
        %v610 = vld [vmem:[%s231 + $0x870] sm:$0xff]
        %v611 = vld [vmem:[%s231 + $0x878] sm:$0xff]
        %v612 = vld [vmem:[%s231 + $0x880] sm:$0xff]
        %v613 = vld [vmem:[%s231 + $0x888] sm:$0xff]
        %v614 = vld [vmem:[%s231 + $0x890] sm:$0xff]
        %v615 = vld [vmem:[%s231 + $0x898] sm:$0xff]
        %v616 = vld [vmem:[%s231 + $0x8a0] sm:$0xff]
        %v617 = vld [vmem:[%s231 + $0x8a8] sm:$0xff]
        %v618 = vld [vmem:[%s231 + $0x8b0] sm:$0xff]
        %v619 = vld [vmem:[%s231 + $0x8b8] sm:$0xff]
        %v620 = vld [vmem:[%s231 + $0x8c0] sm:$0xff]
        %v621 = vld [vmem:[%s231 + $0x8c8] sm:$0xff]
        %v622 = vld [vmem:[%s231 + $0x8d0] sm:$0xff]
        %v623 = vld [vmem:[%s231 + $0x8d8] sm:$0xff]
        %v624 = vld [vmem:[%s231 + $0x8e0] sm:$0xff]
        %v625 = vld [vmem:[%s231 + $0x8e8] sm:$0xff]
        %v626 = vld [vmem:[%s231 + $0x8f0] sm:$0xff]
        %v627 = vld [vmem:[%s231 + $0x8f8] sm:$0xff]
        %v628 = vld [vmem:[%s231 + $0x900] sm:$0xff]
        %v629 = vld [vmem:[%s231 + $0x908] sm:$0xff]
        %v630 = vld [vmem:[%s231 + $0x910] sm:$0xff]
        %v631 = vld [vmem:[%s231 + $0x918] sm:$0xff]
        %v632 = vld [vmem:[%s231 + $0x920] sm:$0xff]
        %v633 = vld [vmem:[%s231 + $0x928] sm:$0xff]
        %v634 = vld [vmem:[%s231 + $0x930] sm:$0xff]
        %v635 = vld [vmem:[%s231 + $0x938] sm:$0xff]
        %v636 = vld [vmem:[%s231 + $0x940] sm:$0xff]
        %v637 = vld [vmem:[%s231 + $0x948] sm:$0xff]
        %v638 = vld [vmem:[%s231 + $0x950] sm:$0xff]
        %v639 = vld [vmem:[%s231 + $0x958] sm:$0xff]
        %v640 = vld [vmem:[%s231 + $0x960] sm:$0xff]
        %v641 = vld [vmem:[%s231 + $0x968] sm:$0xff]
        %v642 = vld [vmem:[%s231 + $0x970] sm:$0xff]
        %v643 = vld [vmem:[%s231 + $0x978] sm:$0xff]
        %v644 = vld [vmem:[%s231 + $0x980] sm:$0xff]
        %v645 = vld [vmem:[%s231 + $0x988] sm:$0xff]
        %v646 = vld [vmem:[%s231 + $0x990] sm:$0xff]
        %v647 = vld [vmem:[%s231 + $0x998] sm:$0xff]
        %v648 = vld [vmem:[%s231 + $0x9a0] sm:$0xff]
        %v649 = vld [vmem:[%s231 + $0x9a8] sm:$0xff]
        %v650 = vld [vmem:[%s231 + $0x9b0] sm:$0xff]
        %v651 = vld [vmem:[%s231 + $0x9b8] sm:$0xff]
        %v652 = vld [vmem:[%s231 + $0x9c0] sm:$0xff]
        %v653 = vld [vmem:[%s231 + $0x9c8] sm:$0xff]
        %v654 = vld [vmem:[%s231 + $0x9d0] sm:$0xff]
        %v655 = vld [vmem:[%s231 + $0x9d8] sm:$0xff]
        %v656 = vld [vmem:[%s231 + $0x9e0] sm:$0xff]
        %v657 = vld [vmem:[%s231 + $0x9e8] sm:$0xff]
        %v658 = vld [vmem:[%s231 + $0x9f0] sm:$0xff]
        %v659 = vld [vmem:[%s231 + $0x9f8] sm:$0xff]
        %v660 = vld [vmem:[%s231 + $0xa00] sm:$0xff]
        %v661 = vld [vmem:[%s231 + $0xa08] sm:$0xff]
        %v662 = vld [vmem:[%s231 + $0xa10] sm:$0xff]
        %v663 = vld [vmem:[%s231 + $0xa18] sm:$0xff]
        %v664 = vld [vmem:[%s231 + $0xa20] sm:$0xff]
        %v665 = vld [vmem:[%s231 + $0xa28] sm:$0xff]
        %v666 = vld [vmem:[%s231 + $0xa30] sm:$0xff]
        %v667 = vld [vmem:[%s231 + $0xa38] sm:$0xff]
        %v668 = vld [vmem:[%s231 + $0xa40] sm:$0xff]
        %v669 = vld [vmem:[%s231 + $0xa48] sm:$0xff]
        %v670 = vld [vmem:[%s231 + $0xa50] sm:$0xff]
        %v671 = vld [vmem:[%s231 + $0xa58] sm:$0xff]
        %v672 = vld [vmem:[%s231 + $0xa60] sm:$0xff]
        %v673 = vld [vmem:[%s231 + $0xa68] sm:$0xff]
        %v674 = vld [vmem:[%s231 + $0xa70] sm:$0xff]
        %v675 = vld [vmem:[%s231 + $0xa78] sm:$0xff]
        %v676 = vld [vmem:[%s231 + $0xa80] sm:$0xff]
        %v677 = vld [vmem:[%s231 + $0xa88] sm:$0xff]
        %v678 = vld [vmem:[%s231 + $0xa90] sm:$0xff]
        %v679 = vld [vmem:[%s231 + $0xa98] sm:$0xff]
        %v680 = vld [vmem:[%s231 + $0xaa0] sm:$0xff]
        %v681 = vld [vmem:[%s231 + $0xaa8] sm:$0xff]
        %v682 = vld [vmem:[%s231 + $0xab0] sm:$0xff]
        %v683 = vld [vmem:[%s231 + $0xab8] sm:$0xff]
        %v684 = vld [vmem:[%s231 + $0xac0] sm:$0xff]
        %v685 = vld [vmem:[%s231 + $0xac8] sm:$0xff]
        %v686 = vld [vmem:[%s231 + $0xad0] sm:$0xff]
        %v687 = vld [vmem:[%s231 + $0xad8] sm:$0xff]
        %v688 = vld [vmem:[%s231 + $0xae0] sm:$0xff]
        %v689 = vld [vmem:[%s231 + $0xae8] sm:$0xff]
        %v690 = vld [vmem:[%s231 + $0xaf0] sm:$0xff]
        %v691 = vld [vmem:[%s231 + $0xaf8] sm:$0xff]
        %v692 = vld [vmem:[%s231 + $0xb00] sm:$0xff]
        %v693 = vld [vmem:[%s231 + $0xb08] sm:$0xff]
        %v694 = vld [vmem:[%s231 + $0xb10] sm:$0xff]
        %v695 = vld [vmem:[%s231 + $0xb18] sm:$0xff]
        %v696 = vld [vmem:[%s231 + $0xb20] sm:$0xff]
        %v697 = vld [vmem:[%s231 + $0xb28] sm:$0xff]
        %v698 = vld [vmem:[%s231 + $0xb30] sm:$0xff]
        %v699 = vld [vmem:[%s231 + $0xb38] sm:$0xff]
        %v700 = vld [vmem:[%s231 + $0xb40] sm:$0xff]
        %v701 = vld [vmem:[%s231 + $0xb48] sm:$0xff]
        %v702 = vld [vmem:[%s231 + $0xb50] sm:$0xff]
        %v703 = vld [vmem:[%s231 + $0xb58] sm:$0xff]
        %v704 = vld [vmem:[%s231 + $0xb60] sm:$0xff]
        %v705 = vld [vmem:[%s231 + $0xb68] sm:$0xff]
        %v706 = vld [vmem:[%s231 + $0xb70] sm:$0xff]
        %v707 = vld [vmem:[%s231 + $0xb78] sm:$0xff]
        %v708 = vld [vmem:[%s231 + $0xb80] sm:$0xff]
        %v709 = vld [vmem:[%s231 + $0xb88] sm:$0xff]
        %v710 = vld [vmem:[%s231 + $0xb90] sm:$0xff]
        %v711 = vld [vmem:[%s231 + $0xb98] sm:$0xff]
        %v712 = vld [vmem:[%s231 + $0xba0] sm:$0xff]
        %v713 = vld [vmem:[%s231 + $0xba8] sm:$0xff]
        %v714 = vld [vmem:[%s231 + $0xbb0] sm:$0xff]
        %v715 = vld [vmem:[%s231 + $0xbb8] sm:$0xff]
        %v716 = vld [vmem:[%s231 + $0xbc0] sm:$0xff]
        %v717 = vld [vmem:[%s231 + $0xbc8] sm:$0xff]
        %v718 = vld [vmem:[%s231 + $0xbd0] sm:$0xff]
        %v719 = vld [vmem:[%s231 + $0xbd8] sm:$0xff]
        %v720 = vld [vmem:[%s231 + $0xbe0] sm:$0xff]
        %v721 = vld [vmem:[%s231 + $0xbe8] sm:$0xff]
        %v722 = vld [vmem:[%s231 + $0xbf0] sm:$0xff]
        %v723 = vld [vmem:[%s231 + $0xbf8] sm:$0xff]
        %v724 = vld [vmem:[%s231 + $0xc00] sm:$0xff]
        %v725 = vld [vmem:[%s231 + $0xc08] sm:$0xff]
        %v726 = vld [vmem:[%s231 + $0xc10] sm:$0xff]
        %v727 = vld [vmem:[%s231 + $0xc18] sm:$0xff]
        %v728 = vld [vmem:[%s231 + $0xc20] sm:$0xff]
        %v729 = vld [vmem:[%s231 + $0xc28] sm:$0xff]
        %v730 = vld [vmem:[%s231 + $0xc30] sm:$0xff]
        %v731 = vld [vmem:[%s231 + $0xc38] sm:$0xff]
        %v732 = vld [vmem:[%s231 + $0xc40] sm:$0xff]
        %v733 = vld [vmem:[%s231 + $0xc48] sm:$0xff]
        %v734 = vld [vmem:[%s231 + $0xc50] sm:$0xff]
        %v735 = vld [vmem:[%s231 + $0xc58] sm:$0xff]
        %v736 = vld [vmem:[%s231 + $0xc60] sm:$0xff]
        %v737 = vld [vmem:[%s231 + $0xc68] sm:$0xff]
        %v738 = vld [vmem:[%s231 + $0xc70] sm:$0xff]
        %v739 = vld [vmem:[%s231 + $0xc78] sm:$0xff]
        %v740 = vld [vmem:[%s231 + $0xc80] sm:$0xff]
        %v741 = vld [vmem:[%s231 + $0xc88] sm:$0xff]
        %v742 = vld [vmem:[%s231 + $0xc90] sm:$0xff]
        %v743 = vld [vmem:[%s231 + $0xc98] sm:$0xff]
        %v744 = vld [vmem:[%s231 + $0xca0] sm:$0xff]
        %v745 = vld [vmem:[%s231 + $0xca8] sm:$0xff]
        %v746 = vld [vmem:[%s231 + $0xcb0] sm:$0xff]
        %v747 = vld [vmem:[%s231 + $0xcb8] sm:$0xff]
        %v748 = vld [vmem:[%s231 + $0xcc0] sm:$0xff]
        %v749 = vld [vmem:[%s231 + $0xcc8] sm:$0xff]
        %v750 = vld [vmem:[%s231 + $0xcd0] sm:$0xff]
        %v751 = vld [vmem:[%s231 + $0xcd8] sm:$0xff]
        %v752 = vld [vmem:[%s231 + $0xce0] sm:$0xff]
        %v753 = vld [vmem:[%s231 + $0xce8] sm:$0xff]
        %v754 = vld [vmem:[%s231 + $0xcf0] sm:$0xff]
        %v755 = vld [vmem:[%s231 + $0xcf8] sm:$0xff]
        %v756 = vld [vmem:[%s231 + $0xd00] sm:$0xff]
        %v757 = vld [vmem:[%s231 + $0xd08] sm:$0xff]
        %v758 = vld [vmem:[%s231 + $0xd10] sm:$0xff]
        %v759 = vld [vmem:[%s231 + $0xd18] sm:$0xff]
        %v760 = vld [vmem:[%s231 + $0xd20] sm:$0xff]
        %v761 = vld [vmem:[%s231 + $0xd28] sm:$0xff]
        %v762 = vld [vmem:[%s231 + $0xd30] sm:$0xff]
        %v763 = vld [vmem:[%s231 + $0xd38] sm:$0xff]
        %v764 = vld [vmem:[%s231 + $0xd40] sm:$0xff]
        %v765 = vld [vmem:[%s231 + $0xd48] sm:$0xff]
        %v766 = vld [vmem:[%s231 + $0xd50] sm:$0xff]
        %v767 = vld [vmem:[%s231 + $0xd58] sm:$0xff]
        %v768 = vld [vmem:[%s231 + $0xd60] sm:$0xff]
        %v769 = vld [vmem:[%s231 + $0xd68] sm:$0xff]
        %v770 = vld [vmem:[%s231 + $0xd70] sm:$0xff]
        %v771 = vld [vmem:[%s231 + $0xd78] sm:$0xff]
        %v772 = vld [vmem:[%s231 + $0xd80] sm:$0xff]
        %v773 = vld [vmem:[%s231 + $0xd88] sm:$0xff]
        %v774 = vld [vmem:[%s231 + $0xd90] sm:$0xff]
        %v775 = vld [vmem:[%s231 + $0xd98] sm:$0xff]
        %v776 = vld [vmem:[%s231 + $0xda0] sm:$0xff]
        %v777 = vld [vmem:[%s231 + $0xda8] sm:$0xff]
        %v778 = vld [vmem:[%s231 + $0xdb0] sm:$0xff]
        %v779 = vld [vmem:[%s231 + $0xdb8] sm:$0xff]
        %v780 = vld [vmem:[%s231 + $0xdc0] sm:$0xff]
        %v781 = vld [vmem:[%s231 + $0xdc8] sm:$0xff]
        %v782 = vld [vmem:[%s231 + $0xdd0] sm:$0xff]
        %v783 = vld [vmem:[%s231 + $0xdd8] sm:$0xff]
        %v784 = vld [vmem:[%s231 + $0xde0] sm:$0xff]
        %v785 = vld [vmem:[%s231 + $0xde8] sm:$0xff]
        %v786 = vld [vmem:[%s231 + $0xdf0] sm:$0xff]
        %v787 = vld [vmem:[%s231 + $0xdf8] sm:$0xff]
        %v788 = vld [vmem:[%s231 + $0xe00] sm:$0xff]
        %v789 = vld [vmem:[%s231 + $0xe08] sm:$0xff]
        %v790 = vld [vmem:[%s231 + $0xe10] sm:$0xff]
        %v791 = vld [vmem:[%s231 + $0xe18] sm:$0xff]
        %v792 = vld [vmem:[%s231 + $0xe20] sm:$0xff]
        %v793 = vld [vmem:[%s231 + $0xe28] sm:$0xff]
        %v794 = vld [vmem:[%s231 + $0xe30] sm:$0xff]
        %v795 = vld [vmem:[%s231 + $0xe38] sm:$0xff]
        %v796 = vld [vmem:[%s231 + $0xe40] sm:$0xff]
        %v797 = vld [vmem:[%s231 + $0xe48] sm:$0xff]
        %v798 = vld [vmem:[%s231 + $0xe50] sm:$0xff]
        %v799 = vld [vmem:[%s231 + $0xe58] sm:$0xff]
        %v800 = vld [vmem:[%s231 + $0xe60] sm:$0xff]
        %v801 = vld [vmem:[%s231 + $0xe68] sm:$0xff]
        %v802 = vld [vmem:[%s231 + $0xe70] sm:$0xff]
        %v803 = vld [vmem:[%s231 + $0xe78] sm:$0xff]
        %v804 = vld [vmem:[%s231 + $0xe80] sm:$0xff]
        %v805 = vld [vmem:[%s231 + $0xe88] sm:$0xff]
        %v806 = vld [vmem:[%s231 + $0xe90] sm:$0xff]
        %v807 = vld [vmem:[%s231 + $0xe98] sm:$0xff]
        %v808 = vld [vmem:[%s231 + $0xea0] sm:$0xff]
        %v809 = vld [vmem:[%s231 + $0xea8] sm:$0xff]
        %v810 = vld [vmem:[%s231 + $0xeb0] sm:$0xff]
        %v811 = vld [vmem:[%s231 + $0xeb8] sm:$0xff]
        %v812 = vld [vmem:[%s231 + $0xec0] sm:$0xff]
        %v813 = vld [vmem:[%s231 + $0xec8] sm:$0xff]
        %v814 = vld [vmem:[%s231 + $0xed0] sm:$0xff]
        %v815 = vld [vmem:[%s231 + $0xed8] sm:$0xff]
        %v816 = vld [vmem:[%s231 + $0xee0] sm:$0xff]
        %v817 = vld [vmem:[%s231 + $0xee8] sm:$0xff]
        %v818 = vld [vmem:[%s231 + $0xef0] sm:$0xff]
        %v819 = vld [vmem:[%s231 + $0xef8] sm:$0xff]
        %v820 = vld [vmem:[%s231 + $0xf00] sm:$0xff]
        %v821 = vld [vmem:[%s231 + $0xf08] sm:$0xff]
        %v822 = vld [vmem:[%s231 + $0xf10] sm:$0xff]
        %v823 = vld [vmem:[%s231 + $0xf18] sm:$0xff]
        %v824 = vld [vmem:[%s231 + $0xf20] sm:$0xff]
        %v825 = vld [vmem:[%s231 + $0xf28] sm:$0xff]
        %v826 = vld [vmem:[%s231 + $0xf30] sm:$0xff]
        %v827 = vld [vmem:[%s231 + $0xf38] sm:$0xff]
        %v828 = vld [vmem:[%s231 + $0xf40] sm:$0xff]
        %v829 = vld [vmem:[%s231 + $0xf48] sm:$0xff]
        %v830 = vld [vmem:[%s231 + $0xf50] sm:$0xff]
        %v831 = vld [vmem:[%s231 + $0xf58] sm:$0xff]
        %v832 = vld [vmem:[%s231 + $0xf60] sm:$0xff]
        %v833 = vld [vmem:[%s231 + $0xf68] sm:$0xff]
        %v834 = vld [vmem:[%s231 + $0xf70] sm:$0xff]
        %v835 = vld [vmem:[%s231 + $0xf78] sm:$0xff]
        %v836 = vld [vmem:[%s231 + $0xf80] sm:$0xff]
        %v837 = vld [vmem:[%s231 + $0xf88] sm:$0xff]
        %v838 = vld [vmem:[%s231 + $0xf90] sm:$0xff]
        %v839 = vld [vmem:[%s231 + $0xf98] sm:$0xff]
        %v840 = vld [vmem:[%s231 + $0xfa0] sm:$0xff]
        %v841 = vld [vmem:[%s231 + $0xfa8] sm:$0xff]
        %v842 = vld [vmem:[%s231 + $0xfb0] sm:$0xff]
        %v843 = vld [vmem:[%s231 + $0xfb8] sm:$0xff]
        %v844 = vld [vmem:[%s231 + $0xfc0] sm:$0xff]
        %v845 = vld [vmem:[%s231 + $0xfc8] sm:$0xff]
        %v846 = vld [vmem:[%s231 + $0xfd0] sm:$0xff]
        %v847 = vld [vmem:[%s231 + $0xfd8] sm:$0xff]
        %v848 = vld [vmem:[%s231 + $0xfe0] sm:$0xff]
        %v849 = vld [vmem:[%s231 + $0xfe8] sm:$0xff]
        %v850 = vld [vmem:[%s231 + $0xff0] sm:$0xff]
        %v851 = vld [vmem:[%s231 + $0xff8] sm:$0xff]
        %v852 = vld [vmem:[%s241] sm:$0xf]
        %v854 = vperm.slane %v852, 0
        %v855 = vperm.slane %v852, 1
        %v856 = vperm.slane %v852, 2
        %v857 = vperm.slane %v852, 3
        %v1374 = vunpack.c.l.b16 %v340
        %v1375 = vunpack.c.h.b16 %v340
        %v1376 = vunpack.c.l.b16 %v341
        %v1377 = vunpack.c.h.b16 %v341
        %v1378 = vunpack.c.l.b16 %v342
        %v1379 = vunpack.c.h.b16 %v342
        %v1380 = vunpack.c.l.b16 %v343
        %v1381 = vunpack.c.h.b16 %v343
        %v1382 = vunpack.c.l.b16 %v344
        %v1383 = vunpack.c.h.b16 %v344
        %v1384 = vunpack.c.l.b16 %v345
        %v1385 = vunpack.c.h.b16 %v345
        %v1386 = vunpack.c.l.b16 %v346
        %v1387 = vunpack.c.h.b16 %v346
        %v1388 = vunpack.c.l.b16 %v347
        %v1389 = vunpack.c.h.b16 %v347
        %v1390 = vunpack.c.l.b16 %v348
        %v1391 = vunpack.c.h.b16 %v348
        %v1392 = vunpack.c.l.b16 %v349
        %v1393 = vunpack.c.h.b16 %v349
        %v1394 = vunpack.c.l.b16 %v350
        %v1395 = vunpack.c.h.b16 %v350
        %v1396 = vunpack.c.l.b16 %v351
        %v1397 = vunpack.c.h.b16 %v351
        %v1398 = vunpack.c.l.b16 %v352
        %v1399 = vunpack.c.h.b16 %v352
        %v1400 = vunpack.c.l.b16 %v353
        %v1401 = vunpack.c.h.b16 %v353
        %v1402 = vunpack.c.l.b16 %v354
        %v1403 = vunpack.c.h.b16 %v354
        %v1404 = vunpack.c.l.b16 %v355
        %v1405 = vunpack.c.h.b16 %v355
        %v1406 = vunpack.c.l.b16 %v356
        %v1407 = vunpack.c.h.b16 %v356
        %v1408 = vunpack.c.l.b16 %v357
        %v1409 = vunpack.c.h.b16 %v357
        %v1410 = vunpack.c.l.b16 %v358
        %v1411 = vunpack.c.h.b16 %v358
        %v1412 = vunpack.c.l.b16 %v359
        %v1413 = vunpack.c.h.b16 %v359
        %v1414 = vunpack.c.l.b16 %v360
        %v1415 = vunpack.c.h.b16 %v360
        %v1416 = vunpack.c.l.b16 %v361
        %v1417 = vunpack.c.h.b16 %v361
        %v1418 = vunpack.c.l.b16 %v362
        %v1419 = vunpack.c.h.b16 %v362
        %v1420 = vunpack.c.l.b16 %v363
        %v1421 = vunpack.c.h.b16 %v363
        %v1422 = vunpack.c.l.b16 %v364
        %v1423 = vunpack.c.h.b16 %v364
        %v1424 = vunpack.c.l.b16 %v365
        %v1425 = vunpack.c.h.b16 %v365
        %v1426 = vunpack.c.l.b16 %v366
        %v1427 = vunpack.c.h.b16 %v366
        %v1428 = vunpack.c.l.b16 %v367
        %v1429 = vunpack.c.h.b16 %v367
        %v1430 = vunpack.c.l.b16 %v368
        %v1431 = vunpack.c.h.b16 %v368
        %v1432 = vunpack.c.l.b16 %v369
        %v1433 = vunpack.c.h.b16 %v369
        %v1434 = vunpack.c.l.b16 %v370
        %v1435 = vunpack.c.h.b16 %v370
        %v1436 = vunpack.c.l.b16 %v371
        %v1437 = vunpack.c.h.b16 %v371
        %v1438 = vunpack.c.l.b16 %v372
        %v1439 = vunpack.c.h.b16 %v372
        %v1440 = vunpack.c.l.b16 %v373
        %v1441 = vunpack.c.h.b16 %v373
        %v1442 = vunpack.c.l.b16 %v374
        %v1443 = vunpack.c.h.b16 %v374
        %v1444 = vunpack.c.l.b16 %v375
        %v1445 = vunpack.c.h.b16 %v375
        %v1446 = vunpack.c.l.b16 %v376
        %v1447 = vunpack.c.h.b16 %v376
        %v1448 = vunpack.c.l.b16 %v377
        %v1449 = vunpack.c.h.b16 %v377
        %v1450 = vunpack.c.l.b16 %v378
        %v1451 = vunpack.c.h.b16 %v378
        %v1452 = vunpack.c.l.b16 %v379
        %v1453 = vunpack.c.h.b16 %v379
        %v1454 = vunpack.c.l.b16 %v380
        %v1455 = vunpack.c.h.b16 %v380
        %v1456 = vunpack.c.l.b16 %v381
        %v1457 = vunpack.c.h.b16 %v381
        %v1458 = vunpack.c.l.b16 %v382
        %v1459 = vunpack.c.h.b16 %v382
        %v1460 = vunpack.c.l.b16 %v383
        %v1461 = vunpack.c.h.b16 %v383
        %v1462 = vunpack.c.l.b16 %v384
        %v1463 = vunpack.c.h.b16 %v384
        %v1464 = vunpack.c.l.b16 %v385
        %v1465 = vunpack.c.h.b16 %v385
        %v1466 = vunpack.c.l.b16 %v386
        %v1467 = vunpack.c.h.b16 %v386
        %v1468 = vunpack.c.l.b16 %v387
        %v1469 = vunpack.c.h.b16 %v387
        %v1470 = vunpack.c.l.b16 %v388
        %v1471 = vunpack.c.h.b16 %v388
        %v1472 = vunpack.c.l.b16 %v389
        %v1473 = vunpack.c.h.b16 %v389
        %v1474 = vunpack.c.l.b16 %v390
        %v1475 = vunpack.c.h.b16 %v390
        %v1476 = vunpack.c.l.b16 %v391
        %v1477 = vunpack.c.h.b16 %v391
        %v1478 = vunpack.c.l.b16 %v392
        %v1479 = vunpack.c.h.b16 %v392
        %v1480 = vunpack.c.l.b16 %v393
        %v1481 = vunpack.c.h.b16 %v393
        %v1482 = vunpack.c.l.b16 %v394
        %v1483 = vunpack.c.h.b16 %v394
        %v1484 = vunpack.c.l.b16 %v395
        %v1485 = vunpack.c.h.b16 %v395
        %v1486 = vunpack.c.l.b16 %v396
        %v1487 = vunpack.c.h.b16 %v396
        %v1488 = vunpack.c.l.b16 %v397
        %v1489 = vunpack.c.h.b16 %v397
        %v1490 = vunpack.c.l.b16 %v398
        %v1491 = vunpack.c.h.b16 %v398
        %v1492 = vunpack.c.l.b16 %v399
        %v1493 = vunpack.c.h.b16 %v399
        %v1494 = vunpack.c.l.b16 %v400
        %v1495 = vunpack.c.h.b16 %v400
        %v1496 = vunpack.c.l.b16 %v401
        %v1497 = vunpack.c.h.b16 %v401
        %v1498 = vunpack.c.l.b16 %v402
        %v1499 = vunpack.c.h.b16 %v402
        %v1500 = vunpack.c.l.b16 %v403
        %v1501 = vunpack.c.h.b16 %v403
        %v1502 = vunpack.c.l.b16 %v404
        %v1503 = vunpack.c.h.b16 %v404
        %v1504 = vunpack.c.l.b16 %v405
        %v1505 = vunpack.c.h.b16 %v405
        %v1506 = vunpack.c.l.b16 %v406
        %v1507 = vunpack.c.h.b16 %v406
        %v1508 = vunpack.c.l.b16 %v407
        %v1509 = vunpack.c.h.b16 %v407
        %v1510 = vunpack.c.l.b16 %v408
        %v1511 = vunpack.c.h.b16 %v408
        %v1512 = vunpack.c.l.b16 %v409
        %v1513 = vunpack.c.h.b16 %v409
        %v1514 = vunpack.c.l.b16 %v410
        %v1515 = vunpack.c.h.b16 %v410
        %v1516 = vunpack.c.l.b16 %v411
        %v1517 = vunpack.c.h.b16 %v411
        %v1518 = vunpack.c.l.b16 %v412
        %v1519 = vunpack.c.h.b16 %v412
        %v1520 = vunpack.c.l.b16 %v413
        %v1521 = vunpack.c.h.b16 %v413
        %v1522 = vunpack.c.l.b16 %v414
        %v1523 = vunpack.c.h.b16 %v414
        %v1524 = vunpack.c.l.b16 %v415
        %v1525 = vunpack.c.h.b16 %v415
        %v1526 = vunpack.c.l.b16 %v416
        %v1527 = vunpack.c.h.b16 %v416
        %v1528 = vunpack.c.l.b16 %v417
        %v1529 = vunpack.c.h.b16 %v417
        %v1530 = vunpack.c.l.b16 %v418
        %v1531 = vunpack.c.h.b16 %v418
        %v1532 = vunpack.c.l.b16 %v419
        %v1533 = vunpack.c.h.b16 %v419
        %v1534 = vunpack.c.l.b16 %v420
        %v1535 = vunpack.c.h.b16 %v420
        %v1536 = vunpack.c.l.b16 %v421
        %v1537 = vunpack.c.h.b16 %v421
        %v1538 = vunpack.c.l.b16 %v422
        %v1539 = vunpack.c.h.b16 %v422
        %v1540 = vunpack.c.l.b16 %v423
        %v1541 = vunpack.c.h.b16 %v423
        %v1542 = vunpack.c.l.b16 %v424
        %v1543 = vunpack.c.h.b16 %v424
        %v1544 = vunpack.c.l.b16 %v425
        %v1545 = vunpack.c.h.b16 %v425
        %v1546 = vunpack.c.l.b16 %v426
        %v1547 = vunpack.c.h.b16 %v426
        %v1548 = vunpack.c.l.b16 %v427
        %v1549 = vunpack.c.h.b16 %v427
        %v1550 = vunpack.c.l.b16 %v428
        %v1551 = vunpack.c.h.b16 %v428
        %v1552 = vunpack.c.l.b16 %v429
        %v1553 = vunpack.c.h.b16 %v429
        %v1554 = vunpack.c.l.b16 %v430
        %v1555 = vunpack.c.h.b16 %v430
        %v1556 = vunpack.c.l.b16 %v431
        %v1557 = vunpack.c.h.b16 %v431
        %v1558 = vunpack.c.l.b16 %v432
        %v1559 = vunpack.c.h.b16 %v432
        %v1560 = vunpack.c.l.b16 %v433
        %v1561 = vunpack.c.h.b16 %v433
        %v1562 = vunpack.c.l.b16 %v434
        %v1563 = vunpack.c.h.b16 %v434
        %v1564 = vunpack.c.l.b16 %v435
        %v1565 = vunpack.c.h.b16 %v435
        %v1566 = vunpack.c.l.b16 %v436
        %v1567 = vunpack.c.h.b16 %v436
        %v1568 = vunpack.c.l.b16 %v437
        %v1569 = vunpack.c.h.b16 %v437
        %v1570 = vunpack.c.l.b16 %v438
        %v1571 = vunpack.c.h.b16 %v438
        %v1572 = vunpack.c.l.b16 %v439
        %v1573 = vunpack.c.h.b16 %v439
        %v1574 = vunpack.c.l.b16 %v440
        %v1575 = vunpack.c.h.b16 %v440
        %v1576 = vunpack.c.l.b16 %v441
        %v1577 = vunpack.c.h.b16 %v441
        %v1578 = vunpack.c.l.b16 %v442
        %v1579 = vunpack.c.h.b16 %v442
        %v1580 = vunpack.c.l.b16 %v443
        %v1581 = vunpack.c.h.b16 %v443
        %v1582 = vunpack.c.l.b16 %v444
        %v1583 = vunpack.c.h.b16 %v444
        %v1584 = vunpack.c.l.b16 %v445
        %v1585 = vunpack.c.h.b16 %v445
        %v1586 = vunpack.c.l.b16 %v446
        %v1587 = vunpack.c.h.b16 %v446
        %v1588 = vunpack.c.l.b16 %v447
        %v1589 = vunpack.c.h.b16 %v447
        %v1590 = vunpack.c.l.b16 %v448
        %v1591 = vunpack.c.h.b16 %v448
        %v1592 = vunpack.c.l.b16 %v449
        %v1593 = vunpack.c.h.b16 %v449
        %v1594 = vunpack.c.l.b16 %v450
        %v1595 = vunpack.c.h.b16 %v450
        %v1596 = vunpack.c.l.b16 %v451
        %v1597 = vunpack.c.h.b16 %v451
        %v1598 = vunpack.c.l.b16 %v452
        %v1599 = vunpack.c.h.b16 %v452
        %v1600 = vunpack.c.l.b16 %v453
        %v1601 = vunpack.c.h.b16 %v453
        %v1602 = vunpack.c.l.b16 %v454
        %v1603 = vunpack.c.h.b16 %v454
        %v1604 = vunpack.c.l.b16 %v455
        %v1605 = vunpack.c.h.b16 %v455
        %v1606 = vunpack.c.l.b16 %v456
        %v1607 = vunpack.c.h.b16 %v456
        %v1608 = vunpack.c.l.b16 %v457
        %v1609 = vunpack.c.h.b16 %v457
        %v1610 = vunpack.c.l.b16 %v458
        %v1611 = vunpack.c.h.b16 %v458
        %v1612 = vunpack.c.l.b16 %v459
        %v1613 = vunpack.c.h.b16 %v459
        %v1614 = vunpack.c.l.b16 %v460
        %v1615 = vunpack.c.h.b16 %v460
        %v1616 = vunpack.c.l.b16 %v461
        %v1617 = vunpack.c.h.b16 %v461
        %v1618 = vunpack.c.l.b16 %v462
        %v1619 = vunpack.c.h.b16 %v462
        %v1620 = vunpack.c.l.b16 %v463
        %v1621 = vunpack.c.h.b16 %v463
        %v1622 = vunpack.c.l.b16 %v464
        %v1623 = vunpack.c.h.b16 %v464
        %v1624 = vunpack.c.l.b16 %v465
        %v1625 = vunpack.c.h.b16 %v465
        %v1626 = vunpack.c.l.b16 %v466
        %v1627 = vunpack.c.h.b16 %v466
        %v1628 = vunpack.c.l.b16 %v467
        %v1629 = vunpack.c.h.b16 %v467
        %v1630 = vunpack.c.l.b16 %v468
        %v1631 = vunpack.c.h.b16 %v468
        %v1632 = vunpack.c.l.b16 %v469
        %v1633 = vunpack.c.h.b16 %v469
        %v1634 = vunpack.c.l.b16 %v470
        %v1635 = vunpack.c.h.b16 %v470
        %v1636 = vunpack.c.l.b16 %v471
        %v1637 = vunpack.c.h.b16 %v471
        %v1638 = vunpack.c.l.b16 %v472
        %v1639 = vunpack.c.h.b16 %v472
        %v1640 = vunpack.c.l.b16 %v473
        %v1641 = vunpack.c.h.b16 %v473
        %v1642 = vunpack.c.l.b16 %v474
        %v1643 = vunpack.c.h.b16 %v474
        %v1644 = vunpack.c.l.b16 %v475
        %v1645 = vunpack.c.h.b16 %v475
        %v1646 = vunpack.c.l.b16 %v476
        %v1647 = vunpack.c.h.b16 %v476
        %v1648 = vunpack.c.l.b16 %v477
        %v1649 = vunpack.c.h.b16 %v477
        %v1650 = vunpack.c.l.b16 %v478
        %v1651 = vunpack.c.h.b16 %v478
        %v1652 = vunpack.c.l.b16 %v479
        %v1653 = vunpack.c.h.b16 %v479
        %v1654 = vunpack.c.l.b16 %v480
        %v1655 = vunpack.c.h.b16 %v480
        %v1656 = vunpack.c.l.b16 %v481
        %v1657 = vunpack.c.h.b16 %v481
        %v1658 = vunpack.c.l.b16 %v482
        %v1659 = vunpack.c.h.b16 %v482
        %v1660 = vunpack.c.l.b16 %v483
        %v1661 = vunpack.c.h.b16 %v483
        %v1662 = vunpack.c.l.b16 %v484
        %v1663 = vunpack.c.h.b16 %v484
        %v1664 = vunpack.c.l.b16 %v485
        %v1665 = vunpack.c.h.b16 %v485
        %v1666 = vunpack.c.l.b16 %v486
        %v1667 = vunpack.c.h.b16 %v486
        %v1668 = vunpack.c.l.b16 %v487
        %v1669 = vunpack.c.h.b16 %v487
        %v1670 = vunpack.c.l.b16 %v488
        %v1671 = vunpack.c.h.b16 %v488
        %v1672 = vunpack.c.l.b16 %v489
        %v1673 = vunpack.c.h.b16 %v489
        %v1674 = vunpack.c.l.b16 %v490
        %v1675 = vunpack.c.h.b16 %v490
        %v1676 = vunpack.c.l.b16 %v491
        %v1677 = vunpack.c.h.b16 %v491
        %v1678 = vunpack.c.l.b16 %v492
        %v1679 = vunpack.c.h.b16 %v492
        %v1680 = vunpack.c.l.b16 %v493
        %v1681 = vunpack.c.h.b16 %v493
        %v1682 = vunpack.c.l.b16 %v494
        %v1683 = vunpack.c.h.b16 %v494
        %v1684 = vunpack.c.l.b16 %v495
        %v1685 = vunpack.c.h.b16 %v495
        %v1686 = vunpack.c.l.b16 %v496
        %v1687 = vunpack.c.h.b16 %v496
        %v1688 = vunpack.c.l.b16 %v497
        %v1689 = vunpack.c.h.b16 %v497
        %v1690 = vunpack.c.l.b16 %v498
        %v1691 = vunpack.c.h.b16 %v498
        %v1692 = vunpack.c.l.b16 %v499
        %v1693 = vunpack.c.h.b16 %v499
        %v1694 = vunpack.c.l.b16 %v500
        %v1695 = vunpack.c.h.b16 %v500
        %v1696 = vunpack.c.l.b16 %v501
        %v1697 = vunpack.c.h.b16 %v501
        %v1698 = vunpack.c.l.b16 %v502
        %v1699 = vunpack.c.h.b16 %v502
        %v1700 = vunpack.c.l.b16 %v503
        %v1701 = vunpack.c.h.b16 %v503
        %v1702 = vunpack.c.l.b16 %v504
        %v1703 = vunpack.c.h.b16 %v504
        %v1704 = vunpack.c.l.b16 %v505
        %v1705 = vunpack.c.h.b16 %v505
        %v1706 = vunpack.c.l.b16 %v506
        %v1707 = vunpack.c.h.b16 %v506
        %v1708 = vunpack.c.l.b16 %v507
        %v1709 = vunpack.c.h.b16 %v507
        %v1710 = vunpack.c.l.b16 %v508
        %v1711 = vunpack.c.h.b16 %v508
        %v1712 = vunpack.c.l.b16 %v509
        %v1713 = vunpack.c.h.b16 %v509
        %v1714 = vunpack.c.l.b16 %v510
        %v1715 = vunpack.c.h.b16 %v510
        %v1716 = vunpack.c.l.b16 %v511
        %v1717 = vunpack.c.h.b16 %v511
        %v1718 = vunpack.c.l.b16 %v512
        %v1719 = vunpack.c.h.b16 %v512
        %v1720 = vunpack.c.l.b16 %v513
        %v1721 = vunpack.c.h.b16 %v513
        %v1722 = vunpack.c.l.b16 %v514
        %v1723 = vunpack.c.h.b16 %v514
        %v1724 = vunpack.c.l.b16 %v515
        %v1725 = vunpack.c.h.b16 %v515
        %v1726 = vunpack.c.l.b16 %v516
        %v1727 = vunpack.c.h.b16 %v516
        %v1728 = vunpack.c.l.b16 %v517
        %v1729 = vunpack.c.h.b16 %v517
        %v1730 = vunpack.c.l.b16 %v518
        %v1731 = vunpack.c.h.b16 %v518
        %v1732 = vunpack.c.l.b16 %v519
        %v1733 = vunpack.c.h.b16 %v519
        %v1734 = vunpack.c.l.b16 %v520
        %v1735 = vunpack.c.h.b16 %v520
        %v1736 = vunpack.c.l.b16 %v521
        %v1737 = vunpack.c.h.b16 %v521
        %v1738 = vunpack.c.l.b16 %v522
        %v1739 = vunpack.c.h.b16 %v522
        %v1740 = vunpack.c.l.b16 %v523
        %v1741 = vunpack.c.h.b16 %v523
        %v1742 = vunpack.c.l.b16 %v524
        %v1743 = vunpack.c.h.b16 %v524
        %v1744 = vunpack.c.l.b16 %v525
        %v1745 = vunpack.c.h.b16 %v525
        %v1746 = vunpack.c.l.b16 %v526
        %v1747 = vunpack.c.h.b16 %v526
        %v1748 = vunpack.c.l.b16 %v527
        %v1749 = vunpack.c.h.b16 %v527
        %v1750 = vunpack.c.l.b16 %v528
        %v1751 = vunpack.c.h.b16 %v528
        %v1752 = vunpack.c.l.b16 %v529
        %v1753 = vunpack.c.h.b16 %v529
        %v1754 = vunpack.c.l.b16 %v530
        %v1755 = vunpack.c.h.b16 %v530
        %v1756 = vunpack.c.l.b16 %v531
        %v1757 = vunpack.c.h.b16 %v531
        %v1758 = vunpack.c.l.b16 %v532
        %v1759 = vunpack.c.h.b16 %v532
        %v1760 = vunpack.c.l.b16 %v533
        %v1761 = vunpack.c.h.b16 %v533
        %v1762 = vunpack.c.l.b16 %v534
        %v1763 = vunpack.c.h.b16 %v534
        %v1764 = vunpack.c.l.b16 %v535
        %v1765 = vunpack.c.h.b16 %v535
        %v1766 = vunpack.c.l.b16 %v536
        %v1767 = vunpack.c.h.b16 %v536
        %v1768 = vunpack.c.l.b16 %v537
        %v1769 = vunpack.c.h.b16 %v537
        %v1770 = vunpack.c.l.b16 %v538
        %v1771 = vunpack.c.h.b16 %v538
        %v1772 = vunpack.c.l.b16 %v539
        %v1773 = vunpack.c.h.b16 %v539
        %v1774 = vunpack.c.l.b16 %v540
        %v1775 = vunpack.c.h.b16 %v540
        %v1776 = vunpack.c.l.b16 %v541
        %v1777 = vunpack.c.h.b16 %v541
        %v1778 = vunpack.c.l.b16 %v542
        %v1779 = vunpack.c.h.b16 %v542
        %v1780 = vunpack.c.l.b16 %v543
        %v1781 = vunpack.c.h.b16 %v543
        %v1782 = vunpack.c.l.b16 %v544
        %v1783 = vunpack.c.h.b16 %v544
        %v1784 = vunpack.c.l.b16 %v545
        %v1785 = vunpack.c.h.b16 %v545
        %v1786 = vunpack.c.l.b16 %v546
        %v1787 = vunpack.c.h.b16 %v546
        %v1788 = vunpack.c.l.b16 %v547
        %v1789 = vunpack.c.h.b16 %v547
        %v1790 = vunpack.c.l.b16 %v548
        %v1791 = vunpack.c.h.b16 %v548
        %v1792 = vunpack.c.l.b16 %v549
        %v1793 = vunpack.c.h.b16 %v549
        %v1794 = vunpack.c.l.b16 %v550
        %v1795 = vunpack.c.h.b16 %v550
        %v1796 = vunpack.c.l.b16 %v551
        %v1797 = vunpack.c.h.b16 %v551
        %v1798 = vunpack.c.l.b16 %v552
        %v1799 = vunpack.c.h.b16 %v552
        %v1800 = vunpack.c.l.b16 %v553
        %v1801 = vunpack.c.h.b16 %v553
        %v1802 = vunpack.c.l.b16 %v554
        %v1803 = vunpack.c.h.b16 %v554
        %v1804 = vunpack.c.l.b16 %v555
        %v1805 = vunpack.c.h.b16 %v555
        %v1806 = vunpack.c.l.b16 %v556
        %v1807 = vunpack.c.h.b16 %v556
        %v1808 = vunpack.c.l.b16 %v557
        %v1809 = vunpack.c.h.b16 %v557
        %v1810 = vunpack.c.l.b16 %v558
        %v1811 = vunpack.c.h.b16 %v558
        %v1812 = vunpack.c.l.b16 %v559
        %v1813 = vunpack.c.h.b16 %v559
        %v1814 = vunpack.c.l.b16 %v560
        %v1815 = vunpack.c.h.b16 %v560
        %v1816 = vunpack.c.l.b16 %v561
        %v1817 = vunpack.c.h.b16 %v561
        %v1818 = vunpack.c.l.b16 %v562
        %v1819 = vunpack.c.h.b16 %v562
        %v1820 = vunpack.c.l.b16 %v563
        %v1821 = vunpack.c.h.b16 %v563
        %v1822 = vunpack.c.l.b16 %v564
        %v1823 = vunpack.c.h.b16 %v564
        %v1824 = vunpack.c.l.b16 %v565
        %v1825 = vunpack.c.h.b16 %v565
        %v1826 = vunpack.c.l.b16 %v566
        %v1827 = vunpack.c.h.b16 %v566
        %v1828 = vunpack.c.l.b16 %v567
        %v1829 = vunpack.c.h.b16 %v567
        %v1830 = vunpack.c.l.b16 %v568
        %v1831 = vunpack.c.h.b16 %v568
        %v1832 = vunpack.c.l.b16 %v569
        %v1833 = vunpack.c.h.b16 %v569
        %v1834 = vunpack.c.l.b16 %v570
        %v1835 = vunpack.c.h.b16 %v570
        %v1836 = vunpack.c.l.b16 %v571
        %v1837 = vunpack.c.h.b16 %v571
        %v1838 = vunpack.c.l.b16 %v572
        %v1839 = vunpack.c.h.b16 %v572
        %v1840 = vunpack.c.l.b16 %v573
        %v1841 = vunpack.c.h.b16 %v573
        %v1842 = vunpack.c.l.b16 %v574
        %v1843 = vunpack.c.h.b16 %v574
        %v1844 = vunpack.c.l.b16 %v575
        %v1845 = vunpack.c.h.b16 %v575
        %v1846 = vunpack.c.l.b16 %v576
        %v1847 = vunpack.c.h.b16 %v576
        %v1848 = vunpack.c.l.b16 %v577
        %v1849 = vunpack.c.h.b16 %v577
        %v1850 = vunpack.c.l.b16 %v578
        %v1851 = vunpack.c.h.b16 %v578
        %v1852 = vunpack.c.l.b16 %v579
        %v1853 = vunpack.c.h.b16 %v579
        %v1854 = vunpack.c.l.b16 %v580
        %v1855 = vunpack.c.h.b16 %v580
        %v1856 = vunpack.c.l.b16 %v581
        %v1857 = vunpack.c.h.b16 %v581
        %v1858 = vunpack.c.l.b16 %v582
        %v1859 = vunpack.c.h.b16 %v582
        %v1860 = vunpack.c.l.b16 %v583
        %v1861 = vunpack.c.h.b16 %v583
        %v1862 = vunpack.c.l.b16 %v584
        %v1863 = vunpack.c.h.b16 %v584
        %v1864 = vunpack.c.l.b16 %v585
        %v1865 = vunpack.c.h.b16 %v585
        %v1866 = vunpack.c.l.b16 %v586
        %v1867 = vunpack.c.h.b16 %v586
        %v1868 = vunpack.c.l.b16 %v587
        %v1869 = vunpack.c.h.b16 %v587
        %v1870 = vunpack.c.l.b16 %v588
        %v1871 = vunpack.c.h.b16 %v588
        %v1872 = vunpack.c.l.b16 %v589
        %v1873 = vunpack.c.h.b16 %v589
        %v1874 = vunpack.c.l.b16 %v590
        %v1875 = vunpack.c.h.b16 %v590
        %v1876 = vunpack.c.l.b16 %v591
        %v1877 = vunpack.c.h.b16 %v591
        %v1878 = vunpack.c.l.b16 %v592
        %v1879 = vunpack.c.h.b16 %v592
        %v1880 = vunpack.c.l.b16 %v593
        %v1881 = vunpack.c.h.b16 %v593
        %v1882 = vunpack.c.l.b16 %v594
        %v1883 = vunpack.c.h.b16 %v594
        %v1884 = vunpack.c.l.b16 %v595
        %v1885 = vunpack.c.h.b16 %v595
        %v1886 = vunpack.c.l.b16 %v596
        %v1887 = vunpack.c.h.b16 %v596
        %v1888 = vunpack.c.l.b16 %v597
        %v1889 = vunpack.c.h.b16 %v597
        %v1890 = vunpack.c.l.b16 %v598
        %v1891 = vunpack.c.h.b16 %v598
        %v1892 = vunpack.c.l.b16 %v599
        %v1893 = vunpack.c.h.b16 %v599
        %v1894 = vunpack.c.l.b16 %v600
        %v1895 = vunpack.c.h.b16 %v600
        %v1896 = vunpack.c.l.b16 %v601
        %v1897 = vunpack.c.h.b16 %v601
        %v1898 = vunpack.c.l.b16 %v602
        %v1899 = vunpack.c.h.b16 %v602
        %v1900 = vunpack.c.l.b16 %v603
        %v1901 = vunpack.c.h.b16 %v603
        %v1902 = vunpack.c.l.b16 %v604
        %v1903 = vunpack.c.h.b16 %v604
        %v1904 = vunpack.c.l.b16 %v605
        %v1905 = vunpack.c.h.b16 %v605
        %v1906 = vunpack.c.l.b16 %v606
        %v1907 = vunpack.c.h.b16 %v606
        %v1908 = vunpack.c.l.b16 %v607
        %v1909 = vunpack.c.h.b16 %v607
        %v1910 = vunpack.c.l.b16 %v608
        %v1911 = vunpack.c.h.b16 %v608
        %v1912 = vunpack.c.l.b16 %v609
        %v1913 = vunpack.c.h.b16 %v609
        %v1914 = vunpack.c.l.b16 %v610
        %v1915 = vunpack.c.h.b16 %v610
        %v1916 = vunpack.c.l.b16 %v611
        %v1917 = vunpack.c.h.b16 %v611
        %v1918 = vunpack.c.l.b16 %v612
        %v1919 = vunpack.c.h.b16 %v612
        %v1920 = vunpack.c.l.b16 %v613
        %v1921 = vunpack.c.h.b16 %v613
        %v1922 = vunpack.c.l.b16 %v614
        %v1923 = vunpack.c.h.b16 %v614
        %v1924 = vunpack.c.l.b16 %v615
        %v1925 = vunpack.c.h.b16 %v615
        %v1926 = vunpack.c.l.b16 %v616
        %v1927 = vunpack.c.h.b16 %v616
        %v1928 = vunpack.c.l.b16 %v617
        %v1929 = vunpack.c.h.b16 %v617
        %v1930 = vunpack.c.l.b16 %v618
        %v1931 = vunpack.c.h.b16 %v618
        %v1932 = vunpack.c.l.b16 %v619
        %v1933 = vunpack.c.h.b16 %v619
        %v1934 = vunpack.c.l.b16 %v620
        %v1935 = vunpack.c.h.b16 %v620
        %v1936 = vunpack.c.l.b16 %v621
        %v1937 = vunpack.c.h.b16 %v621
        %v1938 = vunpack.c.l.b16 %v622
        %v1939 = vunpack.c.h.b16 %v622
        %v1940 = vunpack.c.l.b16 %v623
        %v1941 = vunpack.c.h.b16 %v623
        %v1942 = vunpack.c.l.b16 %v624
        %v1943 = vunpack.c.h.b16 %v624
        %v1944 = vunpack.c.l.b16 %v625
        %v1945 = vunpack.c.h.b16 %v625
        %v1946 = vunpack.c.l.b16 %v626
        %v1947 = vunpack.c.h.b16 %v626
        %v1948 = vunpack.c.l.b16 %v627
        %v1949 = vunpack.c.h.b16 %v627
        %v1950 = vunpack.c.l.b16 %v628
        %v1951 = vunpack.c.h.b16 %v628
        %v1952 = vunpack.c.l.b16 %v629
        %v1953 = vunpack.c.h.b16 %v629
        %v1954 = vunpack.c.l.b16 %v630
        %v1955 = vunpack.c.h.b16 %v630
        %v1956 = vunpack.c.l.b16 %v631
        %v1957 = vunpack.c.h.b16 %v631
        %v1958 = vunpack.c.l.b16 %v632
        %v1959 = vunpack.c.h.b16 %v632
        %v1960 = vunpack.c.l.b16 %v633
        %v1961 = vunpack.c.h.b16 %v633
        %v1962 = vunpack.c.l.b16 %v634
        %v1963 = vunpack.c.h.b16 %v634
        %v1964 = vunpack.c.l.b16 %v635
        %v1965 = vunpack.c.h.b16 %v635
        %v1966 = vunpack.c.l.b16 %v636
        %v1967 = vunpack.c.h.b16 %v636
        %v1968 = vunpack.c.l.b16 %v637
        %v1969 = vunpack.c.h.b16 %v637
        %v1970 = vunpack.c.l.b16 %v638
        %v1971 = vunpack.c.h.b16 %v638
        %v1972 = vunpack.c.l.b16 %v639
        %v1973 = vunpack.c.h.b16 %v639
        %v1974 = vunpack.c.l.b16 %v640
        %v1975 = vunpack.c.h.b16 %v640
        %v1976 = vunpack.c.l.b16 %v641
        %v1977 = vunpack.c.h.b16 %v641
        %v1978 = vunpack.c.l.b16 %v642
        %v1979 = vunpack.c.h.b16 %v642
        %v1980 = vunpack.c.l.b16 %v643
        %v1981 = vunpack.c.h.b16 %v643
        %v1982 = vunpack.c.l.b16 %v644
        %v1983 = vunpack.c.h.b16 %v644
        %v1984 = vunpack.c.l.b16 %v645
        %v1985 = vunpack.c.h.b16 %v645
        %v1986 = vunpack.c.l.b16 %v646
        %v1987 = vunpack.c.h.b16 %v646
        %v1988 = vunpack.c.l.b16 %v647
        %v1989 = vunpack.c.h.b16 %v647
        %v1990 = vunpack.c.l.b16 %v648
        %v1991 = vunpack.c.h.b16 %v648
        %v1992 = vunpack.c.l.b16 %v649
        %v1993 = vunpack.c.h.b16 %v649
        %v1994 = vunpack.c.l.b16 %v650
        %v1995 = vunpack.c.h.b16 %v650
        %v1996 = vunpack.c.l.b16 %v651
        %v1997 = vunpack.c.h.b16 %v651
        %v1998 = vunpack.c.l.b16 %v652
        %v1999 = vunpack.c.h.b16 %v652
        %v2000 = vunpack.c.l.b16 %v653
        %v2001 = vunpack.c.h.b16 %v653
        %v2002 = vunpack.c.l.b16 %v654
        %v2003 = vunpack.c.h.b16 %v654
        %v2004 = vunpack.c.l.b16 %v655
        %v2005 = vunpack.c.h.b16 %v655
        %v2006 = vunpack.c.l.b16 %v656
        %v2007 = vunpack.c.h.b16 %v656
        %v2008 = vunpack.c.l.b16 %v657
        %v2009 = vunpack.c.h.b16 %v657
        %v2010 = vunpack.c.l.b16 %v658
        %v2011 = vunpack.c.h.b16 %v658
        %v2012 = vunpack.c.l.b16 %v659
        %v2013 = vunpack.c.h.b16 %v659
        %v2014 = vunpack.c.l.b16 %v660
        %v2015 = vunpack.c.h.b16 %v660
        %v2016 = vunpack.c.l.b16 %v661
        %v2017 = vunpack.c.h.b16 %v661
        %v2018 = vunpack.c.l.b16 %v662
        %v2019 = vunpack.c.h.b16 %v662
        %v2020 = vunpack.c.l.b16 %v663
        %v2021 = vunpack.c.h.b16 %v663
        %v2022 = vunpack.c.l.b16 %v664
        %v2023 = vunpack.c.h.b16 %v664
        %v2024 = vunpack.c.l.b16 %v665
        %v2025 = vunpack.c.h.b16 %v665
        %v2026 = vunpack.c.l.b16 %v666
        %v2027 = vunpack.c.h.b16 %v666
        %v2028 = vunpack.c.l.b16 %v667
        %v2029 = vunpack.c.h.b16 %v667
        %v2030 = vunpack.c.l.b16 %v668
        %v2031 = vunpack.c.h.b16 %v668
        %v2032 = vunpack.c.l.b16 %v669
        %v2033 = vunpack.c.h.b16 %v669
        %v2034 = vunpack.c.l.b16 %v670
        %v2035 = vunpack.c.h.b16 %v670
        %v2036 = vunpack.c.l.b16 %v671
        %v2037 = vunpack.c.h.b16 %v671
        %v2038 = vunpack.c.l.b16 %v672
        %v2039 = vunpack.c.h.b16 %v672
        %v2040 = vunpack.c.l.b16 %v673
        %v2041 = vunpack.c.h.b16 %v673
        %v2042 = vunpack.c.l.b16 %v674
        %v2043 = vunpack.c.h.b16 %v674
        %v2044 = vunpack.c.l.b16 %v675
        %v2045 = vunpack.c.h.b16 %v675
        %v2046 = vunpack.c.l.b16 %v676
        %v2047 = vunpack.c.h.b16 %v676
        %v2048 = vunpack.c.l.b16 %v677
        %v2049 = vunpack.c.h.b16 %v677
        %v2050 = vunpack.c.l.b16 %v678
        %v2051 = vunpack.c.h.b16 %v678
        %v2052 = vunpack.c.l.b16 %v679
        %v2053 = vunpack.c.h.b16 %v679
        %v2054 = vunpack.c.l.b16 %v680
        %v2055 = vunpack.c.h.b16 %v680
        %v2056 = vunpack.c.l.b16 %v681
        %v2057 = vunpack.c.h.b16 %v681
        %v2058 = vunpack.c.l.b16 %v682
        %v2059 = vunpack.c.h.b16 %v682
        %v2060 = vunpack.c.l.b16 %v683
        %v2061 = vunpack.c.h.b16 %v683
        %v2062 = vunpack.c.l.b16 %v684
        %v2063 = vunpack.c.h.b16 %v684
        %v2064 = vunpack.c.l.b16 %v685
        %v2065 = vunpack.c.h.b16 %v685
        %v2066 = vunpack.c.l.b16 %v686
        %v2067 = vunpack.c.h.b16 %v686
        %v2068 = vunpack.c.l.b16 %v687
        %v2069 = vunpack.c.h.b16 %v687
        %v2070 = vunpack.c.l.b16 %v688
        %v2071 = vunpack.c.h.b16 %v688
        %v2072 = vunpack.c.l.b16 %v689
        %v2073 = vunpack.c.h.b16 %v689
        %v2074 = vunpack.c.l.b16 %v690
        %v2075 = vunpack.c.h.b16 %v690
        %v2076 = vunpack.c.l.b16 %v691
        %v2077 = vunpack.c.h.b16 %v691
        %v2078 = vunpack.c.l.b16 %v692
        %v2079 = vunpack.c.h.b16 %v692
        %v2080 = vunpack.c.l.b16 %v693
        %v2081 = vunpack.c.h.b16 %v693
        %v2082 = vunpack.c.l.b16 %v694
        %v2083 = vunpack.c.h.b16 %v694
        %v2084 = vunpack.c.l.b16 %v695
        %v2085 = vunpack.c.h.b16 %v695
        %v2086 = vunpack.c.l.b16 %v696
        %v2087 = vunpack.c.h.b16 %v696
        %v2088 = vunpack.c.l.b16 %v697
        %v2089 = vunpack.c.h.b16 %v697
        %v2090 = vunpack.c.l.b16 %v698
        %v2091 = vunpack.c.h.b16 %v698
        %v2092 = vunpack.c.l.b16 %v699
        %v2093 = vunpack.c.h.b16 %v699
        %v2094 = vunpack.c.l.b16 %v700
        %v2095 = vunpack.c.h.b16 %v700
        %v2096 = vunpack.c.l.b16 %v701
        %v2097 = vunpack.c.h.b16 %v701
        %v2098 = vunpack.c.l.b16 %v702
        %v2099 = vunpack.c.h.b16 %v702
        %v2100 = vunpack.c.l.b16 %v703
        %v2101 = vunpack.c.h.b16 %v703
        %v2102 = vunpack.c.l.b16 %v704
        %v2103 = vunpack.c.h.b16 %v704
        %v2104 = vunpack.c.l.b16 %v705
        %v2105 = vunpack.c.h.b16 %v705
        %v2106 = vunpack.c.l.b16 %v706
        %v2107 = vunpack.c.h.b16 %v706
        %v2108 = vunpack.c.l.b16 %v707
        %v2109 = vunpack.c.h.b16 %v707
        %v2110 = vunpack.c.l.b16 %v708
        %v2111 = vunpack.c.h.b16 %v708
        %v2112 = vunpack.c.l.b16 %v709
        %v2113 = vunpack.c.h.b16 %v709
        %v2114 = vunpack.c.l.b16 %v710
        %v2115 = vunpack.c.h.b16 %v710
        %v2116 = vunpack.c.l.b16 %v711
        %v2117 = vunpack.c.h.b16 %v711
        %v2118 = vunpack.c.l.b16 %v712
        %v2119 = vunpack.c.h.b16 %v712
        %v2120 = vunpack.c.l.b16 %v713
        %v2121 = vunpack.c.h.b16 %v713
        %v2122 = vunpack.c.l.b16 %v714
        %v2123 = vunpack.c.h.b16 %v714
        %v2124 = vunpack.c.l.b16 %v715
        %v2125 = vunpack.c.h.b16 %v715
        %v2126 = vunpack.c.l.b16 %v716
        %v2127 = vunpack.c.h.b16 %v716
        %v2128 = vunpack.c.l.b16 %v717
        %v2129 = vunpack.c.h.b16 %v717
        %v2130 = vunpack.c.l.b16 %v718
        %v2131 = vunpack.c.h.b16 %v718
        %v2132 = vunpack.c.l.b16 %v719
        %v2133 = vunpack.c.h.b16 %v719
        %v2134 = vunpack.c.l.b16 %v720
        %v2135 = vunpack.c.h.b16 %v720
        %v2136 = vunpack.c.l.b16 %v721
        %v2137 = vunpack.c.h.b16 %v721
        %v2138 = vunpack.c.l.b16 %v722
        %v2139 = vunpack.c.h.b16 %v722
        %v2140 = vunpack.c.l.b16 %v723
        %v2141 = vunpack.c.h.b16 %v723
        %v2142 = vunpack.c.l.b16 %v724
        %v2143 = vunpack.c.h.b16 %v724
        %v2144 = vunpack.c.l.b16 %v725
        %v2145 = vunpack.c.h.b16 %v725
        %v2146 = vunpack.c.l.b16 %v726
        %v2147 = vunpack.c.h.b16 %v726
        %v2148 = vunpack.c.l.b16 %v727
        %v2149 = vunpack.c.h.b16 %v727
        %v2150 = vunpack.c.l.b16 %v728
        %v2151 = vunpack.c.h.b16 %v728
        %v2152 = vunpack.c.l.b16 %v729
        %v2153 = vunpack.c.h.b16 %v729
        %v2154 = vunpack.c.l.b16 %v730
        %v2155 = vunpack.c.h.b16 %v730
        %v2156 = vunpack.c.l.b16 %v731
        %v2157 = vunpack.c.h.b16 %v731
        %v2158 = vunpack.c.l.b16 %v732
        %v2159 = vunpack.c.h.b16 %v732
        %v2160 = vunpack.c.l.b16 %v733
        %v2161 = vunpack.c.h.b16 %v733
        %v2162 = vunpack.c.l.b16 %v734
        %v2163 = vunpack.c.h.b16 %v734
        %v2164 = vunpack.c.l.b16 %v735
        %v2165 = vunpack.c.h.b16 %v735
        %v2166 = vunpack.c.l.b16 %v736
        %v2167 = vunpack.c.h.b16 %v736
        %v2168 = vunpack.c.l.b16 %v737
        %v2169 = vunpack.c.h.b16 %v737
        %v2170 = vunpack.c.l.b16 %v738
        %v2171 = vunpack.c.h.b16 %v738
        %v2172 = vunpack.c.l.b16 %v739
        %v2173 = vunpack.c.h.b16 %v739
        %v2174 = vunpack.c.l.b16 %v740
        %v2175 = vunpack.c.h.b16 %v740
        %v2176 = vunpack.c.l.b16 %v741
        %v2177 = vunpack.c.h.b16 %v741
        %v2178 = vunpack.c.l.b16 %v742
        %v2179 = vunpack.c.h.b16 %v742
        %v2180 = vunpack.c.l.b16 %v743
        %v2181 = vunpack.c.h.b16 %v743
        %v2182 = vunpack.c.l.b16 %v744
        %v2183 = vunpack.c.h.b16 %v744
        %v2184 = vunpack.c.l.b16 %v745
        %v2185 = vunpack.c.h.b16 %v745
        %v2186 = vunpack.c.l.b16 %v746
        %v2187 = vunpack.c.h.b16 %v746
        %v2188 = vunpack.c.l.b16 %v747
        %v2189 = vunpack.c.h.b16 %v747
        %v2190 = vunpack.c.l.b16 %v748
        %v2191 = vunpack.c.h.b16 %v748
        %v2192 = vunpack.c.l.b16 %v749
        %v2193 = vunpack.c.h.b16 %v749
        %v2194 = vunpack.c.l.b16 %v750
        %v2195 = vunpack.c.h.b16 %v750
        %v2196 = vunpack.c.l.b16 %v751
        %v2197 = vunpack.c.h.b16 %v751
        %v2198 = vunpack.c.l.b16 %v752
        %v2199 = vunpack.c.h.b16 %v752
        %v2200 = vunpack.c.l.b16 %v753
        %v2201 = vunpack.c.h.b16 %v753
        %v2202 = vunpack.c.l.b16 %v754
        %v2203 = vunpack.c.h.b16 %v754
        %v2204 = vunpack.c.l.b16 %v755
        %v2205 = vunpack.c.h.b16 %v755
        %v2206 = vunpack.c.l.b16 %v756
        %v2207 = vunpack.c.h.b16 %v756
        %v2208 = vunpack.c.l.b16 %v757
        %v2209 = vunpack.c.h.b16 %v757
        %v2210 = vunpack.c.l.b16 %v758
        %v2211 = vunpack.c.h.b16 %v758
        %v2212 = vunpack.c.l.b16 %v759
        %v2213 = vunpack.c.h.b16 %v759
        %v2214 = vunpack.c.l.b16 %v760
        %v2215 = vunpack.c.h.b16 %v760
        %v2216 = vunpack.c.l.b16 %v761
        %v2217 = vunpack.c.h.b16 %v761
        %v2218 = vunpack.c.l.b16 %v762
        %v2219 = vunpack.c.h.b16 %v762
        %v2220 = vunpack.c.l.b16 %v763
        %v2221 = vunpack.c.h.b16 %v763
        %v2222 = vunpack.c.l.b16 %v764
        %v2223 = vunpack.c.h.b16 %v764
        %v2224 = vunpack.c.l.b16 %v765
        %v2225 = vunpack.c.h.b16 %v765
        %v2226 = vunpack.c.l.b16 %v766
        %v2227 = vunpack.c.h.b16 %v766
        %v2228 = vunpack.c.l.b16 %v767
        %v2229 = vunpack.c.h.b16 %v767
        %v2230 = vunpack.c.l.b16 %v768
        %v2231 = vunpack.c.h.b16 %v768
        %v2232 = vunpack.c.l.b16 %v769
        %v2233 = vunpack.c.h.b16 %v769
        %v2234 = vunpack.c.l.b16 %v770
        %v2235 = vunpack.c.h.b16 %v770
        %v2236 = vunpack.c.l.b16 %v771
        %v2237 = vunpack.c.h.b16 %v771
        %v2238 = vunpack.c.l.b16 %v772
        %v2239 = vunpack.c.h.b16 %v772
        %v2240 = vunpack.c.l.b16 %v773
        %v2241 = vunpack.c.h.b16 %v773
        %v2242 = vunpack.c.l.b16 %v774
        %v2243 = vunpack.c.h.b16 %v774
        %v2244 = vunpack.c.l.b16 %v775
        %v2245 = vunpack.c.h.b16 %v775
        %v2246 = vunpack.c.l.b16 %v776
        %v2247 = vunpack.c.h.b16 %v776
        %v2248 = vunpack.c.l.b16 %v777
        %v2249 = vunpack.c.h.b16 %v777
        %v2250 = vunpack.c.l.b16 %v778
        %v2251 = vunpack.c.h.b16 %v778
        %v2252 = vunpack.c.l.b16 %v779
        %v2253 = vunpack.c.h.b16 %v779
        %v2254 = vunpack.c.l.b16 %v780
        %v2255 = vunpack.c.h.b16 %v780
        %v2256 = vunpack.c.l.b16 %v781
        %v2257 = vunpack.c.h.b16 %v781
        %v2258 = vunpack.c.l.b16 %v782
        %v2259 = vunpack.c.h.b16 %v782
        %v2260 = vunpack.c.l.b16 %v783
        %v2261 = vunpack.c.h.b16 %v783
        %v2262 = vunpack.c.l.b16 %v784
        %v2263 = vunpack.c.h.b16 %v784
        %v2264 = vunpack.c.l.b16 %v785
        %v2265 = vunpack.c.h.b16 %v785
        %v2266 = vunpack.c.l.b16 %v786
        %v2267 = vunpack.c.h.b16 %v786
        %v2268 = vunpack.c.l.b16 %v787
        %v2269 = vunpack.c.h.b16 %v787
        %v2270 = vunpack.c.l.b16 %v788
        %v2271 = vunpack.c.h.b16 %v788
        %v2272 = vunpack.c.l.b16 %v789
        %v2273 = vunpack.c.h.b16 %v789
        %v2274 = vunpack.c.l.b16 %v790
        %v2275 = vunpack.c.h.b16 %v790
        %v2276 = vunpack.c.l.b16 %v791
        %v2277 = vunpack.c.h.b16 %v791
        %v2278 = vunpack.c.l.b16 %v792
        %v2279 = vunpack.c.h.b16 %v792
        %v2280 = vunpack.c.l.b16 %v793
        %v2281 = vunpack.c.h.b16 %v793
        %v2282 = vunpack.c.l.b16 %v794
        %v2283 = vunpack.c.h.b16 %v794
        %v2284 = vunpack.c.l.b16 %v795
        %v2285 = vunpack.c.h.b16 %v795
        %v2286 = vunpack.c.l.b16 %v796
        %v2287 = vunpack.c.h.b16 %v796
        %v2288 = vunpack.c.l.b16 %v797
        %v2289 = vunpack.c.h.b16 %v797
        %v2290 = vunpack.c.l.b16 %v798
        %v2291 = vunpack.c.h.b16 %v798
        %v2292 = vunpack.c.l.b16 %v799
        %v2293 = vunpack.c.h.b16 %v799
        %v2294 = vunpack.c.l.b16 %v800
        %v2295 = vunpack.c.h.b16 %v800
        %v2296 = vunpack.c.l.b16 %v801
        %v2297 = vunpack.c.h.b16 %v801
        %v2298 = vunpack.c.l.b16 %v802
        %v2299 = vunpack.c.h.b16 %v802
        %v2300 = vunpack.c.l.b16 %v803
        %v2301 = vunpack.c.h.b16 %v803
        %v2302 = vunpack.c.l.b16 %v804
        %v2303 = vunpack.c.h.b16 %v804
        %v2304 = vunpack.c.l.b16 %v805
        %v2305 = vunpack.c.h.b16 %v805
        %v2306 = vunpack.c.l.b16 %v806
        %v2307 = vunpack.c.h.b16 %v806
        %v2308 = vunpack.c.l.b16 %v807
        %v2309 = vunpack.c.h.b16 %v807
        %v2310 = vunpack.c.l.b16 %v808
        %v2311 = vunpack.c.h.b16 %v808
        %v2312 = vunpack.c.l.b16 %v809
        %v2313 = vunpack.c.h.b16 %v809
        %v2314 = vunpack.c.l.b16 %v810
        %v2315 = vunpack.c.h.b16 %v810
        %v2316 = vunpack.c.l.b16 %v811
        %v2317 = vunpack.c.h.b16 %v811
        %v2318 = vunpack.c.l.b16 %v812
        %v2319 = vunpack.c.h.b16 %v812
        %v2320 = vunpack.c.l.b16 %v813
        %v2321 = vunpack.c.h.b16 %v813
        %v2322 = vunpack.c.l.b16 %v814
        %v2323 = vunpack.c.h.b16 %v814
        %v2324 = vunpack.c.l.b16 %v815
        %v2325 = vunpack.c.h.b16 %v815
        %v2326 = vunpack.c.l.b16 %v816
        %v2327 = vunpack.c.h.b16 %v816
        %v2328 = vunpack.c.l.b16 %v817
        %v2329 = vunpack.c.h.b16 %v817
        %v2330 = vunpack.c.l.b16 %v818
        %v2331 = vunpack.c.h.b16 %v818
        %v2332 = vunpack.c.l.b16 %v819
        %v2333 = vunpack.c.h.b16 %v819
        %v2334 = vunpack.c.l.b16 %v820
        %v2335 = vunpack.c.h.b16 %v820
        %v2336 = vunpack.c.l.b16 %v821
        %v2337 = vunpack.c.h.b16 %v821
        %v2338 = vunpack.c.l.b16 %v822
        %v2339 = vunpack.c.h.b16 %v822
        %v2340 = vunpack.c.l.b16 %v823
        %v2341 = vunpack.c.h.b16 %v823
        %v2342 = vunpack.c.l.b16 %v824
        %v2343 = vunpack.c.h.b16 %v824
        %v2344 = vunpack.c.l.b16 %v825
        %v2345 = vunpack.c.h.b16 %v825
        %v2346 = vunpack.c.l.b16 %v826
        %v2347 = vunpack.c.h.b16 %v826
        %v2348 = vunpack.c.l.b16 %v827
        %v2349 = vunpack.c.h.b16 %v827
        %v2350 = vunpack.c.l.b16 %v828
        %v2351 = vunpack.c.h.b16 %v828
        %v2352 = vunpack.c.l.b16 %v829
        %v2353 = vunpack.c.h.b16 %v829
        %v2354 = vunpack.c.l.b16 %v830
        %v2355 = vunpack.c.h.b16 %v830
        %v2356 = vunpack.c.l.b16 %v831
        %v2357 = vunpack.c.h.b16 %v831
        %v2358 = vunpack.c.l.b16 %v832
        %v2359 = vunpack.c.h.b16 %v832
        %v2360 = vunpack.c.l.b16 %v833
        %v2361 = vunpack.c.h.b16 %v833
        %v2362 = vunpack.c.l.b16 %v834
        %v2363 = vunpack.c.h.b16 %v834
        %v2364 = vunpack.c.l.b16 %v835
        %v2365 = vunpack.c.h.b16 %v835
        %v2366 = vunpack.c.l.b16 %v836
        %v2367 = vunpack.c.h.b16 %v836
        %v2368 = vunpack.c.l.b16 %v837
        %v2369 = vunpack.c.h.b16 %v837
        %v2370 = vunpack.c.l.b16 %v838
        %v2371 = vunpack.c.h.b16 %v838
        %v2372 = vunpack.c.l.b16 %v839
        %v2373 = vunpack.c.h.b16 %v839
        %v2374 = vunpack.c.l.b16 %v840
        %v2375 = vunpack.c.h.b16 %v840
        %v2376 = vunpack.c.l.b16 %v841
        %v2377 = vunpack.c.h.b16 %v841
        %v2378 = vunpack.c.l.b16 %v842
        %v2379 = vunpack.c.h.b16 %v842
        %v2380 = vunpack.c.l.b16 %v843
        %v2381 = vunpack.c.h.b16 %v843
        %v2382 = vunpack.c.l.b16 %v844
        %v2383 = vunpack.c.h.b16 %v844
        %v2384 = vunpack.c.l.b16 %v845
        %v2385 = vunpack.c.h.b16 %v845
        %v2386 = vunpack.c.l.b16 %v846
        %v2387 = vunpack.c.h.b16 %v846
        %v2388 = vunpack.c.l.b16 %v847
        %v2389 = vunpack.c.h.b16 %v847
        %v2390 = vunpack.c.l.b16 %v848
        %v2391 = vunpack.c.h.b16 %v848
        %v2392 = vunpack.c.l.b16 %v849
        %v2393 = vunpack.c.h.b16 %v849
        %v2394 = vunpack.c.l.b16 %v850
        %v2395 = vunpack.c.h.b16 %v850
        %v2396 = vunpack.c.l.b16 %v851
        %v2397 = vunpack.c.h.b16 %v851
        %v2398 = vpack.c.b16 %v1378, %v1374
        %v2399 = vpack.c.b16 %v1379, %v1375
        %v2400 = vpack.c.b16 %v1380, %v1376
        %v2401 = vpack.c.b16 %v1381, %v1377
        %v2402 = vpack.c.b16 %v1386, %v1382
        %v2403 = vpack.c.b16 %v1387, %v1383
        %v2404 = vpack.c.b16 %v1388, %v1384
        %v2405 = vpack.c.b16 %v1389, %v1385
        %v2406 = vpack.c.b16 %v1394, %v1390
        %v2407 = vpack.c.b16 %v1395, %v1391
        %v2408 = vpack.c.b16 %v1396, %v1392
        %v2409 = vpack.c.b16 %v1397, %v1393
        %v2410 = vpack.c.b16 %v1402, %v1398
        %v2411 = vpack.c.b16 %v1403, %v1399
        %v2412 = vpack.c.b16 %v1404, %v1400
        %v2413 = vpack.c.b16 %v1405, %v1401
        %v2414 = vpack.c.b16 %v1410, %v1406
        %v2415 = vpack.c.b16 %v1411, %v1407
        %v2416 = vpack.c.b16 %v1412, %v1408
        %v2417 = vpack.c.b16 %v1413, %v1409
        %v2418 = vpack.c.b16 %v1418, %v1414
        %v2419 = vpack.c.b16 %v1419, %v1415
        %v2420 = vpack.c.b16 %v1420, %v1416
        %v2421 = vpack.c.b16 %v1421, %v1417
        %v2422 = vpack.c.b16 %v1426, %v1422
        %v2423 = vpack.c.b16 %v1427, %v1423
        %v2424 = vpack.c.b16 %v1428, %v1424
        %v2425 = vpack.c.b16 %v1429, %v1425
        %v2426 = vpack.c.b16 %v1434, %v1430
        %v2427 = vpack.c.b16 %v1435, %v1431
        %v2428 = vpack.c.b16 %v1436, %v1432
        %v2429 = vpack.c.b16 %v1437, %v1433
        %v2430 = vpack.c.b16 %v1442, %v1438
        %v2431 = vpack.c.b16 %v1443, %v1439
        %v2432 = vpack.c.b16 %v1444, %v1440
        %v2433 = vpack.c.b16 %v1445, %v1441
        %v2434 = vpack.c.b16 %v1450, %v1446
        %v2435 = vpack.c.b16 %v1451, %v1447
        %v2436 = vpack.c.b16 %v1452, %v1448
        %v2437 = vpack.c.b16 %v1453, %v1449
        %v2438 = vpack.c.b16 %v1458, %v1454
        %v2439 = vpack.c.b16 %v1459, %v1455
        %v2440 = vpack.c.b16 %v1460, %v1456
        %v2441 = vpack.c.b16 %v1461, %v1457
        %v2442 = vpack.c.b16 %v1466, %v1462
        %v2443 = vpack.c.b16 %v1467, %v1463
        %v2444 = vpack.c.b16 %v1468, %v1464
        %v2445 = vpack.c.b16 %v1469, %v1465
        %v2446 = vpack.c.b16 %v1474, %v1470
        %v2447 = vpack.c.b16 %v1475, %v1471
        %v2448 = vpack.c.b16 %v1476, %v1472
        %v2449 = vpack.c.b16 %v1477, %v1473
        %v2450 = vpack.c.b16 %v1482, %v1478
        %v2451 = vpack.c.b16 %v1483, %v1479
        %v2452 = vpack.c.b16 %v1484, %v1480
        %v2453 = vpack.c.b16 %v1485, %v1481
        %v2454 = vpack.c.b16 %v1490, %v1486
        %v2455 = vpack.c.b16 %v1491, %v1487
        %v2456 = vpack.c.b16 %v1492, %v1488
        %v2457 = vpack.c.b16 %v1493, %v1489
        %v2458 = vpack.c.b16 %v1498, %v1494
        %v2459 = vpack.c.b16 %v1499, %v1495
        %v2460 = vpack.c.b16 %v1500, %v1496
        %v2461 = vpack.c.b16 %v1501, %v1497
        %v2462 = vpack.c.b16 %v1506, %v1502
        %v2463 = vpack.c.b16 %v1507, %v1503
        %v2464 = vpack.c.b16 %v1508, %v1504
        %v2465 = vpack.c.b16 %v1509, %v1505
        %v2466 = vpack.c.b16 %v1514, %v1510
        %v2467 = vpack.c.b16 %v1515, %v1511
        %v2468 = vpack.c.b16 %v1516, %v1512
        %v2469 = vpack.c.b16 %v1517, %v1513
        %v2470 = vpack.c.b16 %v1522, %v1518
        %v2471 = vpack.c.b16 %v1523, %v1519
        %v2472 = vpack.c.b16 %v1524, %v1520
        %v2473 = vpack.c.b16 %v1525, %v1521
        %v2474 = vpack.c.b16 %v1530, %v1526
        %v2475 = vpack.c.b16 %v1531, %v1527
        %v2476 = vpack.c.b16 %v1532, %v1528
        %v2477 = vpack.c.b16 %v1533, %v1529
        %v2478 = vpack.c.b16 %v1538, %v1534
        %v2479 = vpack.c.b16 %v1539, %v1535
        %v2480 = vpack.c.b16 %v1540, %v1536
        %v2481 = vpack.c.b16 %v1541, %v1537
        %v2482 = vpack.c.b16 %v1546, %v1542
        %v2483 = vpack.c.b16 %v1547, %v1543
        %v2484 = vpack.c.b16 %v1548, %v1544
        %v2485 = vpack.c.b16 %v1549, %v1545
        %v2486 = vpack.c.b16 %v1554, %v1550
        %v2487 = vpack.c.b16 %v1555, %v1551
        %v2488 = vpack.c.b16 %v1556, %v1552
        %v2489 = vpack.c.b16 %v1557, %v1553
        %v2490 = vpack.c.b16 %v1562, %v1558
        %v2491 = vpack.c.b16 %v1563, %v1559
        %v2492 = vpack.c.b16 %v1564, %v1560
        %v2493 = vpack.c.b16 %v1565, %v1561
        %v2494 = vpack.c.b16 %v1570, %v1566
        %v2495 = vpack.c.b16 %v1571, %v1567
        %v2496 = vpack.c.b16 %v1572, %v1568
        %v2497 = vpack.c.b16 %v1573, %v1569
        %v2498 = vpack.c.b16 %v1578, %v1574
        %v2499 = vpack.c.b16 %v1579, %v1575
        %v2500 = vpack.c.b16 %v1580, %v1576
        %v2501 = vpack.c.b16 %v1581, %v1577
        %v2502 = vpack.c.b16 %v1586, %v1582
        %v2503 = vpack.c.b16 %v1587, %v1583
        %v2504 = vpack.c.b16 %v1588, %v1584
        %v2505 = vpack.c.b16 %v1589, %v1585
        %v2506 = vpack.c.b16 %v1594, %v1590
        %v2507 = vpack.c.b16 %v1595, %v1591
        %v2508 = vpack.c.b16 %v1596, %v1592
        %v2509 = vpack.c.b16 %v1597, %v1593
        %v2510 = vpack.c.b16 %v1602, %v1598
        %v2511 = vpack.c.b16 %v1603, %v1599
        %v2512 = vpack.c.b16 %v1604, %v1600
        %v2513 = vpack.c.b16 %v1605, %v1601
        %v2514 = vpack.c.b16 %v1610, %v1606
        %v2515 = vpack.c.b16 %v1611, %v1607
        %v2516 = vpack.c.b16 %v1612, %v1608
        %v2517 = vpack.c.b16 %v1613, %v1609
        %v2518 = vpack.c.b16 %v1618, %v1614
        %v2519 = vpack.c.b16 %v1619, %v1615
        %v2520 = vpack.c.b16 %v1620, %v1616
        %v2521 = vpack.c.b16 %v1621, %v1617
        %v2522 = vpack.c.b16 %v1626, %v1622
        %v2523 = vpack.c.b16 %v1627, %v1623
        %v2524 = vpack.c.b16 %v1628, %v1624
        %v2525 = vpack.c.b16 %v1629, %v1625
        %v2526 = vpack.c.b16 %v1634, %v1630
        %v2527 = vpack.c.b16 %v1635, %v1631
        %v2528 = vpack.c.b16 %v1636, %v1632
        %v2529 = vpack.c.b16 %v1637, %v1633
        %v2530 = vpack.c.b16 %v1642, %v1638
        %v2531 = vpack.c.b16 %v1643, %v1639
        %v2532 = vpack.c.b16 %v1644, %v1640
        %v2533 = vpack.c.b16 %v1645, %v1641
        %v2534 = vpack.c.b16 %v1650, %v1646
        %v2535 = vpack.c.b16 %v1651, %v1647
        %v2536 = vpack.c.b16 %v1652, %v1648
        %v2537 = vpack.c.b16 %v1653, %v1649
        %v2538 = vpack.c.b16 %v1658, %v1654
        %v2539 = vpack.c.b16 %v1659, %v1655
        %v2540 = vpack.c.b16 %v1660, %v1656
        %v2541 = vpack.c.b16 %v1661, %v1657
        %v2542 = vpack.c.b16 %v1666, %v1662
        %v2543 = vpack.c.b16 %v1667, %v1663
        %v2544 = vpack.c.b16 %v1668, %v1664
        %v2545 = vpack.c.b16 %v1669, %v1665
        %v2546 = vpack.c.b16 %v1674, %v1670
        %v2547 = vpack.c.b16 %v1675, %v1671
        %v2548 = vpack.c.b16 %v1676, %v1672
        %v2549 = vpack.c.b16 %v1677, %v1673
        %v2550 = vpack.c.b16 %v1682, %v1678
        %v2551 = vpack.c.b16 %v1683, %v1679
        %v2552 = vpack.c.b16 %v1684, %v1680
        %v2553 = vpack.c.b16 %v1685, %v1681
        %v2554 = vpack.c.b16 %v1690, %v1686
        %v2555 = vpack.c.b16 %v1691, %v1687
        %v2556 = vpack.c.b16 %v1692, %v1688
        %v2557 = vpack.c.b16 %v1693, %v1689
        %v2558 = vpack.c.b16 %v1698, %v1694
        %v2559 = vpack.c.b16 %v1699, %v1695
        %v2560 = vpack.c.b16 %v1700, %v1696
        %v2561 = vpack.c.b16 %v1701, %v1697
        %v2562 = vpack.c.b16 %v1706, %v1702
        %v2563 = vpack.c.b16 %v1707, %v1703
        %v2564 = vpack.c.b16 %v1708, %v1704
        %v2565 = vpack.c.b16 %v1709, %v1705
        %v2566 = vpack.c.b16 %v1714, %v1710
        %v2567 = vpack.c.b16 %v1715, %v1711
        %v2568 = vpack.c.b16 %v1716, %v1712
        %v2569 = vpack.c.b16 %v1717, %v1713
        %v2570 = vpack.c.b16 %v1722, %v1718
        %v2571 = vpack.c.b16 %v1723, %v1719
        %v2572 = vpack.c.b16 %v1724, %v1720
        %v2573 = vpack.c.b16 %v1725, %v1721
        %v2574 = vpack.c.b16 %v1730, %v1726
        %v2575 = vpack.c.b16 %v1731, %v1727
        %v2576 = vpack.c.b16 %v1732, %v1728
        %v2577 = vpack.c.b16 %v1733, %v1729
        %v2578 = vpack.c.b16 %v1738, %v1734
        %v2579 = vpack.c.b16 %v1739, %v1735
        %v2580 = vpack.c.b16 %v1740, %v1736
        %v2581 = vpack.c.b16 %v1741, %v1737
        %v2582 = vpack.c.b16 %v1746, %v1742
        %v2583 = vpack.c.b16 %v1747, %v1743
        %v2584 = vpack.c.b16 %v1748, %v1744
        %v2585 = vpack.c.b16 %v1749, %v1745
        %v2586 = vpack.c.b16 %v1754, %v1750
        %v2587 = vpack.c.b16 %v1755, %v1751
        %v2588 = vpack.c.b16 %v1756, %v1752
        %v2589 = vpack.c.b16 %v1757, %v1753
        %v2590 = vpack.c.b16 %v1762, %v1758
        %v2591 = vpack.c.b16 %v1763, %v1759
        %v2592 = vpack.c.b16 %v1764, %v1760
        %v2593 = vpack.c.b16 %v1765, %v1761
        %v2594 = vpack.c.b16 %v1770, %v1766
        %v2595 = vpack.c.b16 %v1771, %v1767
        %v2596 = vpack.c.b16 %v1772, %v1768
        %v2597 = vpack.c.b16 %v1773, %v1769
        %v2598 = vpack.c.b16 %v1778, %v1774
        %v2599 = vpack.c.b16 %v1779, %v1775
        %v2600 = vpack.c.b16 %v1780, %v1776
        %v2601 = vpack.c.b16 %v1781, %v1777
        %v2602 = vpack.c.b16 %v1786, %v1782
        %v2603 = vpack.c.b16 %v1787, %v1783
        %v2604 = vpack.c.b16 %v1788, %v1784
        %v2605 = vpack.c.b16 %v1789, %v1785
        %v2606 = vpack.c.b16 %v1794, %v1790
        %v2607 = vpack.c.b16 %v1795, %v1791
        %v2608 = vpack.c.b16 %v1796, %v1792
        %v2609 = vpack.c.b16 %v1797, %v1793
        %v2610 = vpack.c.b16 %v1802, %v1798
        %v2611 = vpack.c.b16 %v1803, %v1799
        %v2612 = vpack.c.b16 %v1804, %v1800
        %v2613 = vpack.c.b16 %v1805, %v1801
        %v2614 = vpack.c.b16 %v1810, %v1806
        %v2615 = vpack.c.b16 %v1811, %v1807
        %v2616 = vpack.c.b16 %v1812, %v1808
        %v2617 = vpack.c.b16 %v1813, %v1809
        %v2618 = vpack.c.b16 %v1818, %v1814
        %v2619 = vpack.c.b16 %v1819, %v1815
        %v2620 = vpack.c.b16 %v1820, %v1816
        %v2621 = vpack.c.b16 %v1821, %v1817
        %v2622 = vpack.c.b16 %v1826, %v1822
        %v2623 = vpack.c.b16 %v1827, %v1823
        %v2624 = vpack.c.b16 %v1828, %v1824
        %v2625 = vpack.c.b16 %v1829, %v1825
        %v2626 = vpack.c.b16 %v1834, %v1830
        %v2627 = vpack.c.b16 %v1835, %v1831
        %v2628 = vpack.c.b16 %v1836, %v1832
        %v2629 = vpack.c.b16 %v1837, %v1833
        %v2630 = vpack.c.b16 %v1842, %v1838
        %v2631 = vpack.c.b16 %v1843, %v1839
        %v2632 = vpack.c.b16 %v1844, %v1840
        %v2633 = vpack.c.b16 %v1845, %v1841
        %v2634 = vpack.c.b16 %v1850, %v1846
        %v2635 = vpack.c.b16 %v1851, %v1847
        %v2636 = vpack.c.b16 %v1852, %v1848
        %v2637 = vpack.c.b16 %v1853, %v1849
        %v2638 = vpack.c.b16 %v1858, %v1854
        %v2639 = vpack.c.b16 %v1859, %v1855
        %v2640 = vpack.c.b16 %v1860, %v1856
        %v2641 = vpack.c.b16 %v1861, %v1857
        %v2642 = vpack.c.b16 %v1866, %v1862
        %v2643 = vpack.c.b16 %v1867, %v1863
        %v2644 = vpack.c.b16 %v1868, %v1864
        %v2645 = vpack.c.b16 %v1869, %v1865
        %v2646 = vpack.c.b16 %v1874, %v1870
        %v2647 = vpack.c.b16 %v1875, %v1871
        %v2648 = vpack.c.b16 %v1876, %v1872
        %v2649 = vpack.c.b16 %v1877, %v1873
        %v2650 = vpack.c.b16 %v1882, %v1878
        %v2651 = vpack.c.b16 %v1883, %v1879
        %v2652 = vpack.c.b16 %v1884, %v1880
        %v2653 = vpack.c.b16 %v1885, %v1881
        %v2654 = vpack.c.b16 %v1890, %v1886
        %v2655 = vpack.c.b16 %v1891, %v1887
        %v2656 = vpack.c.b16 %v1892, %v1888
        %v2657 = vpack.c.b16 %v1893, %v1889
        %v2658 = vpack.c.b16 %v1898, %v1894
        %v2659 = vpack.c.b16 %v1899, %v1895
        %v2660 = vpack.c.b16 %v1900, %v1896
        %v2661 = vpack.c.b16 %v1901, %v1897
        %v2662 = vpack.c.b16 %v1906, %v1902
        %v2663 = vpack.c.b16 %v1907, %v1903
        %v2664 = vpack.c.b16 %v1908, %v1904
        %v2665 = vpack.c.b16 %v1909, %v1905
        %v2666 = vpack.c.b16 %v1914, %v1910
        %v2667 = vpack.c.b16 %v1915, %v1911
        %v2668 = vpack.c.b16 %v1916, %v1912
        %v2669 = vpack.c.b16 %v1917, %v1913
        %v2670 = vpack.c.b16 %v1922, %v1918
        %v2671 = vpack.c.b16 %v1923, %v1919
        %v2672 = vpack.c.b16 %v1924, %v1920
        %v2673 = vpack.c.b16 %v1925, %v1921
        %v2674 = vpack.c.b16 %v1930, %v1926
        %v2675 = vpack.c.b16 %v1931, %v1927
        %v2676 = vpack.c.b16 %v1932, %v1928
        %v2677 = vpack.c.b16 %v1933, %v1929
        %v2678 = vpack.c.b16 %v1938, %v1934
        %v2679 = vpack.c.b16 %v1939, %v1935
        %v2680 = vpack.c.b16 %v1940, %v1936
        %v2681 = vpack.c.b16 %v1941, %v1937
        %v2682 = vpack.c.b16 %v1946, %v1942
        %v2683 = vpack.c.b16 %v1947, %v1943
        %v2684 = vpack.c.b16 %v1948, %v1944
        %v2685 = vpack.c.b16 %v1949, %v1945
        %v2686 = vpack.c.b16 %v1954, %v1950
        %v2687 = vpack.c.b16 %v1955, %v1951
        %v2688 = vpack.c.b16 %v1956, %v1952
        %v2689 = vpack.c.b16 %v1957, %v1953
        %v2690 = vpack.c.b16 %v1962, %v1958
        %v2691 = vpack.c.b16 %v1963, %v1959
        %v2692 = vpack.c.b16 %v1964, %v1960
        %v2693 = vpack.c.b16 %v1965, %v1961
        %v2694 = vpack.c.b16 %v1970, %v1966
        %v2695 = vpack.c.b16 %v1971, %v1967
        %v2696 = vpack.c.b16 %v1972, %v1968
        %v2697 = vpack.c.b16 %v1973, %v1969
        %v2698 = vpack.c.b16 %v1978, %v1974
        %v2699 = vpack.c.b16 %v1979, %v1975
        %v2700 = vpack.c.b16 %v1980, %v1976
        %v2701 = vpack.c.b16 %v1981, %v1977
        %v2702 = vpack.c.b16 %v1986, %v1982
        %v2703 = vpack.c.b16 %v1987, %v1983
        %v2704 = vpack.c.b16 %v1988, %v1984
        %v2705 = vpack.c.b16 %v1989, %v1985
        %v2706 = vpack.c.b16 %v1994, %v1990
        %v2707 = vpack.c.b16 %v1995, %v1991
        %v2708 = vpack.c.b16 %v1996, %v1992
        %v2709 = vpack.c.b16 %v1997, %v1993
        %v2710 = vpack.c.b16 %v2002, %v1998
        %v2711 = vpack.c.b16 %v2003, %v1999
        %v2712 = vpack.c.b16 %v2004, %v2000
        %v2713 = vpack.c.b16 %v2005, %v2001
        %v2714 = vpack.c.b16 %v2010, %v2006
        %v2715 = vpack.c.b16 %v2011, %v2007
        %v2716 = vpack.c.b16 %v2012, %v2008
        %v2717 = vpack.c.b16 %v2013, %v2009
        %v2718 = vpack.c.b16 %v2018, %v2014
        %v2719 = vpack.c.b16 %v2019, %v2015
        %v2720 = vpack.c.b16 %v2020, %v2016
        %v2721 = vpack.c.b16 %v2021, %v2017
        %v2722 = vpack.c.b16 %v2026, %v2022
        %v2723 = vpack.c.b16 %v2027, %v2023
        %v2724 = vpack.c.b16 %v2028, %v2024
        %v2725 = vpack.c.b16 %v2029, %v2025
        %v2726 = vpack.c.b16 %v2034, %v2030
        %v2727 = vpack.c.b16 %v2035, %v2031
        %v2728 = vpack.c.b16 %v2036, %v2032
        %v2729 = vpack.c.b16 %v2037, %v2033
        %v2730 = vpack.c.b16 %v2042, %v2038
        %v2731 = vpack.c.b16 %v2043, %v2039
        %v2732 = vpack.c.b16 %v2044, %v2040
        %v2733 = vpack.c.b16 %v2045, %v2041
        %v2734 = vpack.c.b16 %v2050, %v2046
        %v2735 = vpack.c.b16 %v2051, %v2047
        %v2736 = vpack.c.b16 %v2052, %v2048
        %v2737 = vpack.c.b16 %v2053, %v2049
        %v2738 = vpack.c.b16 %v2058, %v2054
        %v2739 = vpack.c.b16 %v2059, %v2055
        %v2740 = vpack.c.b16 %v2060, %v2056
        %v2741 = vpack.c.b16 %v2061, %v2057
        %v2742 = vpack.c.b16 %v2066, %v2062
        %v2743 = vpack.c.b16 %v2067, %v2063
        %v2744 = vpack.c.b16 %v2068, %v2064
        %v2745 = vpack.c.b16 %v2069, %v2065
        %v2746 = vpack.c.b16 %v2074, %v2070
        %v2747 = vpack.c.b16 %v2075, %v2071
        %v2748 = vpack.c.b16 %v2076, %v2072
        %v2749 = vpack.c.b16 %v2077, %v2073
        %v2750 = vpack.c.b16 %v2082, %v2078
        %v2751 = vpack.c.b16 %v2083, %v2079
        %v2752 = vpack.c.b16 %v2084, %v2080
        %v2753 = vpack.c.b16 %v2085, %v2081
        %v2754 = vpack.c.b16 %v2090, %v2086
        %v2755 = vpack.c.b16 %v2091, %v2087
        %v2756 = vpack.c.b16 %v2092, %v2088
        %v2757 = vpack.c.b16 %v2093, %v2089
        %v2758 = vpack.c.b16 %v2098, %v2094
        %v2759 = vpack.c.b16 %v2099, %v2095
        %v2760 = vpack.c.b16 %v2100, %v2096
        %v2761 = vpack.c.b16 %v2101, %v2097
        %v2762 = vpack.c.b16 %v2106, %v2102
        %v2763 = vpack.c.b16 %v2107, %v2103
        %v2764 = vpack.c.b16 %v2108, %v2104
        %v2765 = vpack.c.b16 %v2109, %v2105
        %v2766 = vpack.c.b16 %v2114, %v2110
        %v2767 = vpack.c.b16 %v2115, %v2111
        %v2768 = vpack.c.b16 %v2116, %v2112
        %v2769 = vpack.c.b16 %v2117, %v2113
        %v2770 = vpack.c.b16 %v2122, %v2118
        %v2771 = vpack.c.b16 %v2123, %v2119
        %v2772 = vpack.c.b16 %v2124, %v2120
        %v2773 = vpack.c.b16 %v2125, %v2121
        %v2774 = vpack.c.b16 %v2130, %v2126
        %v2775 = vpack.c.b16 %v2131, %v2127
        %v2776 = vpack.c.b16 %v2132, %v2128
        %v2777 = vpack.c.b16 %v2133, %v2129
        %v2778 = vpack.c.b16 %v2138, %v2134
        %v2779 = vpack.c.b16 %v2139, %v2135
        %v2780 = vpack.c.b16 %v2140, %v2136
        %v2781 = vpack.c.b16 %v2141, %v2137
        %v2782 = vpack.c.b16 %v2146, %v2142
        %v2783 = vpack.c.b16 %v2147, %v2143
        %v2784 = vpack.c.b16 %v2148, %v2144
        %v2785 = vpack.c.b16 %v2149, %v2145
        %v2786 = vpack.c.b16 %v2154, %v2150
        %v2787 = vpack.c.b16 %v2155, %v2151
        %v2788 = vpack.c.b16 %v2156, %v2152
        %v2789 = vpack.c.b16 %v2157, %v2153
        %v2790 = vpack.c.b16 %v2162, %v2158
        %v2791 = vpack.c.b16 %v2163, %v2159
        %v2792 = vpack.c.b16 %v2164, %v2160
        %v2793 = vpack.c.b16 %v2165, %v2161
        %v2794 = vpack.c.b16 %v2170, %v2166
        %v2795 = vpack.c.b16 %v2171, %v2167
        %v2796 = vpack.c.b16 %v2172, %v2168
        %v2797 = vpack.c.b16 %v2173, %v2169
        %v2798 = vpack.c.b16 %v2178, %v2174
        %v2799 = vpack.c.b16 %v2179, %v2175
        %v2800 = vpack.c.b16 %v2180, %v2176
        %v2801 = vpack.c.b16 %v2181, %v2177
        %v2802 = vpack.c.b16 %v2186, %v2182
        %v2803 = vpack.c.b16 %v2187, %v2183
        %v2804 = vpack.c.b16 %v2188, %v2184
        %v2805 = vpack.c.b16 %v2189, %v2185
        %v2806 = vpack.c.b16 %v2194, %v2190
        %v2807 = vpack.c.b16 %v2195, %v2191
        %v2808 = vpack.c.b16 %v2196, %v2192
        %v2809 = vpack.c.b16 %v2197, %v2193
        %v2810 = vpack.c.b16 %v2202, %v2198
        %v2811 = vpack.c.b16 %v2203, %v2199
        %v2812 = vpack.c.b16 %v2204, %v2200
        %v2813 = vpack.c.b16 %v2205, %v2201
        %v2814 = vpack.c.b16 %v2210, %v2206
        %v2815 = vpack.c.b16 %v2211, %v2207
        %v2816 = vpack.c.b16 %v2212, %v2208
        %v2817 = vpack.c.b16 %v2213, %v2209
        %v2818 = vpack.c.b16 %v2218, %v2214
        %v2819 = vpack.c.b16 %v2219, %v2215
        %v2820 = vpack.c.b16 %v2220, %v2216
        %v2821 = vpack.c.b16 %v2221, %v2217
        %v2822 = vpack.c.b16 %v2226, %v2222
        %v2823 = vpack.c.b16 %v2227, %v2223
        %v2824 = vpack.c.b16 %v2228, %v2224
        %v2825 = vpack.c.b16 %v2229, %v2225
        %v2826 = vpack.c.b16 %v2234, %v2230
        %v2827 = vpack.c.b16 %v2235, %v2231
        %v2828 = vpack.c.b16 %v2236, %v2232
        %v2829 = vpack.c.b16 %v2237, %v2233
        %v2830 = vpack.c.b16 %v2242, %v2238
        %v2831 = vpack.c.b16 %v2243, %v2239
        %v2832 = vpack.c.b16 %v2244, %v2240
        %v2833 = vpack.c.b16 %v2245, %v2241
        %v2834 = vpack.c.b16 %v2250, %v2246
        %v2835 = vpack.c.b16 %v2251, %v2247
        %v2836 = vpack.c.b16 %v2252, %v2248
        %v2837 = vpack.c.b16 %v2253, %v2249
        %v2838 = vpack.c.b16 %v2258, %v2254
        %v2839 = vpack.c.b16 %v2259, %v2255
        %v2840 = vpack.c.b16 %v2260, %v2256
        %v2841 = vpack.c.b16 %v2261, %v2257
        %v2842 = vpack.c.b16 %v2266, %v2262
        %v2843 = vpack.c.b16 %v2267, %v2263
        %v2844 = vpack.c.b16 %v2268, %v2264
        %v2845 = vpack.c.b16 %v2269, %v2265
        %v2846 = vpack.c.b16 %v2274, %v2270
        %v2847 = vpack.c.b16 %v2275, %v2271
        %v2848 = vpack.c.b16 %v2276, %v2272
        %v2849 = vpack.c.b16 %v2277, %v2273
        %v2850 = vpack.c.b16 %v2282, %v2278
        %v2851 = vpack.c.b16 %v2283, %v2279
        %v2852 = vpack.c.b16 %v2284, %v2280
        %v2853 = vpack.c.b16 %v2285, %v2281
        %v2854 = vpack.c.b16 %v2290, %v2286
        %v2855 = vpack.c.b16 %v2291, %v2287
        %v2856 = vpack.c.b16 %v2292, %v2288
        %v2857 = vpack.c.b16 %v2293, %v2289
        %v2858 = vpack.c.b16 %v2298, %v2294
        %v2859 = vpack.c.b16 %v2299, %v2295
        %v2860 = vpack.c.b16 %v2300, %v2296
        %v2861 = vpack.c.b16 %v2301, %v2297
        %v2862 = vpack.c.b16 %v2306, %v2302
        %v2863 = vpack.c.b16 %v2307, %v2303
        %v2864 = vpack.c.b16 %v2308, %v2304
        %v2865 = vpack.c.b16 %v2309, %v2305
        %v2866 = vpack.c.b16 %v2314, %v2310
        %v2867 = vpack.c.b16 %v2315, %v2311
        %v2868 = vpack.c.b16 %v2316, %v2312
        %v2869 = vpack.c.b16 %v2317, %v2313
        %v2870 = vpack.c.b16 %v2322, %v2318
        %v2871 = vpack.c.b16 %v2323, %v2319
        %v2872 = vpack.c.b16 %v2324, %v2320
        %v2873 = vpack.c.b16 %v2325, %v2321
        %v2874 = vpack.c.b16 %v2330, %v2326
        %v2875 = vpack.c.b16 %v2331, %v2327
        %v2876 = vpack.c.b16 %v2332, %v2328
        %v2877 = vpack.c.b16 %v2333, %v2329
        %v2878 = vpack.c.b16 %v2338, %v2334
        %v2879 = vpack.c.b16 %v2339, %v2335
        %v2880 = vpack.c.b16 %v2340, %v2336
        %v2881 = vpack.c.b16 %v2341, %v2337
        %v2882 = vpack.c.b16 %v2346, %v2342
        %v2883 = vpack.c.b16 %v2347, %v2343
        %v2884 = vpack.c.b16 %v2348, %v2344
        %v2885 = vpack.c.b16 %v2349, %v2345
        %v2886 = vpack.c.b16 %v2354, %v2350
        %v2887 = vpack.c.b16 %v2355, %v2351
        %v2888 = vpack.c.b16 %v2356, %v2352
        %v2889 = vpack.c.b16 %v2357, %v2353
        %v2890 = vpack.c.b16 %v2362, %v2358
        %v2891 = vpack.c.b16 %v2363, %v2359
        %v2892 = vpack.c.b16 %v2364, %v2360
        %v2893 = vpack.c.b16 %v2365, %v2361
        %v2894 = vpack.c.b16 %v2370, %v2366
        %v2895 = vpack.c.b16 %v2371, %v2367
        %v2896 = vpack.c.b16 %v2372, %v2368
        %v2897 = vpack.c.b16 %v2373, %v2369
        %v2898 = vpack.c.b16 %v2378, %v2374
        %v2899 = vpack.c.b16 %v2379, %v2375
        %v2900 = vpack.c.b16 %v2380, %v2376
        %v2901 = vpack.c.b16 %v2381, %v2377
        %v2902 = vpack.c.b16 %v2386, %v2382
        %v2903 = vpack.c.b16 %v2387, %v2383
        %v2904 = vpack.c.b16 %v2388, %v2384
        %v2905 = vpack.c.b16 %v2389, %v2385
        %v2906 = vpack.c.b16 %v2394, %v2390
        %v2907 = vpack.c.b16 %v2395, %v2391
        %v2908 = vpack.c.b16 %v2396, %v2392
        %v2909 = vpack.c.b16 %v2397, %v2393
        %3422 = vmatpush.bf16.msra.mxu0 %v2426
        %3423 = vmatpush.bf16.msra.mxu0 %v2422
        %3424 = vmatpush.bf16.msra.mxu0 %v2418
        %3425 = vmatpush.bf16.msra.mxu0 %v2414
        %3426 = vmatpush.bf16.msra.mxu0 %v2410
        %3427 = vmatpush.bf16.msra.mxu0 %v2406
        %3428 = vmatpush.bf16.msra.mxu0 %v2402
        %3429 = vmatpush.bf16.msra.mxu0 %v2398
        %3430 = vmatmul.bf16.gmra.mxu0 %v324
        %v3431 = vpop.f32.mrf.mxu0
        %v3432 = vadd.f32 %v854, %v3431
        %v3433 = vpop.f32.mrf.mxu0
        %3434 = vdwg.mxu0
        %3435 = vmatpush.bf16.msra.mxu0 %v2458
        %3436 = vmatpush.bf16.msra.mxu0 %v2454
        %3437 = vmatpush.bf16.msra.mxu0 %v2450
        %3438 = vmatpush.bf16.msra.mxu0 %v2446
        %3439 = vmatpush.bf16.msra.mxu0 %v2442
        %3440 = vmatpush.bf16.msra.mxu0 %v2438
        %3441 = vmatpush.bf16.msra.mxu0 %v2434
        %3442 = vmatpush.bf16.msra.mxu0 %v2430
        %3443 = vmatmul.bf16.gmra.mxu0 %v325
        %v3444 = vpop.f32.mrf.mxu0
        %v3445 = vadd.f32 %v3432, %v3444
        %v3446 = vpop.f32.mrf.mxu0
        %3447 = vdwg.mxu0
        %3448 = vmatpush.bf16.msra.mxu0 %v2490
        %3449 = vmatpush.bf16.msra.mxu0 %v2486
        %3450 = vmatpush.bf16.msra.mxu0 %v2482
        %3451 = vmatpush.bf16.msra.mxu0 %v2478
        %3452 = vmatpush.bf16.msra.mxu0 %v2474
        %3453 = vmatpush.bf16.msra.mxu0 %v2470
        %3454 = vmatpush.bf16.msra.mxu0 %v2466
        %3455 = vmatpush.bf16.msra.mxu0 %v2462
        %3456 = vmatmul.bf16.gmra.mxu0 %v326
        %v3457 = vpop.f32.mrf.mxu0
        %v3458 = vadd.f32 %v3445, %v3457
        %v3459 = vpop.f32.mrf.mxu0
        %3460 = vdwg.mxu0
        %3461 = vmatpush.bf16.msra.mxu0 %v2522
        %3462 = vmatpush.bf16.msra.mxu0 %v2518
        %3463 = vmatpush.bf16.msra.mxu0 %v2514
        %3464 = vmatpush.bf16.msra.mxu0 %v2510
        %3465 = vmatpush.bf16.msra.mxu0 %v2506
        %3466 = vmatpush.bf16.msra.mxu0 %v2502
        %3467 = vmatpush.bf16.msra.mxu0 %v2498
        %3468 = vmatpush.bf16.msra.mxu0 %v2494
        %3469 = vmatmul.bf16.gmra.mxu0 %v327
        %v3470 = vpop.f32.mrf.mxu0
        %v3471 = vadd.f32 %v3458, %v3470
        %v3472 = vpop.f32.mrf.mxu0
        %3473 = vdwg.mxu0
        %3474 = vmatpush.bf16.msra.mxu0 %v2554
        %3475 = vmatpush.bf16.msra.mxu0 %v2550
        %3476 = vmatpush.bf16.msra.mxu0 %v2546
        %3477 = vmatpush.bf16.msra.mxu0 %v2542
        %3478 = vmatpush.bf16.msra.mxu0 %v2538
        %3479 = vmatpush.bf16.msra.mxu0 %v2534
        %3480 = vmatpush.bf16.msra.mxu0 %v2530
        %3481 = vmatpush.bf16.msra.mxu0 %v2526
        %3482 = vmatmul.bf16.gmra.mxu0 %v328
        %v3483 = vpop.f32.mrf.mxu0
        %v3484 = vadd.f32 %v3471, %v3483
        %v3485 = vpop.f32.mrf.mxu0
        %3486 = vdwg.mxu0
        %3487 = vmatpush.bf16.msra.mxu0 %v2586
        %3488 = vmatpush.bf16.msra.mxu0 %v2582
        %3489 = vmatpush.bf16.msra.mxu0 %v2578
        %3490 = vmatpush.bf16.msra.mxu0 %v2574
        %3491 = vmatpush.bf16.msra.mxu0 %v2570
        %3492 = vmatpush.bf16.msra.mxu0 %v2566
        %3493 = vmatpush.bf16.msra.mxu0 %v2562
        %3494 = vmatpush.bf16.msra.mxu0 %v2558
        %3495 = vmatmul.bf16.gmra.mxu0 %v329
        %v3496 = vpop.f32.mrf.mxu0
        %v3497 = vadd.f32 %v3484, %v3496
        %v3498 = vpop.f32.mrf.mxu0
        %3499 = vdwg.mxu0
        %3500 = vmatpush.bf16.msra.mxu0 %v2618
        %3501 = vmatpush.bf16.msra.mxu0 %v2614
        %3502 = vmatpush.bf16.msra.mxu0 %v2610
        %3503 = vmatpush.bf16.msra.mxu0 %v2606
        %3504 = vmatpush.bf16.msra.mxu0 %v2602
        %3505 = vmatpush.bf16.msra.mxu0 %v2598
        %3506 = vmatpush.bf16.msra.mxu0 %v2594
        %3507 = vmatpush.bf16.msra.mxu0 %v2590
        %3508 = vmatmul.bf16.gmra.mxu0 %v330
        %v3509 = vpop.f32.mrf.mxu0
        %v3510 = vadd.f32 %v3497, %v3509
        %v3511 = vpop.f32.mrf.mxu0
        %3512 = vdwg.mxu0
        %3513 = vmatpush.bf16.msra.mxu0 %v2650
        %3514 = vmatpush.bf16.msra.mxu0 %v2646
        %3515 = vmatpush.bf16.msra.mxu0 %v2642
        %3516 = vmatpush.bf16.msra.mxu0 %v2638
        %3517 = vmatpush.bf16.msra.mxu0 %v2634
        %3518 = vmatpush.bf16.msra.mxu0 %v2630
        %3519 = vmatpush.bf16.msra.mxu0 %v2626
        %3520 = vmatpush.bf16.msra.mxu0 %v2622
        %3521 = vmatmul.bf16.gmra.mxu0 %v331
        %v3522 = vpop.f32.mrf.mxu0
        %v3523 = vadd.f32 %v3510, %v3522
        %v3524 = vpop.f32.mrf.mxu0
        %3525 = vdwg.mxu0
        %3526 = vmatpush.bf16.msra.mxu0 %v2682
        %3527 = vmatpush.bf16.msra.mxu0 %v2678
        %3528 = vmatpush.bf16.msra.mxu0 %v2674
        %3529 = vmatpush.bf16.msra.mxu0 %v2670
        %3530 = vmatpush.bf16.msra.mxu0 %v2666
        %3531 = vmatpush.bf16.msra.mxu0 %v2662
        %3532 = vmatpush.bf16.msra.mxu0 %v2658
        %3533 = vmatpush.bf16.msra.mxu0 %v2654
        %3534 = vmatmul.bf16.gmra.mxu0 %v332
        %v3535 = vpop.f32.mrf.mxu0
        %v3536 = vadd.f32 %v3523, %v3535
        %v3537 = vpop.f32.mrf.mxu0
        %3538 = vdwg.mxu0
        %3539 = vmatpush.bf16.msra.mxu0 %v2714
        %3540 = vmatpush.bf16.msra.mxu0 %v2710
        %3541 = vmatpush.bf16.msra.mxu0 %v2706
        %3542 = vmatpush.bf16.msra.mxu0 %v2702
        %3543 = vmatpush.bf16.msra.mxu0 %v2698
        %3544 = vmatpush.bf16.msra.mxu0 %v2694
        %3545 = vmatpush.bf16.msra.mxu0 %v2690
        %3546 = vmatpush.bf16.msra.mxu0 %v2686
        %3547 = vmatmul.bf16.gmra.mxu0 %v333
        %v3548 = vpop.f32.mrf.mxu0
        %v3549 = vadd.f32 %v3536, %v3548
        %v3550 = vpop.f32.mrf.mxu0
        %3551 = vdwg.mxu0
        %3552 = vmatpush.bf16.msra.mxu0 %v2746
        %3553 = vmatpush.bf16.msra.mxu0 %v2742
        %3554 = vmatpush.bf16.msra.mxu0 %v2738
        %3555 = vmatpush.bf16.msra.mxu0 %v2734
        %3556 = vmatpush.bf16.msra.mxu0 %v2730
        %3557 = vmatpush.bf16.msra.mxu0 %v2726
        %3558 = vmatpush.bf16.msra.mxu0 %v2722
        %3559 = vmatpush.bf16.msra.mxu0 %v2718
        %3560 = vmatmul.bf16.gmra.mxu0 %v334
        %v3561 = vpop.f32.mrf.mxu0
        %v3562 = vadd.f32 %v3549, %v3561
        %v3563 = vpop.f32.mrf.mxu0
        %3564 = vdwg.mxu0
        %3565 = vmatpush.bf16.msra.mxu0 %v2778
        %3566 = vmatpush.bf16.msra.mxu0 %v2774
        %3567 = vmatpush.bf16.msra.mxu0 %v2770
        %3568 = vmatpush.bf16.msra.mxu0 %v2766
        %3569 = vmatpush.bf16.msra.mxu0 %v2762
        %3570 = vmatpush.bf16.msra.mxu0 %v2758
        %3571 = vmatpush.bf16.msra.mxu0 %v2754
        %3572 = vmatpush.bf16.msra.mxu0 %v2750
        %3573 = vmatmul.bf16.gmra.mxu0 %v335
        %v3574 = vpop.f32.mrf.mxu0
        %v3575 = vadd.f32 %v3562, %v3574
        %v3576 = vpop.f32.mrf.mxu0
        %3577 = vdwg.mxu0
        %3578 = vmatpush.bf16.msra.mxu0 %v2810
        %3579 = vmatpush.bf16.msra.mxu0 %v2806
        %3580 = vmatpush.bf16.msra.mxu0 %v2802
        %3581 = vmatpush.bf16.msra.mxu0 %v2798
        %3582 = vmatpush.bf16.msra.mxu0 %v2794
        %3583 = vmatpush.bf16.msra.mxu0 %v2790
        %3584 = vmatpush.bf16.msra.mxu0 %v2786
        %3585 = vmatpush.bf16.msra.mxu0 %v2782
        %3586 = vmatmul.bf16.gmra.mxu0 %v336
        %v3587 = vpop.f32.mrf.mxu0
        %v3588 = vadd.f32 %v3575, %v3587
        %v3589 = vpop.f32.mrf.mxu0
        %3590 = vdwg.mxu0
        %3591 = vmatpush.bf16.msra.mxu0 %v2842
        %3592 = vmatpush.bf16.msra.mxu0 %v2838
        %3593 = vmatpush.bf16.msra.mxu0 %v2834
        %3594 = vmatpush.bf16.msra.mxu0 %v2830
        %3595 = vmatpush.bf16.msra.mxu0 %v2826
        %3596 = vmatpush.bf16.msra.mxu0 %v2822
        %3597 = vmatpush.bf16.msra.mxu0 %v2818
        %3598 = vmatpush.bf16.msra.mxu0 %v2814
        %3599 = vmatmul.bf16.gmra.mxu0 %v337
        %v3600 = vpop.f32.mrf.mxu0
        %v3601 = vadd.f32 %v3588, %v3600
        %v3602 = vpop.f32.mrf.mxu0
        %3603 = vdwg.mxu0
        %3604 = vmatpush.bf16.msra.mxu0 %v2874
        %3605 = vmatpush.bf16.msra.mxu0 %v2870
        %3606 = vmatpush.bf16.msra.mxu0 %v2866
        %3607 = vmatpush.bf16.msra.mxu0 %v2862
        %3608 = vmatpush.bf16.msra.mxu0 %v2858
        %3609 = vmatpush.bf16.msra.mxu0 %v2854
        %3610 = vmatpush.bf16.msra.mxu0 %v2850
        %3611 = vmatpush.bf16.msra.mxu0 %v2846
        %3612 = vmatmul.bf16.gmra.mxu0 %v338
        %v3613 = vpop.f32.mrf.mxu0
        %v3614 = vadd.f32 %v3601, %v3613
        %v3615 = vpop.f32.mrf.mxu0
        %3616 = vdwg.mxu0
        %3617 = vmatpush.bf16.msra.mxu0 %v2906
        %3618 = vmatpush.bf16.msra.mxu0 %v2902
        %3619 = vmatpush.bf16.msra.mxu0 %v2898
        %3620 = vmatpush.bf16.msra.mxu0 %v2894
        %3621 = vmatpush.bf16.msra.mxu0 %v2890
        %3622 = vmatpush.bf16.msra.mxu0 %v2886
        %3623 = vmatpush.bf16.msra.mxu0 %v2882
        %3624 = vmatpush.bf16.msra.mxu0 %v2878
        %3625 = vmatmul.bf16.gmra.mxu0 %v339
        %v3626 = vpop.f32.mrf.mxu0
        %v3627 = vadd.f32 %v3614, %v3626
        %v3628 = vpop.f32.mrf.mxu0
        %3629 = vdwg.mxu0
        %3630 = vmatpush.bf16.msra.mxu0 %v2427
        %3631 = vmatpush.bf16.msra.mxu0 %v2423
        %3632 = vmatpush.bf16.msra.mxu0 %v2419
        %3633 = vmatpush.bf16.msra.mxu0 %v2415
        %3634 = vmatpush.bf16.msra.mxu0 %v2411
        %3635 = vmatpush.bf16.msra.mxu0 %v2407
        %3636 = vmatpush.bf16.msra.mxu0 %v2403
        %3637 = vmatpush.bf16.msra.mxu0 %v2399
        %3638 = vmatmul.bf16.gmra.mxu0 %v324
        %v3639 = vpop.f32.mrf.mxu0
        %v3640 = vadd.f32 %v855, %v3639
        %v3641 = vpop.f32.mrf.mxu0
        %3642 = vdwg.mxu0
        %3643 = vmatpush.bf16.msra.mxu0 %v2459
        %3644 = vmatpush.bf16.msra.mxu0 %v2455
        %3645 = vmatpush.bf16.msra.mxu0 %v2451
        %3646 = vmatpush.bf16.msra.mxu0 %v2447
        %3647 = vmatpush.bf16.msra.mxu0 %v2443
        %3648 = vmatpush.bf16.msra.mxu0 %v2439
        %3649 = vmatpush.bf16.msra.mxu0 %v2435
        %3650 = vmatpush.bf16.msra.mxu0 %v2431
        %3651 = vmatmul.bf16.gmra.mxu0 %v325
        %v3652 = vpop.f32.mrf.mxu0
        %v3653 = vadd.f32 %v3640, %v3652
        %v3654 = vpop.f32.mrf.mxu0
        %3655 = vdwg.mxu0
        %3656 = vmatpush.bf16.msra.mxu0 %v2491
        %3657 = vmatpush.bf16.msra.mxu0 %v2487
        %3658 = vmatpush.bf16.msra.mxu0 %v2483
        %3659 = vmatpush.bf16.msra.mxu0 %v2479
        %3660 = vmatpush.bf16.msra.mxu0 %v2475
        %3661 = vmatpush.bf16.msra.mxu0 %v2471
        %3662 = vmatpush.bf16.msra.mxu0 %v2467
        %3663 = vmatpush.bf16.msra.mxu0 %v2463
        %3664 = vmatmul.bf16.gmra.mxu0 %v326
        %v3665 = vpop.f32.mrf.mxu0
        %v3666 = vadd.f32 %v3653, %v3665
        %v3667 = vpop.f32.mrf.mxu0
        %3668 = vdwg.mxu0
        %3669 = vmatpush.bf16.msra.mxu0 %v2523
        %3670 = vmatpush.bf16.msra.mxu0 %v2519
        %3671 = vmatpush.bf16.msra.mxu0 %v2515
        %3672 = vmatpush.bf16.msra.mxu0 %v2511
        %3673 = vmatpush.bf16.msra.mxu0 %v2507
        %3674 = vmatpush.bf16.msra.mxu0 %v2503
        %3675 = vmatpush.bf16.msra.mxu0 %v2499
        %3676 = vmatpush.bf16.msra.mxu0 %v2495
        %3677 = vmatmul.bf16.gmra.mxu0 %v327
        %v3678 = vpop.f32.mrf.mxu0
        %v3679 = vadd.f32 %v3666, %v3678
        %v3680 = vpop.f32.mrf.mxu0
        %3681 = vdwg.mxu0
        %3682 = vmatpush.bf16.msra.mxu0 %v2555
        %3683 = vmatpush.bf16.msra.mxu0 %v2551
        %3684 = vmatpush.bf16.msra.mxu0 %v2547
        %3685 = vmatpush.bf16.msra.mxu0 %v2543
        %3686 = vmatpush.bf16.msra.mxu0 %v2539
        %3687 = vmatpush.bf16.msra.mxu0 %v2535
        %3688 = vmatpush.bf16.msra.mxu0 %v2531
        %3689 = vmatpush.bf16.msra.mxu0 %v2527
        %3690 = vmatmul.bf16.gmra.mxu0 %v328
        %v3691 = vpop.f32.mrf.mxu0
        %v3692 = vadd.f32 %v3679, %v3691
        %v3693 = vpop.f32.mrf.mxu0
        %3694 = vdwg.mxu0
        %3695 = vmatpush.bf16.msra.mxu0 %v2587
        %3696 = vmatpush.bf16.msra.mxu0 %v2583
        %3697 = vmatpush.bf16.msra.mxu0 %v2579
        %3698 = vmatpush.bf16.msra.mxu0 %v2575
        %3699 = vmatpush.bf16.msra.mxu0 %v2571
        %3700 = vmatpush.bf16.msra.mxu0 %v2567
        %3701 = vmatpush.bf16.msra.mxu0 %v2563
        %3702 = vmatpush.bf16.msra.mxu0 %v2559
        %3703 = vmatmul.bf16.gmra.mxu0 %v329
        %v3704 = vpop.f32.mrf.mxu0
        %v3705 = vadd.f32 %v3692, %v3704
        %v3706 = vpop.f32.mrf.mxu0
        %3707 = vdwg.mxu0
        %3708 = vmatpush.bf16.msra.mxu0 %v2619
        %3709 = vmatpush.bf16.msra.mxu0 %v2615
        %3710 = vmatpush.bf16.msra.mxu0 %v2611
        %3711 = vmatpush.bf16.msra.mxu0 %v2607
        %3712 = vmatpush.bf16.msra.mxu0 %v2603
        %3713 = vmatpush.bf16.msra.mxu0 %v2599
        %3714 = vmatpush.bf16.msra.mxu0 %v2595
        %3715 = vmatpush.bf16.msra.mxu0 %v2591
        %3716 = vmatmul.bf16.gmra.mxu0 %v330
        %v3717 = vpop.f32.mrf.mxu0
        %v3718 = vadd.f32 %v3705, %v3717
        %v3719 = vpop.f32.mrf.mxu0
        %3720 = vdwg.mxu0
        %3721 = vmatpush.bf16.msra.mxu0 %v2651
        %3722 = vmatpush.bf16.msra.mxu0 %v2647
        %3723 = vmatpush.bf16.msra.mxu0 %v2643
        %3724 = vmatpush.bf16.msra.mxu0 %v2639
        %3725 = vmatpush.bf16.msra.mxu0 %v2635
        %3726 = vmatpush.bf16.msra.mxu0 %v2631
        %3727 = vmatpush.bf16.msra.mxu0 %v2627
        %3728 = vmatpush.bf16.msra.mxu0 %v2623
        %3729 = vmatmul.bf16.gmra.mxu0 %v331
        %v3730 = vpop.f32.mrf.mxu0
        %v3731 = vadd.f32 %v3718, %v3730
        %v3732 = vpop.f32.mrf.mxu0
        %3733 = vdwg.mxu0
        %3734 = vmatpush.bf16.msra.mxu0 %v2683
        %3735 = vmatpush.bf16.msra.mxu0 %v2679
        %3736 = vmatpush.bf16.msra.mxu0 %v2675
        %3737 = vmatpush.bf16.msra.mxu0 %v2671
        %3738 = vmatpush.bf16.msra.mxu0 %v2667
        %3739 = vmatpush.bf16.msra.mxu0 %v2663
        %3740 = vmatpush.bf16.msra.mxu0 %v2659
        %3741 = vmatpush.bf16.msra.mxu0 %v2655
        %3742 = vmatmul.bf16.gmra.mxu0 %v332
        %v3743 = vpop.f32.mrf.mxu0
        %v3744 = vadd.f32 %v3731, %v3743
        %v3745 = vpop.f32.mrf.mxu0
        %3746 = vdwg.mxu0
        %3747 = vmatpush.bf16.msra.mxu0 %v2715
        %3748 = vmatpush.bf16.msra.mxu0 %v2711
        %3749 = vmatpush.bf16.msra.mxu0 %v2707
        %3750 = vmatpush.bf16.msra.mxu0 %v2703
        %3751 = vmatpush.bf16.msra.mxu0 %v2699
        %3752 = vmatpush.bf16.msra.mxu0 %v2695
        %3753 = vmatpush.bf16.msra.mxu0 %v2691
        %3754 = vmatpush.bf16.msra.mxu0 %v2687
        %3755 = vmatmul.bf16.gmra.mxu0 %v333
        %v3756 = vpop.f32.mrf.mxu0
        %v3757 = vadd.f32 %v3744, %v3756
        %v3758 = vpop.f32.mrf.mxu0
        %3759 = vdwg.mxu0
        %3760 = vmatpush.bf16.msra.mxu0 %v2747
        %3761 = vmatpush.bf16.msra.mxu0 %v2743
        %3762 = vmatpush.bf16.msra.mxu0 %v2739
        %3763 = vmatpush.bf16.msra.mxu0 %v2735
        %3764 = vmatpush.bf16.msra.mxu0 %v2731
        %3765 = vmatpush.bf16.msra.mxu0 %v2727
        %3766 = vmatpush.bf16.msra.mxu0 %v2723
        %3767 = vmatpush.bf16.msra.mxu0 %v2719
        %3768 = vmatmul.bf16.gmra.mxu0 %v334
        %v3769 = vpop.f32.mrf.mxu0
        %v3770 = vadd.f32 %v3757, %v3769
        %v3771 = vpop.f32.mrf.mxu0
        %3772 = vdwg.mxu0
        %3773 = vmatpush.bf16.msra.mxu0 %v2779
        %3774 = vmatpush.bf16.msra.mxu0 %v2775
        %3775 = vmatpush.bf16.msra.mxu0 %v2771
        %3776 = vmatpush.bf16.msra.mxu0 %v2767
        %3777 = vmatpush.bf16.msra.mxu0 %v2763
        %3778 = vmatpush.bf16.msra.mxu0 %v2759
        %3779 = vmatpush.bf16.msra.mxu0 %v2755
        %3780 = vmatpush.bf16.msra.mxu0 %v2751
        %3781 = vmatmul.bf16.gmra.mxu0 %v335
        %v3782 = vpop.f32.mrf.mxu0
        %v3783 = vadd.f32 %v3770, %v3782
        %v3784 = vpop.f32.mrf.mxu0
        %3785 = vdwg.mxu0
        %3786 = vmatpush.bf16.msra.mxu0 %v2811
        %3787 = vmatpush.bf16.msra.mxu0 %v2807
        %3788 = vmatpush.bf16.msra.mxu0 %v2803
        %3789 = vmatpush.bf16.msra.mxu0 %v2799
        %3790 = vmatpush.bf16.msra.mxu0 %v2795
        %3791 = vmatpush.bf16.msra.mxu0 %v2791
        %3792 = vmatpush.bf16.msra.mxu0 %v2787
        %3793 = vmatpush.bf16.msra.mxu0 %v2783
        %3794 = vmatmul.bf16.gmra.mxu0 %v336
        %v3795 = vpop.f32.mrf.mxu0
        %v3796 = vadd.f32 %v3783, %v3795
        %v3797 = vpop.f32.mrf.mxu0
        %3798 = vdwg.mxu0
        %3799 = vmatpush.bf16.msra.mxu0 %v2843
        %3800 = vmatpush.bf16.msra.mxu0 %v2839
        %3801 = vmatpush.bf16.msra.mxu0 %v2835
        %3802 = vmatpush.bf16.msra.mxu0 %v2831
        %3803 = vmatpush.bf16.msra.mxu0 %v2827
        %3804 = vmatpush.bf16.msra.mxu0 %v2823
        %3805 = vmatpush.bf16.msra.mxu0 %v2819
        %3806 = vmatpush.bf16.msra.mxu0 %v2815
        %3807 = vmatmul.bf16.gmra.mxu0 %v337
        %v3808 = vpop.f32.mrf.mxu0
        %v3809 = vadd.f32 %v3796, %v3808
        %v3810 = vpop.f32.mrf.mxu0
        %3811 = vdwg.mxu0
        %3812 = vmatpush.bf16.msra.mxu0 %v2875
        %3813 = vmatpush.bf16.msra.mxu0 %v2871
        %3814 = vmatpush.bf16.msra.mxu0 %v2867
        %3815 = vmatpush.bf16.msra.mxu0 %v2863
        %3816 = vmatpush.bf16.msra.mxu0 %v2859
        %3817 = vmatpush.bf16.msra.mxu0 %v2855
        %3818 = vmatpush.bf16.msra.mxu0 %v2851
        %3819 = vmatpush.bf16.msra.mxu0 %v2847
        %3820 = vmatmul.bf16.gmra.mxu0 %v338
        %v3821 = vpop.f32.mrf.mxu0
        %v3822 = vadd.f32 %v3809, %v3821
        %v3823 = vpop.f32.mrf.mxu0
        %3824 = vdwg.mxu0
        %3825 = vmatpush.bf16.msra.mxu0 %v2907
        %3826 = vmatpush.bf16.msra.mxu0 %v2903
        %3827 = vmatpush.bf16.msra.mxu0 %v2899
        %3828 = vmatpush.bf16.msra.mxu0 %v2895
        %3829 = vmatpush.bf16.msra.mxu0 %v2891
        %3830 = vmatpush.bf16.msra.mxu0 %v2887
        %3831 = vmatpush.bf16.msra.mxu0 %v2883
        %3832 = vmatpush.bf16.msra.mxu0 %v2879
        %3833 = vmatmul.bf16.gmra.mxu0 %v339
        %v3834 = vpop.f32.mrf.mxu0
        %v3835 = vadd.f32 %v3822, %v3834
        %v3836 = vpop.f32.mrf.mxu0
        %3837 = vdwg.mxu0
        %3838 = vmatpush.bf16.msra.mxu0 %v2428
        %3839 = vmatpush.bf16.msra.mxu0 %v2424
        %3840 = vmatpush.bf16.msra.mxu0 %v2420
        %3841 = vmatpush.bf16.msra.mxu0 %v2416
        %3842 = vmatpush.bf16.msra.mxu0 %v2412
        %3843 = vmatpush.bf16.msra.mxu0 %v2408
        %3844 = vmatpush.bf16.msra.mxu0 %v2404
        %3845 = vmatpush.bf16.msra.mxu0 %v2400
        %3846 = vmatmul.bf16.gmra.mxu0 %v324
        %v3847 = vpop.f32.mrf.mxu0
        %v3848 = vadd.f32 %v856, %v3847
        %v3849 = vpop.f32.mrf.mxu0
        %3850 = vdwg.mxu0
        %3851 = vmatpush.bf16.msra.mxu0 %v2460
        %3852 = vmatpush.bf16.msra.mxu0 %v2456
        %3853 = vmatpush.bf16.msra.mxu0 %v2452
        %3854 = vmatpush.bf16.msra.mxu0 %v2448
        %3855 = vmatpush.bf16.msra.mxu0 %v2444
        %3856 = vmatpush.bf16.msra.mxu0 %v2440
        %3857 = vmatpush.bf16.msra.mxu0 %v2436
        %3858 = vmatpush.bf16.msra.mxu0 %v2432
        %3859 = vmatmul.bf16.gmra.mxu0 %v325
        %v3860 = vpop.f32.mrf.mxu0
        %v3861 = vadd.f32 %v3848, %v3860
        %v3862 = vpop.f32.mrf.mxu0
        %3863 = vdwg.mxu0
        %3864 = vmatpush.bf16.msra.mxu0 %v2492
        %3865 = vmatpush.bf16.msra.mxu0 %v2488
        %3866 = vmatpush.bf16.msra.mxu0 %v2484
        %3867 = vmatpush.bf16.msra.mxu0 %v2480
        %3868 = vmatpush.bf16.msra.mxu0 %v2476
        %3869 = vmatpush.bf16.msra.mxu0 %v2472
        %3870 = vmatpush.bf16.msra.mxu0 %v2468
        %3871 = vmatpush.bf16.msra.mxu0 %v2464
        %3872 = vmatmul.bf16.gmra.mxu0 %v326
        %v3873 = vpop.f32.mrf.mxu0
        %v3874 = vadd.f32 %v3861, %v3873
        %v3875 = vpop.f32.mrf.mxu0
        %3876 = vdwg.mxu0
        %3877 = vmatpush.bf16.msra.mxu0 %v2524
        %3878 = vmatpush.bf16.msra.mxu0 %v2520
        %3879 = vmatpush.bf16.msra.mxu0 %v2516
        %3880 = vmatpush.bf16.msra.mxu0 %v2512
        %3881 = vmatpush.bf16.msra.mxu0 %v2508
        %3882 = vmatpush.bf16.msra.mxu0 %v2504
        %3883 = vmatpush.bf16.msra.mxu0 %v2500
        %3884 = vmatpush.bf16.msra.mxu0 %v2496
        %3885 = vmatmul.bf16.gmra.mxu0 %v327
        %v3886 = vpop.f32.mrf.mxu0
        %v3887 = vadd.f32 %v3874, %v3886
        %v3888 = vpop.f32.mrf.mxu0
        %3889 = vdwg.mxu0
        %3890 = vmatpush.bf16.msra.mxu0 %v2556
        %3891 = vmatpush.bf16.msra.mxu0 %v2552
        %3892 = vmatpush.bf16.msra.mxu0 %v2548
        %3893 = vmatpush.bf16.msra.mxu0 %v2544
        %3894 = vmatpush.bf16.msra.mxu0 %v2540
        %3895 = vmatpush.bf16.msra.mxu0 %v2536
        %3896 = vmatpush.bf16.msra.mxu0 %v2532
        %3897 = vmatpush.bf16.msra.mxu0 %v2528
        %3898 = vmatmul.bf16.gmra.mxu0 %v328
        %v3899 = vpop.f32.mrf.mxu0
        %v3900 = vadd.f32 %v3887, %v3899
        %v3901 = vpop.f32.mrf.mxu0
        %3902 = vdwg.mxu0
        %3903 = vmatpush.bf16.msra.mxu0 %v2588
        %3904 = vmatpush.bf16.msra.mxu0 %v2584
        %3905 = vmatpush.bf16.msra.mxu0 %v2580
        %3906 = vmatpush.bf16.msra.mxu0 %v2576
        %3907 = vmatpush.bf16.msra.mxu0 %v2572
        %3908 = vmatpush.bf16.msra.mxu0 %v2568
        %3909 = vmatpush.bf16.msra.mxu0 %v2564
        %3910 = vmatpush.bf16.msra.mxu0 %v2560
        %3911 = vmatmul.bf16.gmra.mxu0 %v329
        %v3912 = vpop.f32.mrf.mxu0
        %v3913 = vadd.f32 %v3900, %v3912
        %v3914 = vpop.f32.mrf.mxu0
        %3915 = vdwg.mxu0
        %3916 = vmatpush.bf16.msra.mxu0 %v2620
        %3917 = vmatpush.bf16.msra.mxu0 %v2616
        %3918 = vmatpush.bf16.msra.mxu0 %v2612
        %3919 = vmatpush.bf16.msra.mxu0 %v2608
        %3920 = vmatpush.bf16.msra.mxu0 %v2604
        %3921 = vmatpush.bf16.msra.mxu0 %v2600
        %3922 = vmatpush.bf16.msra.mxu0 %v2596
        %3923 = vmatpush.bf16.msra.mxu0 %v2592
        %3924 = vmatmul.bf16.gmra.mxu0 %v330
        %v3925 = vpop.f32.mrf.mxu0
        %v3926 = vadd.f32 %v3913, %v3925
        %v3927 = vpop.f32.mrf.mxu0
        %3928 = vdwg.mxu0
        %3929 = vmatpush.bf16.msra.mxu0 %v2652
        %3930 = vmatpush.bf16.msra.mxu0 %v2648
        %3931 = vmatpush.bf16.msra.mxu0 %v2644
        %3932 = vmatpush.bf16.msra.mxu0 %v2640
        %3933 = vmatpush.bf16.msra.mxu0 %v2636
        %3934 = vmatpush.bf16.msra.mxu0 %v2632
        %3935 = vmatpush.bf16.msra.mxu0 %v2628
        %3936 = vmatpush.bf16.msra.mxu0 %v2624
        %3937 = vmatmul.bf16.gmra.mxu0 %v331
        %v3938 = vpop.f32.mrf.mxu0
        %v3939 = vadd.f32 %v3926, %v3938
        %v3940 = vpop.f32.mrf.mxu0
        %3941 = vdwg.mxu0
        %3942 = vmatpush.bf16.msra.mxu0 %v2684
        %3943 = vmatpush.bf16.msra.mxu0 %v2680
        %3944 = vmatpush.bf16.msra.mxu0 %v2676
        %3945 = vmatpush.bf16.msra.mxu0 %v2672
        %3946 = vmatpush.bf16.msra.mxu0 %v2668
        %3947 = vmatpush.bf16.msra.mxu0 %v2664
        %3948 = vmatpush.bf16.msra.mxu0 %v2660
        %3949 = vmatpush.bf16.msra.mxu0 %v2656
        %3950 = vmatmul.bf16.gmra.mxu0 %v332
        %v3951 = vpop.f32.mrf.mxu0
        %v3952 = vadd.f32 %v3939, %v3951
        %v3953 = vpop.f32.mrf.mxu0
        %3954 = vdwg.mxu0
        %3955 = vmatpush.bf16.msra.mxu0 %v2716
        %3956 = vmatpush.bf16.msra.mxu0 %v2712
        %3957 = vmatpush.bf16.msra.mxu0 %v2708
        %3958 = vmatpush.bf16.msra.mxu0 %v2704
        %3959 = vmatpush.bf16.msra.mxu0 %v2700
        %3960 = vmatpush.bf16.msra.mxu0 %v2696
        %3961 = vmatpush.bf16.msra.mxu0 %v2692
        %3962 = vmatpush.bf16.msra.mxu0 %v2688
        %3963 = vmatmul.bf16.gmra.mxu0 %v333
        %v3964 = vpop.f32.mrf.mxu0
        %v3965 = vadd.f32 %v3952, %v3964
        %v3966 = vpop.f32.mrf.mxu0
        %3967 = vdwg.mxu0
        %3968 = vmatpush.bf16.msra.mxu0 %v2748
        %3969 = vmatpush.bf16.msra.mxu0 %v2744
        %3970 = vmatpush.bf16.msra.mxu0 %v2740
        %3971 = vmatpush.bf16.msra.mxu0 %v2736
        %3972 = vmatpush.bf16.msra.mxu0 %v2732
        %3973 = vmatpush.bf16.msra.mxu0 %v2728
        %3974 = vmatpush.bf16.msra.mxu0 %v2724
        %3975 = vmatpush.bf16.msra.mxu0 %v2720
        %3976 = vmatmul.bf16.gmra.mxu0 %v334
        %v3977 = vpop.f32.mrf.mxu0
        %v3978 = vadd.f32 %v3965, %v3977
        %v3979 = vpop.f32.mrf.mxu0
        %3980 = vdwg.mxu0
        %3981 = vmatpush.bf16.msra.mxu0 %v2780
        %3982 = vmatpush.bf16.msra.mxu0 %v2776
        %3983 = vmatpush.bf16.msra.mxu0 %v2772
        %3984 = vmatpush.bf16.msra.mxu0 %v2768
        %3985 = vmatpush.bf16.msra.mxu0 %v2764
        %3986 = vmatpush.bf16.msra.mxu0 %v2760
        %3987 = vmatpush.bf16.msra.mxu0 %v2756
        %3988 = vmatpush.bf16.msra.mxu0 %v2752
        %3989 = vmatmul.bf16.gmra.mxu0 %v335
        %v3990 = vpop.f32.mrf.mxu0
        %v3991 = vadd.f32 %v3978, %v3990
        %v3992 = vpop.f32.mrf.mxu0
        %3993 = vdwg.mxu0
        %3994 = vmatpush.bf16.msra.mxu0 %v2812
        %3995 = vmatpush.bf16.msra.mxu0 %v2808
        %3996 = vmatpush.bf16.msra.mxu0 %v2804
        %3997 = vmatpush.bf16.msra.mxu0 %v2800
        %3998 = vmatpush.bf16.msra.mxu0 %v2796
        %3999 = vmatpush.bf16.msra.mxu0 %v2792
        %4000 = vmatpush.bf16.msra.mxu0 %v2788
        %4001 = vmatpush.bf16.msra.mxu0 %v2784
        %4002 = vmatmul.bf16.gmra.mxu0 %v336
        %v4003 = vpop.f32.mrf.mxu0
        %v4004 = vadd.f32 %v3991, %v4003
        %v4005 = vpop.f32.mrf.mxu0
        %4006 = vdwg.mxu0
        %4007 = vmatpush.bf16.msra.mxu0 %v2844
        %4008 = vmatpush.bf16.msra.mxu0 %v2840
        %4009 = vmatpush.bf16.msra.mxu0 %v2836
        %4010 = vmatpush.bf16.msra.mxu0 %v2832
        %4011 = vmatpush.bf16.msra.mxu0 %v2828
        %4012 = vmatpush.bf16.msra.mxu0 %v2824
        %4013 = vmatpush.bf16.msra.mxu0 %v2820
        %4014 = vmatpush.bf16.msra.mxu0 %v2816
        %4015 = vmatmul.bf16.gmra.mxu0 %v337
        %v4016 = vpop.f32.mrf.mxu0
        %v4017 = vadd.f32 %v4004, %v4016
        %v4018 = vpop.f32.mrf.mxu0
        %4019 = vdwg.mxu0
        %4020 = vmatpush.bf16.msra.mxu0 %v2876
        %4021 = vmatpush.bf16.msra.mxu0 %v2872
        %4022 = vmatpush.bf16.msra.mxu0 %v2868
        %4023 = vmatpush.bf16.msra.mxu0 %v2864
        %4024 = vmatpush.bf16.msra.mxu0 %v2860
        %4025 = vmatpush.bf16.msra.mxu0 %v2856
        %4026 = vmatpush.bf16.msra.mxu0 %v2852
        %4027 = vmatpush.bf16.msra.mxu0 %v2848
        %4028 = vmatmul.bf16.gmra.mxu0 %v338
        %v4029 = vpop.f32.mrf.mxu0
        %v4030 = vadd.f32 %v4017, %v4029
        %v4031 = vpop.f32.mrf.mxu0
        %4032 = vdwg.mxu0
        %4033 = vmatpush.bf16.msra.mxu0 %v2908
        %4034 = vmatpush.bf16.msra.mxu0 %v2904
        %4035 = vmatpush.bf16.msra.mxu0 %v2900
        %4036 = vmatpush.bf16.msra.mxu0 %v2896
        %4037 = vmatpush.bf16.msra.mxu0 %v2892
        %4038 = vmatpush.bf16.msra.mxu0 %v2888
        %4039 = vmatpush.bf16.msra.mxu0 %v2884
        %4040 = vmatpush.bf16.msra.mxu0 %v2880
        %4041 = vmatmul.bf16.gmra.mxu0 %v339
        %v4042 = vpop.f32.mrf.mxu0
        %v4043 = vadd.f32 %v4030, %v4042
        %v4044 = vpop.f32.mrf.mxu0
        %4045 = vdwg.mxu0
        %4046 = vmatpush.bf16.msra.mxu0 %v2429
        %4047 = vmatpush.bf16.msra.mxu0 %v2425
        %4048 = vmatpush.bf16.msra.mxu0 %v2421
        %4049 = vmatpush.bf16.msra.mxu0 %v2417
        %4050 = vmatpush.bf16.msra.mxu0 %v2413
        %4051 = vmatpush.bf16.msra.mxu0 %v2409
        %4052 = vmatpush.bf16.msra.mxu0 %v2405
        %4053 = vmatpush.bf16.msra.mxu0 %v2401
        %4054 = vmatmul.bf16.gmra.mxu0 %v324
        %v4055 = vpop.f32.mrf.mxu0
        %v4056 = vadd.f32 %v857, %v4055
        %v4057 = vpop.f32.mrf.mxu0
        %4058 = vdwg.mxu0
        %4059 = vmatpush.bf16.msra.mxu0 %v2461
        %4060 = vmatpush.bf16.msra.mxu0 %v2457
        %4061 = vmatpush.bf16.msra.mxu0 %v2453
        %4062 = vmatpush.bf16.msra.mxu0 %v2449
        %4063 = vmatpush.bf16.msra.mxu0 %v2445
        %4064 = vmatpush.bf16.msra.mxu0 %v2441
        %4065 = vmatpush.bf16.msra.mxu0 %v2437
        %4066 = vmatpush.bf16.msra.mxu0 %v2433
        %4067 = vmatmul.bf16.gmra.mxu0 %v325
        %v4068 = vpop.f32.mrf.mxu0
        %v4069 = vadd.f32 %v4056, %v4068
        %v4070 = vpop.f32.mrf.mxu0
        %4071 = vdwg.mxu0
        %4072 = vmatpush.bf16.msra.mxu0 %v2493
        %4073 = vmatpush.bf16.msra.mxu0 %v2489
        %4074 = vmatpush.bf16.msra.mxu0 %v2485
        %4075 = vmatpush.bf16.msra.mxu0 %v2481
        %4076 = vmatpush.bf16.msra.mxu0 %v2477
        %4077 = vmatpush.bf16.msra.mxu0 %v2473
        %4078 = vmatpush.bf16.msra.mxu0 %v2469
        %4079 = vmatpush.bf16.msra.mxu0 %v2465
        %4080 = vmatmul.bf16.gmra.mxu0 %v326
        %v4081 = vpop.f32.mrf.mxu0
        %v4082 = vadd.f32 %v4069, %v4081
        %v4083 = vpop.f32.mrf.mxu0
        %4084 = vdwg.mxu0
        %4085 = vmatpush.bf16.msra.mxu0 %v2525
        %4086 = vmatpush.bf16.msra.mxu0 %v2521
        %4087 = vmatpush.bf16.msra.mxu0 %v2517
        %4088 = vmatpush.bf16.msra.mxu0 %v2513
        %4089 = vmatpush.bf16.msra.mxu0 %v2509
        %4090 = vmatpush.bf16.msra.mxu0 %v2505
        %4091 = vmatpush.bf16.msra.mxu0 %v2501
        %4092 = vmatpush.bf16.msra.mxu0 %v2497
        %4093 = vmatmul.bf16.gmra.mxu0 %v327
        %v4094 = vpop.f32.mrf.mxu0
        %v4095 = vadd.f32 %v4082, %v4094
        %v4096 = vpop.f32.mrf.mxu0
        %4097 = vdwg.mxu0
        %4098 = vmatpush.bf16.msra.mxu0 %v2557
        %4099 = vmatpush.bf16.msra.mxu0 %v2553
        %4100 = vmatpush.bf16.msra.mxu0 %v2549
        %4101 = vmatpush.bf16.msra.mxu0 %v2545
        %4102 = vmatpush.bf16.msra.mxu0 %v2541
        %4103 = vmatpush.bf16.msra.mxu0 %v2537
        %4104 = vmatpush.bf16.msra.mxu0 %v2533
        %4105 = vmatpush.bf16.msra.mxu0 %v2529
        %4106 = vmatmul.bf16.gmra.mxu0 %v328
        %v4107 = vpop.f32.mrf.mxu0
        %v4108 = vadd.f32 %v4095, %v4107
        %v4109 = vpop.f32.mrf.mxu0
        %4110 = vdwg.mxu0
        %4111 = vmatpush.bf16.msra.mxu0 %v2589
        %4112 = vmatpush.bf16.msra.mxu0 %v2585
        %4113 = vmatpush.bf16.msra.mxu0 %v2581
        %4114 = vmatpush.bf16.msra.mxu0 %v2577
        %4115 = vmatpush.bf16.msra.mxu0 %v2573
        %4116 = vmatpush.bf16.msra.mxu0 %v2569
        %4117 = vmatpush.bf16.msra.mxu0 %v2565
        %4118 = vmatpush.bf16.msra.mxu0 %v2561
        %4119 = vmatmul.bf16.gmra.mxu0 %v329
        %v4120 = vpop.f32.mrf.mxu0
        %v4121 = vadd.f32 %v4108, %v4120
        %v4122 = vpop.f32.mrf.mxu0
        %4123 = vdwg.mxu0
        %4124 = vmatpush.bf16.msra.mxu0 %v2621
        %4125 = vmatpush.bf16.msra.mxu0 %v2617
        %4126 = vmatpush.bf16.msra.mxu0 %v2613
        %4127 = vmatpush.bf16.msra.mxu0 %v2609
        %4128 = vmatpush.bf16.msra.mxu0 %v2605
        %4129 = vmatpush.bf16.msra.mxu0 %v2601
        %4130 = vmatpush.bf16.msra.mxu0 %v2597
        %4131 = vmatpush.bf16.msra.mxu0 %v2593
        %4132 = vmatmul.bf16.gmra.mxu0 %v330
        %v4133 = vpop.f32.mrf.mxu0
        %v4134 = vadd.f32 %v4121, %v4133
        %v4135 = vpop.f32.mrf.mxu0
        %4136 = vdwg.mxu0
        %4137 = vmatpush.bf16.msra.mxu0 %v2653
        %4138 = vmatpush.bf16.msra.mxu0 %v2649
        %4139 = vmatpush.bf16.msra.mxu0 %v2645
        %4140 = vmatpush.bf16.msra.mxu0 %v2641
        %4141 = vmatpush.bf16.msra.mxu0 %v2637
        %4142 = vmatpush.bf16.msra.mxu0 %v2633
        %4143 = vmatpush.bf16.msra.mxu0 %v2629
        %4144 = vmatpush.bf16.msra.mxu0 %v2625
        %4145 = vmatmul.bf16.gmra.mxu0 %v331
        %v4146 = vpop.f32.mrf.mxu0
        %v4147 = vadd.f32 %v4134, %v4146
        %v4148 = vpop.f32.mrf.mxu0
        %4149 = vdwg.mxu0
        %4150 = vmatpush.bf16.msra.mxu0 %v2685
        %4151 = vmatpush.bf16.msra.mxu0 %v2681
        %4152 = vmatpush.bf16.msra.mxu0 %v2677
        %4153 = vmatpush.bf16.msra.mxu0 %v2673
        %4154 = vmatpush.bf16.msra.mxu0 %v2669
        %4155 = vmatpush.bf16.msra.mxu0 %v2665
        %4156 = vmatpush.bf16.msra.mxu0 %v2661
        %4157 = vmatpush.bf16.msra.mxu0 %v2657
        %4158 = vmatmul.bf16.gmra.mxu0 %v332
        %v4159 = vpop.f32.mrf.mxu0
        %v4160 = vadd.f32 %v4147, %v4159
        %v4161 = vpop.f32.mrf.mxu0
        %4162 = vdwg.mxu0
        %4163 = vmatpush.bf16.msra.mxu0 %v2717
        %4164 = vmatpush.bf16.msra.mxu0 %v2713
        %4165 = vmatpush.bf16.msra.mxu0 %v2709
        %4166 = vmatpush.bf16.msra.mxu0 %v2705
        %4167 = vmatpush.bf16.msra.mxu0 %v2701
        %4168 = vmatpush.bf16.msra.mxu0 %v2697
        %4169 = vmatpush.bf16.msra.mxu0 %v2693
        %4170 = vmatpush.bf16.msra.mxu0 %v2689
        %4171 = vmatmul.bf16.gmra.mxu0 %v333
        %v4172 = vpop.f32.mrf.mxu0
        %v4173 = vadd.f32 %v4160, %v4172
        %v4174 = vpop.f32.mrf.mxu0
        %4175 = vdwg.mxu0
        %4176 = vmatpush.bf16.msra.mxu0 %v2749
        %4177 = vmatpush.bf16.msra.mxu0 %v2745
        %4178 = vmatpush.bf16.msra.mxu0 %v2741
        %4179 = vmatpush.bf16.msra.mxu0 %v2737
        %4180 = vmatpush.bf16.msra.mxu0 %v2733
        %4181 = vmatpush.bf16.msra.mxu0 %v2729
        %4182 = vmatpush.bf16.msra.mxu0 %v2725
        %4183 = vmatpush.bf16.msra.mxu0 %v2721
        %4184 = vmatmul.bf16.gmra.mxu0 %v334
        %v4185 = vpop.f32.mrf.mxu0
        %v4186 = vadd.f32 %v4173, %v4185
        %v4187 = vpop.f32.mrf.mxu0
        %4188 = vdwg.mxu0
        %4189 = vmatpush.bf16.msra.mxu0 %v2781
        %4190 = vmatpush.bf16.msra.mxu0 %v2777
        %4191 = vmatpush.bf16.msra.mxu0 %v2773
        %4192 = vmatpush.bf16.msra.mxu0 %v2769
        %4193 = vmatpush.bf16.msra.mxu0 %v2765
        %4194 = vmatpush.bf16.msra.mxu0 %v2761
        %4195 = vmatpush.bf16.msra.mxu0 %v2757
        %4196 = vmatpush.bf16.msra.mxu0 %v2753
        %4197 = vmatmul.bf16.gmra.mxu0 %v335
        %v4198 = vpop.f32.mrf.mxu0
        %v4199 = vadd.f32 %v4186, %v4198
        %v4200 = vpop.f32.mrf.mxu0
        %4201 = vdwg.mxu0
        %4202 = vmatpush.bf16.msra.mxu0 %v2813
        %4203 = vmatpush.bf16.msra.mxu0 %v2809
        %4204 = vmatpush.bf16.msra.mxu0 %v2805
        %4205 = vmatpush.bf16.msra.mxu0 %v2801
        %4206 = vmatpush.bf16.msra.mxu0 %v2797
        %4207 = vmatpush.bf16.msra.mxu0 %v2793
        %4208 = vmatpush.bf16.msra.mxu0 %v2789
        %4209 = vmatpush.bf16.msra.mxu0 %v2785
        %4210 = vmatmul.bf16.gmra.mxu0 %v336
        %v4211 = vpop.f32.mrf.mxu0
        %v4212 = vadd.f32 %v4199, %v4211
        %v4213 = vpop.f32.mrf.mxu0
        %4214 = vdwg.mxu0
        %4215 = vmatpush.bf16.msra.mxu0 %v2845
        %4216 = vmatpush.bf16.msra.mxu0 %v2841
        %4217 = vmatpush.bf16.msra.mxu0 %v2837
        %4218 = vmatpush.bf16.msra.mxu0 %v2833
        %4219 = vmatpush.bf16.msra.mxu0 %v2829
        %4220 = vmatpush.bf16.msra.mxu0 %v2825
        %4221 = vmatpush.bf16.msra.mxu0 %v2821
        %4222 = vmatpush.bf16.msra.mxu0 %v2817
        %4223 = vmatmul.bf16.gmra.mxu0 %v337
        %v4224 = vpop.f32.mrf.mxu0
        %v4225 = vadd.f32 %v4212, %v4224
        %v4226 = vpop.f32.mrf.mxu0
        %4227 = vdwg.mxu0
        %4228 = vmatpush.bf16.msra.mxu0 %v2877
        %4229 = vmatpush.bf16.msra.mxu0 %v2873
        %4230 = vmatpush.bf16.msra.mxu0 %v2869
        %4231 = vmatpush.bf16.msra.mxu0 %v2865
        %4232 = vmatpush.bf16.msra.mxu0 %v2861
        %4233 = vmatpush.bf16.msra.mxu0 %v2857
        %4234 = vmatpush.bf16.msra.mxu0 %v2853
        %4235 = vmatpush.bf16.msra.mxu0 %v2849
        %4236 = vmatmul.bf16.gmra.mxu0 %v338
        %v4237 = vpop.f32.mrf.mxu0
        %v4238 = vadd.f32 %v4225, %v4237
        %v4239 = vpop.f32.mrf.mxu0
        %4240 = vdwg.mxu0
        %4241 = vmatpush.bf16.msra.mxu0 %v2909
        %4242 = vmatpush.bf16.msra.mxu0 %v2905
        %4243 = vmatpush.bf16.msra.mxu0 %v2901
        %4244 = vmatpush.bf16.msra.mxu0 %v2897
        %4245 = vmatpush.bf16.msra.mxu0 %v2893
        %4246 = vmatpush.bf16.msra.mxu0 %v2889
        %4247 = vmatpush.bf16.msra.mxu0 %v2885
        %4248 = vmatpush.bf16.msra.mxu0 %v2881
        %4249 = vmatmul.bf16.gmra.mxu0 %v339
        %v4250 = vpop.f32.mrf.mxu0
        %v4251 = vadd.f32 %v4238, %v4250
        %v4252 = vpop.f32.mrf.mxu0
        %4253 = vdwg.mxu0
        %v4254 = vmax.f32 %v3627, 0.0
        %v4255 = vmax.f32 %v3835, 0.0
        %v4256 = vmax.f32 %v4043, 0.0
        %v4257 = vmax.f32 %v4251, 0.0
        %s4258 = sadd.s32 %s25, %s26
        %s4259 = smul.u32 %s4258, 512
        %s4260 = scalar_lea.vmem %s3, %s4259
        %v4261 = vld [vmem:[%s4260] sm:$0xff]
        %v4262 = vld [vmem:[%s4260 + $0x8] sm:$0xff]
        %v4263 = vld [vmem:[%s4260 + $0x10] sm:$0xff]
        %v4264 = vld [vmem:[%s4260 + $0x18] sm:$0xff]
        %v4265 = vld [vmem:[%s4260 + $0x20] sm:$0xff]
        %v4266 = vld [vmem:[%s4260 + $0x28] sm:$0xff]
        %v4267 = vld [vmem:[%s4260 + $0x30] sm:$0xff]
        %v4268 = vld [vmem:[%s4260 + $0x38] sm:$0xff]
        %v4269 = vld [vmem:[%s4260 + $0x40] sm:$0xff]
        %v4270 = vld [vmem:[%s4260 + $0x48] sm:$0xff]
        %v4271 = vld [vmem:[%s4260 + $0x50] sm:$0xff]
        %v4272 = vld [vmem:[%s4260 + $0x58] sm:$0xff]
        %v4273 = vld [vmem:[%s4260 + $0x60] sm:$0xff]
        %v4274 = vld [vmem:[%s4260 + $0x68] sm:$0xff]
        %v4275 = vld [vmem:[%s4260 + $0x70] sm:$0xff]
        %v4276 = vld [vmem:[%s4260 + $0x78] sm:$0xff]
        %v4277 = vld [vmem:[%s4260 + $0x80] sm:$0xff]
        %v4278 = vld [vmem:[%s4260 + $0x88] sm:$0xff]
        %v4279 = vld [vmem:[%s4260 + $0x90] sm:$0xff]
        %v4280 = vld [vmem:[%s4260 + $0x98] sm:$0xff]
        %v4281 = vld [vmem:[%s4260 + $0xa0] sm:$0xff]
        %v4282 = vld [vmem:[%s4260 + $0xa8] sm:$0xff]
        %v4283 = vld [vmem:[%s4260 + $0xb0] sm:$0xff]
        %v4284 = vld [vmem:[%s4260 + $0xb8] sm:$0xff]
        %v4285 = vld [vmem:[%s4260 + $0xc0] sm:$0xff]
        %v4286 = vld [vmem:[%s4260 + $0xc8] sm:$0xff]
        %v4287 = vld [vmem:[%s4260 + $0xd0] sm:$0xff]
        %v4288 = vld [vmem:[%s4260 + $0xd8] sm:$0xff]
        %v4289 = vld [vmem:[%s4260 + $0xe0] sm:$0xff]
        %v4290 = vld [vmem:[%s4260 + $0xe8] sm:$0xff]
        %v4291 = vld [vmem:[%s4260 + $0xf0] sm:$0xff]
        %v4292 = vld [vmem:[%s4260 + $0xf8] sm:$0xff]
        %v4293 = vld [vmem:[%s4260 + $0x100] sm:$0xff]
        %v4294 = vld [vmem:[%s4260 + $0x108] sm:$0xff]
        %v4295 = vld [vmem:[%s4260 + $0x110] sm:$0xff]
        %v4296 = vld [vmem:[%s4260 + $0x118] sm:$0xff]
        %v4297 = vld [vmem:[%s4260 + $0x120] sm:$0xff]
        %v4298 = vld [vmem:[%s4260 + $0x128] sm:$0xff]
        %v4299 = vld [vmem:[%s4260 + $0x130] sm:$0xff]
        %v4300 = vld [vmem:[%s4260 + $0x138] sm:$0xff]
        %v4301 = vld [vmem:[%s4260 + $0x140] sm:$0xff]
        %v4302 = vld [vmem:[%s4260 + $0x148] sm:$0xff]
        %v4303 = vld [vmem:[%s4260 + $0x150] sm:$0xff]
        %v4304 = vld [vmem:[%s4260 + $0x158] sm:$0xff]
        %v4305 = vld [vmem:[%s4260 + $0x160] sm:$0xff]
        %v4306 = vld [vmem:[%s4260 + $0x168] sm:$0xff]
        %v4307 = vld [vmem:[%s4260 + $0x170] sm:$0xff]
        %v4308 = vld [vmem:[%s4260 + $0x178] sm:$0xff]
        %v4309 = vld [vmem:[%s4260 + $0x180] sm:$0xff]
        %v4310 = vld [vmem:[%s4260 + $0x188] sm:$0xff]
        %v4311 = vld [vmem:[%s4260 + $0x190] sm:$0xff]
        %v4312 = vld [vmem:[%s4260 + $0x198] sm:$0xff]
        %v4313 = vld [vmem:[%s4260 + $0x1a0] sm:$0xff]
        %v4314 = vld [vmem:[%s4260 + $0x1a8] sm:$0xff]
        %v4315 = vld [vmem:[%s4260 + $0x1b0] sm:$0xff]
        %v4316 = vld [vmem:[%s4260 + $0x1b8] sm:$0xff]
        %v4317 = vld [vmem:[%s4260 + $0x1c0] sm:$0xff]
        %v4318 = vld [vmem:[%s4260 + $0x1c8] sm:$0xff]
        %v4319 = vld [vmem:[%s4260 + $0x1d0] sm:$0xff]
        %v4320 = vld [vmem:[%s4260 + $0x1d8] sm:$0xff]
        %v4321 = vld [vmem:[%s4260 + $0x1e0] sm:$0xff]
        %v4322 = vld [vmem:[%s4260 + $0x1e8] sm:$0xff]
        %v4323 = vld [vmem:[%s4260 + $0x1f0] sm:$0xff]
        %v4324 = vld [vmem:[%s4260 + $0x1f8] sm:$0xff]
        %4325 = vmatpush.msra.mxu0 %v4276
        %4326 = vmatpush.msra.mxu0 %v4275
        %4327 = vmatpush.msra.mxu0 %v4274
        %4328 = vmatpush.msra.mxu0 %v4273
        %4329 = vmatpush.msra.mxu0 %v4272
        %4330 = vmatpush.msra.mxu0 %v4271
        %4331 = vmatpush.msra.mxu0 %v4270
        %4332 = vmatpush.msra.mxu0 %v4269
        %4333 = vmatpush.msra.mxu0 %v4268
        %4334 = vmatpush.msra.mxu0 %v4267
        %4335 = vmatpush.msra.mxu0 %v4266
        %4336 = vmatpush.msra.mxu0 %v4265
        %4337 = vmatpush.msra.mxu0 %v4264
        %4338 = vmatpush.msra.mxu0 %v4263
        %4339 = vmatpush.msra.mxu0 %v4262
        %4340 = vmatpush.msra.mxu0 %v4261
        %4341 = vmatmul.f32.gmra.mxu0 %v4254
        %v4342 = vpop.f32.mrf.mxu0
        %v4343 = vadd.f32 0.0, %v4342
        %4344 = vdwg.mxu0
        %4345 = vmatpush.msra.mxu0 %v4292
        %4346 = vmatpush.msra.mxu0 %v4291
        %4347 = vmatpush.msra.mxu0 %v4290
        %4348 = vmatpush.msra.mxu0 %v4289
        %4349 = vmatpush.msra.mxu0 %v4288
        %4350 = vmatpush.msra.mxu0 %v4287
        %4351 = vmatpush.msra.mxu0 %v4286
        %4352 = vmatpush.msra.mxu0 %v4285
        %4353 = vmatpush.msra.mxu0 %v4284
        %4354 = vmatpush.msra.mxu0 %v4283
        %4355 = vmatpush.msra.mxu0 %v4282
        %4356 = vmatpush.msra.mxu0 %v4281
        %4357 = vmatpush.msra.mxu0 %v4280
        %4358 = vmatpush.msra.mxu0 %v4279
        %4359 = vmatpush.msra.mxu0 %v4278
        %4360 = vmatpush.msra.mxu0 %v4277
        %4361 = vmatmul.f32.gmra.mxu0 %v4255
        %v4362 = vpop.f32.mrf.mxu0
        %v4363 = vadd.f32 %v4343, %v4362
        %4364 = vdwg.mxu0
        %4365 = vmatpush.msra.mxu0 %v4308
        %4366 = vmatpush.msra.mxu0 %v4307
        %4367 = vmatpush.msra.mxu0 %v4306
        %4368 = vmatpush.msra.mxu0 %v4305
        %4369 = vmatpush.msra.mxu0 %v4304
        %4370 = vmatpush.msra.mxu0 %v4303
        %4371 = vmatpush.msra.mxu0 %v4302
        %4372 = vmatpush.msra.mxu0 %v4301
        %4373 = vmatpush.msra.mxu0 %v4300
        %4374 = vmatpush.msra.mxu0 %v4299
        %4375 = vmatpush.msra.mxu0 %v4298
        %4376 = vmatpush.msra.mxu0 %v4297
        %4377 = vmatpush.msra.mxu0 %v4296
        %4378 = vmatpush.msra.mxu0 %v4295
        %4379 = vmatpush.msra.mxu0 %v4294
        %4380 = vmatpush.msra.mxu0 %v4293
        %4381 = vmatmul.f32.gmra.mxu0 %v4256
        %v4382 = vpop.f32.mrf.mxu0
        %v4383 = vadd.f32 %v4363, %v4382
        %4384 = vdwg.mxu0
        %4385 = vmatpush.msra.mxu0 %v4324
        %4386 = vmatpush.msra.mxu0 %v4323
        %4387 = vmatpush.msra.mxu0 %v4322
        %4388 = vmatpush.msra.mxu0 %v4321
        %4389 = vmatpush.msra.mxu0 %v4320
        %4390 = vmatpush.msra.mxu0 %v4319
        %4391 = vmatpush.msra.mxu0 %v4318
        %4392 = vmatpush.msra.mxu0 %v4317
        %4393 = vmatpush.msra.mxu0 %v4316
        %4394 = vmatpush.msra.mxu0 %v4315
        %4395 = vmatpush.msra.mxu0 %v4314
        %4396 = vmatpush.msra.mxu0 %v4313
        %4397 = vmatpush.msra.mxu0 %v4312
        %4398 = vmatpush.msra.mxu0 %v4311
        %4399 = vmatpush.msra.mxu0 %v4310
        %4400 = vmatpush.msra.mxu0 %v4309
        %4401 = vmatmul.f32.gmra.mxu0 %v4257
        %v4402 = vpop.f32.mrf.mxu0
        %v4403 = vadd.f32 %v4383, %v4402
        %4404 = vdwg.mxu0
        %p4405 = scmp.eq.s32.totalorder %s26, 0
        // Predicated region
        $region45: #{cnn_forward.3} parent=35 // pred_check
          %p4406 = pneg %p4405
        $region46: #{cnn_forward.3} parent=35 // pred_check_branch
          %4408 = sbr.rel (%p4406) target = $region48
        $region47: #{cnn_forward.3} parent=35 // pred_region
          %vm4409 = vcmask 74752
          %4410 = vst.msk [vmem:[%s278] sm:$0x3] %vm4409, %v4403
        $region48: #{cnn_forward.3} parent=35 // pred_fallthru
          _
        %p4411 = scmp.gt.s32.totalorder %s26, 0
        // Predicated region
        $region49: #{cnn_forward.3} parent=35 // pred_check
          %p4412 = pneg %p4411
        $region50: #{cnn_forward.3} parent=35 // pred_check_branch
          %4414 = sbr.rel (%p4412) target = $region52
        $region51: #{cnn_forward.3} parent=35 // pred_region
          %v4415 = vld [vmem:[%s278] sm:$0x3]
          %v4416 = vadd.f32 %v4415, %v4403
          %vm4417 = vcmask 74752
          %4418 = vst.msk [vmem:[%s278] sm:$0x3] %vm4417, %v4416
        $region52: #{cnn_forward.3} parent=35 // pred_fallthru
          _
        %p4419 = scmp.lt.s32.totalorder %s25, 1
        %s4420 = scalar_select %p4419, %s25, 1
        %s4421 = smul.addr %s4420, 2
        %s4422 = scalar_lea.vmem %s4, %s4421
        // Predicated region
        $region53: #{cnn_forward.3} parent=35 // pred_check
          %p4423 = pneg %p149
        $region54: #{cnn_forward.3} parent=35 // pred_check_branch
          %4425 = sbr.rel (%p4423) target = $region56
        $region55: #{cnn_forward.3} parent=35 // pred_region
          _
        $region56: #{cnn_forward.3} parent=35 // pred_fallthru
          _
      $region36: #{cnn_forward.3} parent=5 // pred_fallthru
        _
      %p4426 = scmp.le.s32.totalorder 2, %s16
      // Predicated region
      $region57: #{cnn_forward.3} parent=5 // pred_check
        %p4427 = pneg %p4426
      $region58: #{cnn_forward.3} parent=5 // pred_check_branch
        %4429 = sbr.rel (%p4427) target = $region60
      $region59: #{cnn_forward.3} parent=5 // pred_region
        %s4430 = ssub.s32 %s16, 2
        // Predicated region
        $region61: #{cnn_forward.3} parent=59 // pred_check
          %p4431 = pneg %p155
        $region62: #{cnn_forward.3} parent=59 // pred_check_branch
          %4433 = sbr.rel (%p4431) target = $region64
        $region63: #{cnn_forward.3} parent=59 // pred_region
          %p4434 = scmp.lt.s32.totalorder %s27, 1
          %s4435 = scalar_select %p4434, %s27, 1
          %s4436 = smul.addr %s4435, 2
          %s4437 = scalar_lea.vmem %s4, %s4436
        $region64: #{cnn_forward.3} parent=59 // pred_fallthru
          _
      $region60: #{cnn_forward.3} parent=5 // pred_fallthru
        _
    $region6: #{cnn_forward.3} parent=1 // loop_footer
      %s20 = sadd.s32 1, %s16
    $region7: #{cnn_forward.3} parent=1 // loop_footer_branch
      %15 = sbr.rel target = $region3
    $region8: #{cnn_forward.3} parent=1 // loop_exit
      _
    %4438 = vsyncpa [#allocation3], 1
    %s4439 = scalar_lea.sflag [#allocation3], 1
    %4440 = vsyncpa %s4439, 1
    %4441 = vsyncpa [#allocation5], 1
    %s4442 = scalar_lea.sflag [#allocation5], 1
    %4443 = vsyncpa %s4442, 1

</llo_original>
